<compile_context>
chip_gen: v7x
topology: tpu7x:2x2x1
jax: 0.10.0
libtpu: 0.0.40
codegen_flags: <defaults>
</compile_context>

<pallas_src>
import math
import functools

import jax
import jax.numpy as jnp
from jax.experimental import pallas as pl
from jax.experimental.pallas import tpu as pltpu

TWO_PI = 2.0 * math.pi


# ----------------------------- Pallas kernel ------------------------------ #
def fourier_feature_kernel(x_ref, bt_ref, o_ref, *, mapping_size):
    # x_ref : (TILE_N, in_dim)         row tile of coordinates (f32)
    # bt_ref: (in_dim, mapping_size)   B.T (unscaled), VMEM-resident across grid
    # o_ref : (TILE_N, 2*mapping_size)
    #
    # Projection on the MXU; the VALU stays free for the transcendental phase.
    phase = jnp.dot(x_ref[...], bt_ref[...], preferred_element_type=jnp.float32)
    # Shared range reduction for sin and cos: sin/cos(2*pi*phase) depends only
    # on frac(phase); one round+sub serves both transcendentals, and the
    # arguments handed to sin/cos live in [-pi, pi].
    r = TWO_PI * (phase - jnp.round(phase))
    # Two slice stores instead of a lane-axis concat: the store path handles
    # the lane offset of the cos half.
    o_ref[:, :mapping_size] = jnp.sin(r).astype(o_ref.dtype)
    o_ref[:, mapping_size:] = jnp.cos(r).astype(o_ref.dtype)


# ------------------------------- Wrapper ---------------------------------- #
def prepare_fourier_params(B):
    """One-time transform: pre-transpose B to (input_dim, mapping_size).

    2*pi is intentionally NOT folded in: the kernel reduces the phase mod 1
    (period of sin/cos(2*pi*phase)) before scaling.
    """
    return jnp.asarray(B).T


def fourier_feature_forward(x, b_t, *, tile_n=4096, out_dtype=jnp.float32):
    """x: (..., input_dim) f32.  b_t: (input_dim, mapping_size) f32.

    Returns (..., 2*mapping_size) in `out_dtype` (f32 default; bf16 is a
    bandwidth win on v6e/v7x if the consumer tolerates it).
    """
    in_dim, mapping_size = b_t.shape
    assert x.shape[-1] == in_dim
    out_dim = 2 * mapping_size

    lead_shape = x.shape[:-1]
    x2 = x.reshape(-1, in_dim)
    n = x2.shape[0]

    tile_n = min(tile_n, n)
    grid = (pl.cdiv(n, tile_n),)

    kernel = functools.partial(fourier_feature_kernel, mapping_size=mapping_size)

    flops = 2 * n * in_dim * mapping_size + 3 * n * mapping_size
    transcendentals = 2 * n * mapping_size
    bytes_accessed = int(
        x2.dtype.itemsize * n * in_dim
        + b_t.dtype.itemsize * in_dim * mapping_size
        + jnp.dtype(out_dtype).itemsize * n * out_dim
    )

    out = pl.pallas_call(
        kernel,
        out_shape=jax.ShapeDtypeStruct((n, out_dim), out_dtype),
        grid=grid,
        in_specs=[
            pl.BlockSpec((tile_n, in_dim), lambda i: (i, 0)),        # streamed rows
            pl.BlockSpec((in_dim, mapping_size), lambda i: (0, 0)),  # resident basis
        ],
        out_specs=pl.BlockSpec((tile_n, out_dim), lambda i: (i, 0)),
        compiler_params=pltpu.CompilerParams(
            dimension_semantics=("parallel",),   # megacore-shards N on v7x
        ),
        cost_estimate=pl.CostEstimate(
            flops=int(flops),
            transcendentals=int(transcendentals),
            bytes_accessed=bytes_accessed,
        ),
    )(x2, b_t)
    return out.reshape(*lead_shape, out_dim)


# -------------------------- Pure-JAX reference ----------------------------- #
def fourier_feature_reference(x, B):
    proj = 2.0 * math.pi * (x @ B.T)
    return jnp.concatenate([jnp.sin(proj), jnp.cos(proj)], axis=-1)


# ----------------------------------- Main ---------------------------------- #
if __name__ == "__main__":
    # Small shapes consistent with the module: 2-D coordinates, mapping_size
    # frequencies per point, scale=10.
    N = 256
    IN_DIM = 2
    MAPPING = 20
    SCALE = 10.0
    TILE_N = 128   # small demo tile to exercise a multi-step grid; 4096+ in prod

    key = jax.random.PRNGKey(0)
    kb, kx = jax.random.split(key)

    # Buffer B: (mapping_size, input_dim) ~ N(0,1)*scale  (torch.randn * scale)
    B = jax.random.normal(kb, (MAPPING, IN_DIM), jnp.float32) * SCALE
    x = jax.random.uniform(kx, (N, IN_DIM), jnp.float32, -1.0, 1.0)

    b_t = prepare_fourier_params(B)

    out = fourier_feature_forward(x, b_t, tile_n=TILE_N)
    out = jax.block_until_ready(out)

    ref = fourier_feature_reference(x, B)
    assert out.shape == (N, 2 * MAPPING)
    assert jnp.allclose(out, ref, atol=1e-3, rtol=1e-3), "mismatch vs JAX reference"

    print("KERNEL_OK")
</pallas_src>

<mosaic_0001>
module attributes {stable_mosaic.version = 11 : i64} {
  func.func @fourier_feature_kernel(%arg0: i32, %arg1: memref<128x2xf32, #tpu.memory_space<vmem>>, %arg2: memref<2x20xf32, #tpu.memory_space<vmem>>, %arg3: memref<128x40xf32, #tpu.memory_space<vmem>>) attributes {dimension_semantics = [#tpu.dimension_semantics<parallel>], iteration_bounds = array<i64: 2>, scalar_prefetch = 0 : i64, scratch_operands = 0 : i64, tpu.core_type = #tpu.core_type<tc>, window_params = [{transform_indices = @transform_0, window_bounds = array<i64: 128, 2>}, {pipeline_mode = #tpu.pipeline_mode<synchronous>, transform_indices = @transform_1, window_bounds = array<i64: 2, 20>}, {transform_indices = @transform_2, window_bounds = array<i64: 128, 40>}]} {
    %c0 = arith.constant 0 : index
    %c0_0 = arith.constant 0 : index
    %0 = vector.load %arg1[%c0, %c0_0] : memref<128x2xf32, #tpu.memory_space<vmem>>, vector<128x2xf32>
    %c0_1 = arith.constant 0 : index
    %c0_2 = arith.constant 0 : index
    %1 = vector.load %arg2[%c0_1, %c0_2] : memref<2x20xf32, #tpu.memory_space<vmem>>, vector<2x20xf32>
    %cst = arith.constant dense<0.000000e+00> : vector<128x20xf32>
    %2 = tpu.matmul %0, %1, %cst {dimension_numbers = #tpu.dot_dimension_numbers<[1], [0], [0], [1], [0, 0, 1, 1], [], []>} : vector<128x2xf32>, vector<2x20xf32>, vector<128x20xf32> -> vector<128x20xf32>
    %3 = math.roundeven %2 : vector<128x20xf32>
    %4 = arith.subf %2, %3 : vector<128x20xf32>
    %cst_3 = arith.constant 6.28318548 : f32
    %5 = vector.broadcast %cst_3 : f32 to vector<128x20xf32>
    %6 = arith.mulf %5, %4 : vector<128x20xf32>
    %7 = math.sin %6 : vector<128x20xf32>
    %c0_4 = arith.constant 0 : index
    %c0_5 = arith.constant 0 : index
    %8 = vector.load %arg3[%c0_4, %c0_5] : memref<128x40xf32, #tpu.memory_space<vmem>>, vector<128x20xf32>
    tpu.vector_store %arg3[%c0_4, %c0_5], %7 {strides = array<i32>} : memref<128x40xf32, #tpu.memory_space<vmem>>, vector<128x20xf32>,
    %9 = math.cos %6 : vector<128x20xf32>
    %c0_6 = arith.constant 0 : index
    %c20 = arith.constant 20 : index
    %10 = vector.load %arg3[%c0_6, %c20] : memref<128x40xf32, #tpu.memory_space<vmem>>, vector<128x20xf32>
    tpu.vector_store %arg3[%c0_6, %c20], %9 {strides = array<i32>} : memref<128x40xf32, #tpu.memory_space<vmem>>, vector<128x20xf32>,
    return
  }
  func.func @transform_0(%arg0: i32) -> (i32, i32) {
    %c0_i32 = arith.constant 0 : i32
    %c0_i32_0 = arith.constant 0 : i32
    return %arg0, %c0_i32 : i32, i32
  }
  func.func @transform_1(%arg0: i32) -> (i32, i32) {
    %c0_i32 = arith.constant 0 : i32
    %c0_i32_0 = arith.constant 0 : i32
    %c0_i32_1 = arith.constant 0 : i32
    return %c0_i32, %c0_i32_0 : i32, i32
  }
  func.func @transform_2(%arg0: i32) -> (i32, i32) {
    %c0_i32 = arith.constant 0 : i32
    %c0_i32_0 = arith.constant 0 : i32
    return %arg0, %c0_i32 : i32, i32
  }
}

</mosaic_0001>

<llo_original>
// kernel: tpu_custom_call.1
$region0: #{tpu_custom_call.1}
  #allocation0 [shape = 'u32[]', space=smem, size = 0x4, offset = 0x4, fixed_abs, tag = 'smem constant byte address 0x4 - core index']
  #allocation1 [shape = 'u32[144,128]{1,0:T(1,128)}', space=vmem, size = 0x12000, scoped, tag = 'internal scratch']
  %s0 = inlined_call_operand.vmem [shape: f32[256,2], index: 0, kind: input, shape index: {}]
  %s1 = inlined_call_operand.vmem [shape: f32[2,20], index: 1, kind: input, shape index: {}]
  %s2 = inlined_call_operand.vmem [shape: f32[256,40], index: 2, kind: output, shape index: {}]
  %s3 = sld [smem:[#allocation0]]
  $region41: #{tpu_custom_call.1} parent=0
    _
  %s5 = ssub.s32 1, %s3
  %s6 = scalar_select 0, %s5, %s3
  loop: start=0, step=1, limit=4
  $region2: #{tpu_custom_call.1} parent=0 // loop_pre_header
    _
  $region3: #{tpu_custom_call.1} parent=0 // loop_header
    %s8 = sphi 0, %s12
    %p9 = scmp.ge.s32.totalorder %s8, 4
    %s18 = sphi 0, %s20
    %s21 = sphi 0, %s18
    %s22 = sphi 0, %s21
    %s38 = sphi 0, %s22
    %s42 = sphi 0, %s42
    %s44 = sphi 0, %s42
    %s45 = sphi 0, %s44
    %s59 = sphi 0, %s45
    %s65 = sphi 0, %s67
    %s68 = sphi 0, %s65
    %s69 = sphi 0, %s68
    %s85 = sphi 0, %s69
  $region4: #{tpu_custom_call.1} parent=0 // loop_header_branch
    %11 = sbr.rel (%p9) target = $region8
  $region5: #{tpu_custom_call.1} parent=0 // loop_body
    %s13 = ssub.s32 %s8, 1
    %s14 = ssub.s32 %s8, 2
    %s15 = sadd.s32 %s8, 1
    %s16 = ssub.s32 %s8, %s15
    %p17 = scmp.eq.s32.totalorder %s16, 0
    %s19 = sadd.s32 %s18, 1
    %s20 = scalar_select %p17, %s18, %s19
    %p23 = pneg %p17
    %p24 = scmp.eq.s32.totalorder %s8, 1
    %p25 = por %p23, %p24
    %p26 = scmp.ne.s32.totalorder %s18, %s21
    %p27 = scmp.eq.s32.totalorder %s8, 0
    %p28 = por %p26, %p27
    %p29 = scmp.ne.s32.totalorder %s18, %s21
    %p30 = scmp.eq.s32.totalorder %s13, 1
    %p31 = por %p29, %p30
    %p32 = scmp.ne.s32.totalorder %s21, %s22
    %p33 = scmp.eq.s32.totalorder %s13, 0
    %p34 = por %p32, %p33
    %p35 = scmp.ne.s32.totalorder %s21, %s22
    %p36 = scmp.eq.s32.totalorder %s14, 1
    %p37 = por %p35, %p36
    %p39 = scmp.ne.s32.totalorder %s22, %s38
    %p40 = scmp.eq.s32.totalorder %s14, 0
    %p41 = por %p39, %p40
    %s43 = sadd.s32 %s42, 1
    %p46 = scmp.eq.s32.totalorder %s8, 1
    %p47 = scmp.ne.s32.totalorder %s42, %s44
    %p48 = scmp.eq.s32.totalorder %s8, 0
    %p49 = por %p47, %p48
    %p50 = scmp.ne.s32.totalorder %s42, %s44
    %p51 = scmp.eq.s32.totalorder %s13, 1
    %p52 = por %p50, %p51
    %p53 = scmp.ne.s32.totalorder %s44, %s45
    %p54 = scmp.eq.s32.totalorder %s13, 0
    %p55 = por %p53, %p54
    %p56 = scmp.ne.s32.totalorder %s44, %s45
    %p57 = scmp.eq.s32.totalorder %s14, 1
    %p58 = por %p56, %p57
    %p60 = scmp.ne.s32.totalorder %s45, %s59
    %p61 = scmp.eq.s32.totalorder %s14, 0
    %p62 = por %p60, %p61
    %s63 = ssub.s32 %s8, %s15
    %p64 = scmp.eq.s32.totalorder %s63, 0
    %s66 = sadd.s32 %s65, 1
    %s67 = scalar_select %p64, %s65, %s66
    %p70 = pneg %p64
    %p71 = scmp.eq.s32.totalorder %s8, 1
    %p72 = por %p70, %p71
    %p73 = scmp.ne.s32.totalorder %s65, %s68
    %p74 = scmp.eq.s32.totalorder %s8, 0
    %p75 = por %p73, %p74
    %p76 = scmp.ne.s32.totalorder %s65, %s68
    %p77 = scmp.eq.s32.totalorder %s13, 1
    %p78 = por %p76, %p77
    %p79 = scmp.ne.s32.totalorder %s68, %s69
    %p80 = scmp.eq.s32.totalorder %s13, 0
    %p81 = por %p79, %p80
    %p82 = scmp.ne.s32.totalorder %s68, %s69
    %p83 = scmp.eq.s32.totalorder %s14, 1
    %p84 = por %p82, %p83
    %p86 = scmp.ne.s32.totalorder %s69, %s85
    %p87 = scmp.eq.s32.totalorder %s14, 0
    %p88 = por %p86, %p87
    %p89 = scmp.le.s32.totalorder 1, %s8
    %p90 = scmp.lt.s32.totalorder %s8, 3
    %p91 = pnand %p89, %p90
    %p92 = pneg %p91
    // Predicated region
    $region9: #{tpu_custom_call.1} parent=5 // pred_check
      _
    $region10: #{tpu_custom_call.1} parent=5 // pred_check_branch
      %94 = sbr.rel (%p91) target = $region12
    $region11: #{tpu_custom_call.1} parent=5 // pred_region
      %s95 = ssub.s32 %s8, 1
      // Predicated region
      $region13: #{tpu_custom_call.1} parent=11 // pred_check
        %p96 = pneg %p55
      $region14: #{tpu_custom_call.1} parent=11 // pred_check_branch
        %98 = sbr.rel (%p96) target = $region16
      $region15: #{tpu_custom_call.1} parent=11 // pred_region
        _
      $region16: #{tpu_custom_call.1} parent=11 // pred_fallthru
        _
    $region12: #{tpu_custom_call.1} parent=5 // pred_fallthru
      _
    %p99 = scmp.lt.s32.totalorder %s8, 2
    // Predicated region
    $region17: #{tpu_custom_call.1} parent=5 // pred_check
      %p100 = pneg %p99
    $region18: #{tpu_custom_call.1} parent=5 // pred_check_branch
      %102 = sbr.rel (%p100) target = $region20
    $region19: #{tpu_custom_call.1} parent=5 // pred_region
      // Predicated region
      $region21: #{tpu_custom_call.1} parent=19 // pred_check
        %p103 = pneg %p28
      $region22: #{tpu_custom_call.1} parent=19 // pred_check_branch
        %105 = sbr.rel (%p103) target = $region24
      $region23: #{tpu_custom_call.1} parent=19 // pred_region
        %s106 = smul.u32 16, %s8
        %p107 = scmp.lt.s32.totalorder %s106, 31
        %s108 = scalar_select %p107, %s106, 31
        %s109 = smul.addr %s108, 8
        %s110 = scalar_lea.vmem %s0, %s109
        %s111 = smul.u32 16, %s8
      $region24: #{tpu_custom_call.1} parent=19 // pred_fallthru
        _
    $region20: #{tpu_custom_call.1} parent=5 // pred_fallthru
      _
    %p112 = scmp.le.s32.totalorder 1, %s8
    %p113 = scmp.lt.s32.totalorder %s8, 3
    %p114 = pnand %p112, %p113
    %p115 = pneg %p114
    // Predicated region
    $region25: #{tpu_custom_call.1} parent=5 // pred_check
      _
    $region26: #{tpu_custom_call.1} parent=5 // pred_check_branch
      %117 = sbr.rel (%p114) target = $region28
    $region27: #{tpu_custom_call.1} parent=5 // pred_region
      %s118 = ssub.s32 %s8, 1
      %s119 = smul.u32 16, %s13
      %p120 = scmp.lt.s32.totalorder %s119, 31
      %s121 = scalar_select %p120, %s119, 31
      %s122 = smul.addr %s121, 8
      %s123 = scalar_lea.vmem %s0, %s122
      %p124 = pneg %p34
      %p125 = pneg %p31
      %p126 = pneg %p55
      %p127 = pneg %p52
      %p128 = pneg %p81
      %p129 = pneg %p78
      %s130 = smul.u32 16, %s13
      %p131 = scmp.lt.s32.totalorder %s130, 31
      %s132 = scalar_select %p131, %s130, 31
      %s133 = smul.addr %s132, 8
      %s134 = scalar_lea.vmem %s2, %s133
      %s135 = smul.u32 16, %s13
      %p136 = scmp.lt.s32.totalorder %s135, 31
      %s137 = scalar_select %p136, %s135, 31
      %s138 = smul.addr %s137, 8
      %s139 = scalar_lea.vmem %s0, %s138
      %s140 = smul.u32 16, %s13
      %s141 = smul.u32 16, %s13
      %p142 = scmp.lt.s32.totalorder %s141, 31
      %s143 = scalar_select %p142, %s141, 31
      %s144 = smul.addr %s143, 8
      %s145 = scalar_lea.vmem %s2, %s144
      %s146 = smul.u32 16, %s13
      %v147 = vld [vmem:[%s139] sm:$0xff]
      %v148 = vld [vmem:[%s139 + $0x8] sm:$0xff]
      %v149 = vld [vmem:[%s139 + $0x10] sm:$0xff]
      %v150 = vld [vmem:[%s139 + $0x18] sm:$0xff]
      %v151 = vld [vmem:[%s139 + $0x20] sm:$0xff]
      %v152 = vld [vmem:[%s139 + $0x28] sm:$0xff]
      %v153 = vld [vmem:[%s139 + $0x30] sm:$0xff]
      %v154 = vld [vmem:[%s139 + $0x38] sm:$0xff]
      %v155 = vld [vmem:[%s139 + $0x40] sm:$0xff]
      %v156 = vld [vmem:[%s139 + $0x48] sm:$0xff]
      %v157 = vld [vmem:[%s139 + $0x50] sm:$0xff]
      %v158 = vld [vmem:[%s139 + $0x58] sm:$0xff]
      %v159 = vld [vmem:[%s139 + $0x60] sm:$0xff]
      %v160 = vld [vmem:[%s139 + $0x68] sm:$0xff]
      %v161 = vld [vmem:[%s139 + $0x70] sm:$0xff]
      %v162 = vld [vmem:[%s139 + $0x78] sm:$0xff]
      %v163 = vld [vmem:[%s1] sm:$0x3]
      %vm164 = vcmask 15360
      %v166 = vsel %vm164, %v147, 0
      %v169 = vsel %vm164, %v148, 0
      %v172 = vsel %vm164, %v149, 0
      %v175 = vsel %vm164, %v150, 0
      %v178 = vsel %vm164, %v151, 0
      %v181 = vsel %vm164, %v152, 0
      %v184 = vsel %vm164, %v153, 0
      %v187 = vsel %vm164, %v154, 0
      %v190 = vsel %vm164, %v155, 0
      %v193 = vsel %vm164, %v156, 0
      %v196 = vsel %vm164, %v157, 0
      %v199 = vsel %vm164, %v158, 0
      %v202 = vsel %vm164, %v159, 0
      %v205 = vsel %vm164, %v160, 0
      %v208 = vsel %vm164, %v161, 0
      %v211 = vsel %vm164, %v162, 0
      %vm213 = vcmask 1041408
      %v215 = vsel %vm213, %v163, 0
      %217 = vmatprep.subr.mxu0 0.0
      %218 = vmatpush1.msra.mxu0 %v215
      %219 = vmatprep.subr.mxu0 0.0
      %220 = vmatpush1.msra.mxu0 0.0
      %221 = vmatprep.subr.mxu0 0.0
      %222 = vmatpush1.msra.mxu0 0.0
      %223 = vmatprep.subr.mxu0 0.0
      %224 = vmatpush1.msra.mxu0 0.0
      %225 = vmatprep.subr.mxu0 0.0
      %226 = vmatpush1.msra.mxu0 0.0
      %227 = vmatprep.subr.mxu0 0.0
      %228 = vmatpush1.msra.mxu0 0.0
      %229 = vmatprep.subr.mxu0 0.0
      %230 = vmatpush1.msra.mxu0 0.0
      %231 = vmatprep.subr.mxu0 0.0
      %232 = vmatpush1.msra.mxu0 0.0
      %233 = vmatprep.subr.mxu0 0.0
      %234 = vmatpush1.msra.mxu0 0.0
      %235 = vmatprep.subr.mxu0 0.0
      %236 = vmatpush1.msra.mxu0 0.0
      %237 = vmatprep.subr.mxu0 0.0
      %238 = vmatpush1.msra.mxu0 0.0
      %239 = vmatprep.subr.mxu0 0.0
      %240 = vmatpush1.msra.mxu0 0.0
      %241 = vmatprep.subr.mxu0 0.0
      %242 = vmatpush1.msra.mxu0 0.0
      %243 = vmatprep.subr.mxu0 0.0
      %244 = vmatpush1.msra.mxu0 0.0
      %245 = vmatprep.subr.mxu0 0.0
      %246 = vmatpush1.msra.mxu0 0.0
      %247 = vmatprep.subr.mxu0 0.0
      %248 = vmatpush1.msra.mxu0 0.0
      %249 = vmatprep.subr.mxu0 0.0
      %250 = vmatpush1.msra.mxu0 0.0
      %251 = vmatprep.subr.mxu0 0.0
      %252 = vmatpush1.msra.mxu0 0.0
      %253 = vmatprep.subr.mxu0 0.0
      %254 = vmatpush1.msra.mxu0 0.0
      %255 = vmatprep.subr.mxu0 0.0
      %256 = vmatpush1.msra.mxu0 0.0
      %257 = vmatprep.subr.mxu0 0.0
      %258 = vmatpush1.msra.mxu0 0.0
      %259 = vmatprep.subr.mxu0 0.0
      %260 = vmatpush1.msra.mxu0 0.0
      %261 = vmatprep.subr.mxu0 0.0
      %262 = vmatpush1.msra.mxu0 0.0
      %263 = vmatprep.subr.mxu0 0.0
      %264 = vmatpush1.msra.mxu0 0.0
      %265 = vmatprep.subr.mxu0 0.0
      %266 = vmatpush1.msra.mxu0 0.0
      %267 = vmatprep.subr.mxu0 0.0
      %268 = vmatpush1.msra.mxu0 0.0
      %269 = vmatprep.subr.mxu0 0.0
      %270 = vmatpush1.msra.mxu0 0.0
      %271 = vmatprep.subr.mxu0 0.0
      %272 = vmatpush1.msra.mxu0 0.0
      %273 = vmatprep.subr.mxu0 0.0
      %274 = vmatpush1.msra.mxu0 0.0
      %275 = vmatprep.subr.mxu0 0.0
      %276 = vmatpush1.msra.mxu0 0.0
      %277 = vmatprep.subr.mxu0 0.0
      %278 = vmatpush1.msra.mxu0 0.0
      %279 = vmatprep.subr.mxu0 0.0
      %280 = vmatpush1.msra.mxu0 0.0
      %281 = vmatprep.mubr.f32.mxu0 0.0
      %282 = vmatmul.mubr.f32.gmra.mrb[0].mxu0 %v166
      %v283 = vpop.f32.mrb[0].mxu0
      %v284 = vadd.f32 0.0, %v283
      %v285 = vpop.f32.mrb[0].mxu0
      %286 = vmatprep.mubr.f32.mxu0 0.0
      %287 = vmatmul.mubr.f32.gmra.mrb[0].mxu0 %v169
      %v288 = vpop.f32.mrb[0].mxu0
      %v289 = vadd.f32 0.0, %v288
      %v290 = vpop.f32.mrb[0].mxu0
      %291 = vmatprep.mubr.f32.mxu0 0.0
      %292 = vmatmul.mubr.f32.gmra.mrb[0].mxu0 %v172
      %v293 = vpop.f32.mrb[0].mxu0
      %v294 = vadd.f32 0.0, %v293
      %v295 = vpop.f32.mrb[0].mxu0
      %296 = vmatprep.mubr.f32.mxu0 0.0
      %297 = vmatmul.mubr.f32.gmra.mrb[0].mxu0 %v175
      %v298 = vpop.f32.mrb[0].mxu0
      %v299 = vadd.f32 0.0, %v298
      %v300 = vpop.f32.mrb[0].mxu0
      %301 = vmatprep.mubr.f32.mxu0 0.0
      %302 = vmatmul.mubr.f32.gmra.mrb[0].mxu0 %v178
      %v303 = vpop.f32.mrb[0].mxu0
      %v304 = vadd.f32 0.0, %v303
      %v305 = vpop.f32.mrb[0].mxu0
      %306 = vmatprep.mubr.f32.mxu0 0.0
      %307 = vmatmul.mubr.f32.gmra.mrb[0].mxu0 %v181
      %v308 = vpop.f32.mrb[0].mxu0
      %v309 = vadd.f32 0.0, %v308
      %v310 = vpop.f32.mrb[0].mxu0
      %311 = vmatprep.mubr.f32.mxu0 0.0
      %312 = vmatmul.mubr.f32.gmra.mrb[0].mxu0 %v184
      %v313 = vpop.f32.mrb[0].mxu0
      %v314 = vadd.f32 0.0, %v313
      %v315 = vpop.f32.mrb[0].mxu0
      %316 = vmatprep.mubr.f32.mxu0 0.0
      %317 = vmatmul.mubr.f32.gmra.mrb[0].mxu0 %v187
      %v318 = vpop.f32.mrb[0].mxu0
      %v319 = vadd.f32 0.0, %v318
      %v320 = vpop.f32.mrb[0].mxu0
      %321 = vmatprep.mubr.f32.mxu0 0.0
      %322 = vmatmul.mubr.f32.gmra.mrb[0].mxu0 %v190
      %v323 = vpop.f32.mrb[0].mxu0
      %v324 = vadd.f32 0.0, %v323
      %v325 = vpop.f32.mrb[0].mxu0
      %326 = vmatprep.mubr.f32.mxu0 0.0
      %327 = vmatmul.mubr.f32.gmra.mrb[0].mxu0 %v193
      %v328 = vpop.f32.mrb[0].mxu0
      %v329 = vadd.f32 0.0, %v328
      %v330 = vpop.f32.mrb[0].mxu0
      %331 = vmatprep.mubr.f32.mxu0 0.0
      %332 = vmatmul.mubr.f32.gmra.mrb[0].mxu0 %v196
      %v333 = vpop.f32.mrb[0].mxu0
      %v334 = vadd.f32 0.0, %v333
      %v335 = vpop.f32.mrb[0].mxu0
      %336 = vmatprep.mubr.f32.mxu0 0.0
      %337 = vmatmul.mubr.f32.gmra.mrb[0].mxu0 %v199
      %v338 = vpop.f32.mrb[0].mxu0
      %v339 = vadd.f32 0.0, %v338
      %v340 = vpop.f32.mrb[0].mxu0
      %341 = vmatprep.mubr.f32.mxu0 0.0
      %342 = vmatmul.mubr.f32.gmra.mrb[0].mxu0 %v202
      %v343 = vpop.f32.mrb[0].mxu0
      %v344 = vadd.f32 0.0, %v343
      %v345 = vpop.f32.mrb[0].mxu0
      %346 = vmatprep.mubr.f32.mxu0 0.0
      %347 = vmatmul.mubr.f32.gmra.mrb[0].mxu0 %v205
      %v348 = vpop.f32.mrb[0].mxu0
      %v349 = vadd.f32 0.0, %v348
      %v350 = vpop.f32.mrb[0].mxu0
      %351 = vmatprep.mubr.f32.mxu0 0.0
      %352 = vmatmul.mubr.f32.gmra.mrb[0].mxu0 %v208
      %v353 = vpop.f32.mrb[0].mxu0
      %v354 = vadd.f32 0.0, %v353
      %v355 = vpop.f32.mrb[0].mxu0
      %356 = vmatprep.mubr.f32.mxu0 0.0
      %357 = vmatmul.mubr.f32.gmra.mrb[0].mxu0 %v211
      %v358 = vpop.f32.mrb[0].mxu0
      %v359 = vadd.f32 0.0, %v358
      %v360 = vpop.f32.mrb[0].mxu0
      %361 = vdwg.mxu0
      %v362 = vround.ne.pseudo %v284
      %v363 = vround.ne.pseudo %v289
      %v364 = vround.ne.pseudo %v294
      %v365 = vround.ne.pseudo %v299
      %v366 = vround.ne.pseudo %v304
      %v367 = vround.ne.pseudo %v309
      %v368 = vround.ne.pseudo %v314
      %v369 = vround.ne.pseudo %v319
      %v370 = vround.ne.pseudo %v324
      %v371 = vround.ne.pseudo %v329
      %v372 = vround.ne.pseudo %v334
      %v373 = vround.ne.pseudo %v339
      %v374 = vround.ne.pseudo %v344
      %v375 = vround.ne.pseudo %v349
      %v376 = vround.ne.pseudo %v354
      %v377 = vround.ne.pseudo %v359
      %v378 = vsub.f32 %v284, %v362
      %v379 = vsub.f32 %v289, %v363
      %v380 = vsub.f32 %v294, %v364
      %v381 = vsub.f32 %v299, %v365
      %v382 = vsub.f32 %v304, %v366
      %v383 = vsub.f32 %v309, %v367
      %v384 = vsub.f32 %v314, %v368
      %v385 = vsub.f32 %v319, %v369
      %v386 = vsub.f32 %v324, %v370
      %v387 = vsub.f32 %v329, %v371
      %v388 = vsub.f32 %v334, %v372
      %v389 = vsub.f32 %v339, %v373
      %v390 = vsub.f32 %v344, %v374
      %v391 = vsub.f32 %v349, %v375
      %v392 = vsub.f32 %v354, %v376
      %v393 = vsub.f32 %v359, %v377
      %v394 = vmul.f32 %v378, 6.2831855
      %v395 = vmul.f32 %v379, 6.2831855
      %v396 = vmul.f32 %v380, 6.2831855
      %v397 = vmul.f32 %v381, 6.2831855
      %v398 = vmul.f32 %v382, 6.2831855
      %v399 = vmul.f32 %v383, 6.2831855
      %v400 = vmul.f32 %v384, 6.2831855
      %v401 = vmul.f32 %v385, 6.2831855
      %v402 = vmul.f32 %v386, 6.2831855
      %v403 = vmul.f32 %v387, 6.2831855
      %v404 = vmul.f32 %v388, 6.2831855
      %v405 = vmul.f32 %v389, 6.2831855
      %v406 = vmul.f32 %v390, 6.2831855
      %v407 = vmul.f32 %v391, 6.2831855
      %v408 = vmul.f32 %v392, 6.2831855
      %v409 = vmul.f32 %v393, 6.2831855
      %v410 = vand.u32 2147483647, %v394
      %vm411 = vcmp.le.f32.partialorder %v410, 0.7853982
      %vm412 = vcmp.lt.s32.totalorder %v394, 0
      %v413 = vand.u32 %v394, 2139095040
      %v414 = vshrl.u32 %v413, 23
      %v415 = vsub.s32 %v414, 127
      %v416 = vand.u32 2147483647, %v394
      %v417 = vand.u32 %v416, 8388607
      %v418 = vor.u32 %v417, 8388608
      %v419 = vsub.s32 0, %v418
      %v420 = vadd.s32 %v415, 1
      %vm421 = vcmp.gt.s32.totalorder %v420, 0
      %v422 = vsel %vm421, %v420, 0
      %v423 = vshrl.u32 %v422, 5
      %v424 = vand.u32 %v422, 31
      %v425 = vsub.s32 32, %v424
      %v426 = vshrl.u32 683565275, %v425
      %v427 = vshll.u32 683565275, %v424
      %v428 = vshrl.u32 2475754826, %v425
      %v429 = vor.u32 %v427, %v428
      %v430 = vshll.u32 2475754826, %v424
      %v431 = vshrl.u32 2131351028, %v425
      %v432 = vor.u32 %v430, %v431
      %v433 = vshll.u32 2131351028, %v424
      %v434 = vshrl.u32 2102212464, %v425
      %v435 = vor.u32 %v433, %v434
      %v436 = vshll.u32 2102212464, %v424
      %v437 = vshrl.u32 920167782, %v425
      %v438 = vor.u32 %v436, %v437
      %v439 = vshll.u32 920167782, %v424
      %v440 = vshrl.u32 1326507024, %v425
      %v441 = vor.u32 %v439, %v440
      %vm442 = vcmp.lt.s32.totalorder %v423, 1
      %vm443 = vcmp.lt.s32.totalorder %v423, 2
      %vm444 = vcmp.lt.s32.totalorder %v423, 3
      %vm445 = vcmp.lt.s32.totalorder %v423, 4
      %v446 = vsel %vm442, %v426, %v429
      %v447 = vsel %vm445, %v435, 2102212464
      %v448 = vsel %vm444, %v432, %v447
      %v449 = vsel %vm443, %v446, %v448
      %v450 = vsel %vm442, %v429, %v432
      %v451 = vsel %vm445, %v438, 920167782
      %v452 = vsel %vm444, %v435, %v451
      %v453 = vsel %vm443, %v450, %v452
      %v454 = vsel %vm442, %v432, %v435
      %v455 = vsel %vm445, %v441, 1326507024
      %v456 = vsel %vm444, %v438, %v455
      %v457 = vsel %vm443, %v454, %v456
      %v458 = vshll.u32 %v418, 8
      %v459 = vmul.u32.u64.compose %v458, %v457
      %v460 = vextract.low.u32 %v459
      %v461 = vextract.high.u32 %v459
      %v462 = vmul.u32.u64.compose %v458, %v453
      %v463 = vextract.low.u32 %v462
      %v464 = vextract.high.u32 %v462
      %v465 = vmul.u32 %v458, %v449
      %v466 = vadd.s32 %v461, %v463
      %vm467 = vc.u32 %v461, %v463
      %v468 = vadd.s32 %v464, 1
      %v469 = vsel %vm467, %v468, %v464
      %v470 = vadd.s32 %v465, %v469
      %v471 = vadd.s32 %v470, 536870912
      %v472 = vshrl.u32 %v471, 30
      %v473 = vshll.u32 %v472, 30
      %v474 = vsub.s32 %v470, %v473
      %vm475 = vcmp.lt.s32.totalorder %v474, 0
      %v476 = vsub.s32 0, %v474
      %v477 = vsel %vm475, %v476, %v474
      %v478 = vclz %v477
      %v479 = vsub.s32 %v478, 2
      %vm480 = vcmp.gt.s32.totalorder 0, %v479
      %v481 = vsel %vm480, 0, %v479
      %v482 = vsub.s32 32, %v481
      %v483 = vshll.u32 %v474, %v481
      %v484 = vshrl.u32 %v466, %v482
      %v485 = vor.u32 %v483, %v484
      %v486 = vsub.s32 4294967266, %v481
      %v487 = vadd.s32 %v486, 127
      %v488 = vshll.u32 %v487, 23
      %v489 = vor.u32 4788187, %v488
      %v490 = vand.u32 2147483647, %v489
      %v492 = vcvt.s32.f32 %v485
      %v493 = vmul.f32 %v492, %v490
      %v494 = vxor.u32 %v493, 2147483648
      %v495 = vsel %vm412, %v494, %v493
      %v496 = vsub.s32 4, %v472
      %v497 = vsel %vm412, %v496, %v472
      %v498 = vsel %vm411, %v394, %v495
      %v499 = vsel %vm411, 0, %v497
      %v500 = vcosq.f32.pop %v498
      %v501 = vsinq.f32.pop %v498
      %vm502 = vweird.f32 %v394
      %v503 = vadd.s32 %v499, 3
      %v504 = vand.u32 %v503, 3
      %vm505 = vcmp.lt.s32.totalorder %v504, 2
      %vm506 = vcmp.eq.s32.totalorder %v504, 0
      %v507 = vxor.u32 %v501, 2147483648
      %v508 = vsel %vm506, %v500, %v507
      %vm509 = vcmp.eq.s32.totalorder %v504, 2
      %v510 = vxor.u32 %v500, 2147483648
      %v511 = vsel %vm509, %v510, %v501
      %v512 = vsel %vm505, %v508, %v511
      %v513 = vsel %vm502, nan, %v512
      %v514 = vand.u32 2147483647, %v395
      %vm515 = vcmp.le.f32.partialorder %v514, 0.7853982
      %vm516 = vcmp.lt.s32.totalorder %v395, 0
      %v517 = vand.u32 %v395, 2139095040
      %v518 = vshrl.u32 %v517, 23
      %v519 = vsub.s32 %v518, 127
      %v520 = vand.u32 2147483647, %v395
      %v521 = vand.u32 %v520, 8388607
      %v522 = vor.u32 %v521, 8388608
      %v523 = vsub.s32 0, %v522
      %v524 = vadd.s32 %v519, 1
      %vm525 = vcmp.gt.s32.totalorder %v524, 0
      %v526 = vsel %vm525, %v524, 0
      %v527 = vshrl.u32 %v526, 5
      %v528 = vand.u32 %v526, 31
      %v529 = vsub.s32 32, %v528
      %v530 = vshrl.u32 683565275, %v529
      %v531 = vshll.u32 683565275, %v528
      %v532 = vshrl.u32 2475754826, %v529
      %v533 = vor.u32 %v531, %v532
      %v534 = vshll.u32 2475754826, %v528
      %v535 = vshrl.u32 2131351028, %v529
      %v536 = vor.u32 %v534, %v535
      %v537 = vshll.u32 2131351028, %v528
      %v538 = vshrl.u32 2102212464, %v529
      %v539 = vor.u32 %v537, %v538
      %v540 = vshll.u32 2102212464, %v528
      %v541 = vshrl.u32 920167782, %v529
      %v542 = vor.u32 %v540, %v541
      %v543 = vshll.u32 920167782, %v528
      %v544 = vshrl.u32 1326507024, %v529
      %v545 = vor.u32 %v543, %v544
      %vm546 = vcmp.lt.s32.totalorder %v527, 1
      %vm547 = vcmp.lt.s32.totalorder %v527, 2
      %vm548 = vcmp.lt.s32.totalorder %v527, 3
      %vm549 = vcmp.lt.s32.totalorder %v527, 4
      %v550 = vsel %vm546, %v530, %v533
      %v551 = vsel %vm549, %v539, 2102212464
      %v552 = vsel %vm548, %v536, %v551
      %v553 = vsel %vm547, %v550, %v552
      %v554 = vsel %vm546, %v533, %v536
      %v555 = vsel %vm549, %v542, 920167782
      %v556 = vsel %vm548, %v539, %v555
      %v557 = vsel %vm547, %v554, %v556
      %v558 = vsel %vm546, %v536, %v539
      %v559 = vsel %vm549, %v545, 1326507024
      %v560 = vsel %vm548, %v542, %v559
      %v561 = vsel %vm547, %v558, %v560
      %v562 = vshll.u32 %v522, 8
      %v563 = vmul.u32.u64.compose %v562, %v561
      %v564 = vextract.low.u32 %v563
      %v565 = vextract.high.u32 %v563
      %v566 = vmul.u32.u64.compose %v562, %v557
      %v567 = vextract.low.u32 %v566
      %v568 = vextract.high.u32 %v566
      %v569 = vmul.u32 %v562, %v553
      %v570 = vadd.s32 %v565, %v567
      %vm571 = vc.u32 %v565, %v567
      %v572 = vadd.s32 %v568, 1
      %v573 = vsel %vm571, %v572, %v568
      %v574 = vadd.s32 %v569, %v573
      %v575 = vadd.s32 %v574, 536870912
      %v576 = vshrl.u32 %v575, 30
      %v577 = vshll.u32 %v576, 30
      %v578 = vsub.s32 %v574, %v577
      %vm579 = vcmp.lt.s32.totalorder %v578, 0
      %v580 = vsub.s32 0, %v578
      %v581 = vsel %vm579, %v580, %v578
      %v582 = vclz %v581
      %v583 = vsub.s32 %v582, 2
      %vm584 = vcmp.gt.s32.totalorder 0, %v583
      %v585 = vsel %vm584, 0, %v583
      %v586 = vsub.s32 32, %v585
      %v587 = vshll.u32 %v578, %v585
      %v588 = vshrl.u32 %v570, %v586
      %v589 = vor.u32 %v587, %v588
      %v590 = vsub.s32 4294967266, %v585
      %v591 = vadd.s32 %v590, 127
      %v592 = vshll.u32 %v591, 23
      %v593 = vor.u32 4788187, %v592
      %v594 = vand.u32 2147483647, %v593
      %v596 = vcvt.s32.f32 %v589
      %v597 = vmul.f32 %v596, %v594
      %v598 = vxor.u32 %v597, 2147483648
      %v599 = vsel %vm516, %v598, %v597
      %v600 = vsub.s32 4, %v576
      %v601 = vsel %vm516, %v600, %v576
      %v602 = vsel %vm515, %v395, %v599
      %v603 = vsel %vm515, 0, %v601
      %v604 = vcosq.f32.pop %v602
      %v605 = vsinq.f32.pop %v602
      %vm606 = vweird.f32 %v395
      %v607 = vadd.s32 %v603, 3
      %v608 = vand.u32 %v607, 3
      %vm609 = vcmp.lt.s32.totalorder %v608, 2
      %vm610 = vcmp.eq.s32.totalorder %v608, 0
      %v611 = vxor.u32 %v605, 2147483648
      %v612 = vsel %vm610, %v604, %v611
      %vm613 = vcmp.eq.s32.totalorder %v608, 2
      %v614 = vxor.u32 %v604, 2147483648
      %v615 = vsel %vm613, %v614, %v605
      %v616 = vsel %vm609, %v612, %v615
      %v617 = vsel %vm606, nan, %v616
      %v618 = vand.u32 2147483647, %v396
      %vm619 = vcmp.le.f32.partialorder %v618, 0.7853982
      %vm620 = vcmp.lt.s32.totalorder %v396, 0
      %v621 = vand.u32 %v396, 2139095040
      %v622 = vshrl.u32 %v621, 23
      %v623 = vsub.s32 %v622, 127
      %v624 = vand.u32 2147483647, %v396
      %v625 = vand.u32 %v624, 8388607
      %v626 = vor.u32 %v625, 8388608
      %v627 = vsub.s32 0, %v626
      %v628 = vadd.s32 %v623, 1
      %vm629 = vcmp.gt.s32.totalorder %v628, 0
      %v630 = vsel %vm629, %v628, 0
      %v631 = vshrl.u32 %v630, 5
      %v632 = vand.u32 %v630, 31
      %v633 = vsub.s32 32, %v632
      %v634 = vshrl.u32 683565275, %v633
      %v635 = vshll.u32 683565275, %v632
      %v636 = vshrl.u32 2475754826, %v633
      %v637 = vor.u32 %v635, %v636
      %v638 = vshll.u32 2475754826, %v632
      %v639 = vshrl.u32 2131351028, %v633
      %v640 = vor.u32 %v638, %v639
      %v641 = vshll.u32 2131351028, %v632
      %v642 = vshrl.u32 2102212464, %v633
      %v643 = vor.u32 %v641, %v642
      %v644 = vshll.u32 2102212464, %v632
      %v645 = vshrl.u32 920167782, %v633
      %v646 = vor.u32 %v644, %v645
      %v647 = vshll.u32 920167782, %v632
      %v648 = vshrl.u32 1326507024, %v633
      %v649 = vor.u32 %v647, %v648
      %vm650 = vcmp.lt.s32.totalorder %v631, 1
      %vm651 = vcmp.lt.s32.totalorder %v631, 2
      %vm652 = vcmp.lt.s32.totalorder %v631, 3
      %vm653 = vcmp.lt.s32.totalorder %v631, 4
      %v654 = vsel %vm650, %v634, %v637
      %v655 = vsel %vm653, %v643, 2102212464
      %v656 = vsel %vm652, %v640, %v655
      %v657 = vsel %vm651, %v654, %v656
      %v658 = vsel %vm650, %v637, %v640
      %v659 = vsel %vm653, %v646, 920167782
      %v660 = vsel %vm652, %v643, %v659
      %v661 = vsel %vm651, %v658, %v660
      %v662 = vsel %vm650, %v640, %v643
      %v663 = vsel %vm653, %v649, 1326507024
      %v664 = vsel %vm652, %v646, %v663
      %v665 = vsel %vm651, %v662, %v664
      %v666 = vshll.u32 %v626, 8
      %v667 = vmul.u32.u64.compose %v666, %v665
      %v668 = vextract.low.u32 %v667
      %v669 = vextract.high.u32 %v667
      %v670 = vmul.u32.u64.compose %v666, %v661
      %v671 = vextract.low.u32 %v670
      %v672 = vextract.high.u32 %v670
      %v673 = vmul.u32 %v666, %v657
      %v674 = vadd.s32 %v669, %v671
      %vm675 = vc.u32 %v669, %v671
      %v676 = vadd.s32 %v672, 1
      %v677 = vsel %vm675, %v676, %v672
      %v678 = vadd.s32 %v673, %v677
      %v679 = vadd.s32 %v678, 536870912
      %v680 = vshrl.u32 %v679, 30
      %v681 = vshll.u32 %v680, 30
      %v682 = vsub.s32 %v678, %v681
      %vm683 = vcmp.lt.s32.totalorder %v682, 0
      %v684 = vsub.s32 0, %v682
      %v685 = vsel %vm683, %v684, %v682
      %v686 = vclz %v685
      %v687 = vsub.s32 %v686, 2
      %vm688 = vcmp.gt.s32.totalorder 0, %v687
      %v689 = vsel %vm688, 0, %v687
      %v690 = vsub.s32 32, %v689
      %v691 = vshll.u32 %v682, %v689
      %v692 = vshrl.u32 %v674, %v690
      %v693 = vor.u32 %v691, %v692
      %v694 = vsub.s32 4294967266, %v689
      %v695 = vadd.s32 %v694, 127
      %v696 = vshll.u32 %v695, 23
      %v697 = vor.u32 4788187, %v696
      %v698 = vand.u32 2147483647, %v697
      %v700 = vcvt.s32.f32 %v693
      %v701 = vmul.f32 %v700, %v698
      %v702 = vxor.u32 %v701, 2147483648
      %v703 = vsel %vm620, %v702, %v701
      %v704 = vsub.s32 4, %v680
      %v705 = vsel %vm620, %v704, %v680
      %v706 = vsel %vm619, %v396, %v703
      %v707 = vsel %vm619, 0, %v705
      %v708 = vcosq.f32.pop %v706
      %v709 = vsinq.f32.pop %v706
      %vm710 = vweird.f32 %v396
      %v711 = vadd.s32 %v707, 3
      %v712 = vand.u32 %v711, 3
      %vm713 = vcmp.lt.s32.totalorder %v712, 2
      %vm714 = vcmp.eq.s32.totalorder %v712, 0
      %v715 = vxor.u32 %v709, 2147483648
      %v716 = vsel %vm714, %v708, %v715
      %vm717 = vcmp.eq.s32.totalorder %v712, 2
      %v718 = vxor.u32 %v708, 2147483648
      %v719 = vsel %vm717, %v718, %v709
      %v720 = vsel %vm713, %v716, %v719
      %v721 = vsel %vm710, nan, %v720
      %v722 = vand.u32 2147483647, %v397
      %vm723 = vcmp.le.f32.partialorder %v722, 0.7853982
      %vm724 = vcmp.lt.s32.totalorder %v397, 0
      %v725 = vand.u32 %v397, 2139095040
      %v726 = vshrl.u32 %v725, 23
      %v727 = vsub.s32 %v726, 127
      %v728 = vand.u32 2147483647, %v397
      %v729 = vand.u32 %v728, 8388607
      %v730 = vor.u32 %v729, 8388608
      %v731 = vsub.s32 0, %v730
      %v732 = vadd.s32 %v727, 1
      %vm733 = vcmp.gt.s32.totalorder %v732, 0
      %v734 = vsel %vm733, %v732, 0
      %v735 = vshrl.u32 %v734, 5
      %v736 = vand.u32 %v734, 31
      %v737 = vsub.s32 32, %v736
      %v738 = vshrl.u32 683565275, %v737
      %v739 = vshll.u32 683565275, %v736
      %v740 = vshrl.u32 2475754826, %v737
      %v741 = vor.u32 %v739, %v740
      %v742 = vshll.u32 2475754826, %v736
      %v743 = vshrl.u32 2131351028, %v737
      %v744 = vor.u32 %v742, %v743
      %v745 = vshll.u32 2131351028, %v736
      %v746 = vshrl.u32 2102212464, %v737
      %v747 = vor.u32 %v745, %v746
      %v748 = vshll.u32 2102212464, %v736
      %v749 = vshrl.u32 920167782, %v737
      %v750 = vor.u32 %v748, %v749
      %v751 = vshll.u32 920167782, %v736
      %v752 = vshrl.u32 1326507024, %v737
      %v753 = vor.u32 %v751, %v752
      %vm754 = vcmp.lt.s32.totalorder %v735, 1
      %vm755 = vcmp.lt.s32.totalorder %v735, 2
      %vm756 = vcmp.lt.s32.totalorder %v735, 3
      %vm757 = vcmp.lt.s32.totalorder %v735, 4
      %v758 = vsel %vm754, %v738, %v741
      %v759 = vsel %vm757, %v747, 2102212464
      %v760 = vsel %vm756, %v744, %v759
      %v761 = vsel %vm755, %v758, %v760
      %v762 = vsel %vm754, %v741, %v744
      %v763 = vsel %vm757, %v750, 920167782
      %v764 = vsel %vm756, %v747, %v763
      %v765 = vsel %vm755, %v762, %v764
      %v766 = vsel %vm754, %v744, %v747
      %v767 = vsel %vm757, %v753, 1326507024
      %v768 = vsel %vm756, %v750, %v767
      %v769 = vsel %vm755, %v766, %v768
      %v770 = vshll.u32 %v730, 8
      %v771 = vmul.u32.u64.compose %v770, %v769
      %v772 = vextract.low.u32 %v771
      %v773 = vextract.high.u32 %v771
      %v774 = vmul.u32.u64.compose %v770, %v765
      %v775 = vextract.low.u32 %v774
      %v776 = vextract.high.u32 %v774
      %v777 = vmul.u32 %v770, %v761
      %v778 = vadd.s32 %v773, %v775
      %vm779 = vc.u32 %v773, %v775
      %v780 = vadd.s32 %v776, 1
      %v781 = vsel %vm779, %v780, %v776
      %v782 = vadd.s32 %v777, %v781
      %v783 = vadd.s32 %v782, 536870912
      %v784 = vshrl.u32 %v783, 30
      %v785 = vshll.u32 %v784, 30
      %v786 = vsub.s32 %v782, %v785
      %vm787 = vcmp.lt.s32.totalorder %v786, 0
      %v788 = vsub.s32 0, %v786
      %v789 = vsel %vm787, %v788, %v786
      %v790 = vclz %v789
      %v791 = vsub.s32 %v790, 2
      %vm792 = vcmp.gt.s32.totalorder 0, %v791
      %v793 = vsel %vm792, 0, %v791
      %v794 = vsub.s32 32, %v793
      %v795 = vshll.u32 %v786, %v793
      %v796 = vshrl.u32 %v778, %v794
      %v797 = vor.u32 %v795, %v796
      %v798 = vsub.s32 4294967266, %v793
      %v799 = vadd.s32 %v798, 127
      %v800 = vshll.u32 %v799, 23
      %v801 = vor.u32 4788187, %v800
      %v802 = vand.u32 2147483647, %v801
      %v804 = vcvt.s32.f32 %v797
      %v805 = vmul.f32 %v804, %v802
      %v806 = vxor.u32 %v805, 2147483648
      %v807 = vsel %vm724, %v806, %v805
      %v808 = vsub.s32 4, %v784
      %v809 = vsel %vm724, %v808, %v784
      %v810 = vsel %vm723, %v397, %v807
      %v811 = vsel %vm723, 0, %v809
      %v812 = vcosq.f32.pop %v810
      %v813 = vsinq.f32.pop %v810
      %vm814 = vweird.f32 %v397
      %v815 = vadd.s32 %v811, 3
      %v816 = vand.u32 %v815, 3
      %vm817 = vcmp.lt.s32.totalorder %v816, 2
      %vm818 = vcmp.eq.s32.totalorder %v816, 0
      %v819 = vxor.u32 %v813, 2147483648
      %v820 = vsel %vm818, %v812, %v819
      %vm821 = vcmp.eq.s32.totalorder %v816, 2
      %v822 = vxor.u32 %v812, 2147483648
      %v823 = vsel %vm821, %v822, %v813
      %v824 = vsel %vm817, %v820, %v823
      %v825 = vsel %vm814, nan, %v824
      %v826 = vand.u32 2147483647, %v398
      %vm827 = vcmp.le.f32.partialorder %v826, 0.7853982
      %vm828 = vcmp.lt.s32.totalorder %v398, 0
      %v829 = vand.u32 %v398, 2139095040
      %v830 = vshrl.u32 %v829, 23
      %v831 = vsub.s32 %v830, 127
      %v832 = vand.u32 2147483647, %v398
      %v833 = vand.u32 %v832, 8388607
      %v834 = vor.u32 %v833, 8388608
      %v835 = vsub.s32 0, %v834
      %v836 = vadd.s32 %v831, 1
      %vm837 = vcmp.gt.s32.totalorder %v836, 0
      %v838 = vsel %vm837, %v836, 0
      %v839 = vshrl.u32 %v838, 5
      %v840 = vand.u32 %v838, 31
      %v841 = vsub.s32 32, %v840
      %v842 = vshrl.u32 683565275, %v841
      %v843 = vshll.u32 683565275, %v840
      %v844 = vshrl.u32 2475754826, %v841
      %v845 = vor.u32 %v843, %v844
      %v846 = vshll.u32 2475754826, %v840
      %v847 = vshrl.u32 2131351028, %v841
      %v848 = vor.u32 %v846, %v847
      %v849 = vshll.u32 2131351028, %v840
      %v850 = vshrl.u32 2102212464, %v841
      %v851 = vor.u32 %v849, %v850
      %v852 = vshll.u32 2102212464, %v840
      %v853 = vshrl.u32 920167782, %v841
      %v854 = vor.u32 %v852, %v853
      %v855 = vshll.u32 920167782, %v840
      %v856 = vshrl.u32 1326507024, %v841
      %v857 = vor.u32 %v855, %v856
      %vm858 = vcmp.lt.s32.totalorder %v839, 1
      %vm859 = vcmp.lt.s32.totalorder %v839, 2
      %vm860 = vcmp.lt.s32.totalorder %v839, 3
      %vm861 = vcmp.lt.s32.totalorder %v839, 4
      %v862 = vsel %vm858, %v842, %v845
      %v863 = vsel %vm861, %v851, 2102212464
      %v864 = vsel %vm860, %v848, %v863
      %v865 = vsel %vm859, %v862, %v864
      %v866 = vsel %vm858, %v845, %v848
      %v867 = vsel %vm861, %v854, 920167782
      %v868 = vsel %vm860, %v851, %v867
      %v869 = vsel %vm859, %v866, %v868
      %v870 = vsel %vm858, %v848, %v851
      %v871 = vsel %vm861, %v857, 1326507024
      %v872 = vsel %vm860, %v854, %v871
      %v873 = vsel %vm859, %v870, %v872
      %v874 = vshll.u32 %v834, 8
      %v875 = vmul.u32.u64.compose %v874, %v873
      %v876 = vextract.low.u32 %v875
      %v877 = vextract.high.u32 %v875
      %v878 = vmul.u32.u64.compose %v874, %v869
      %v879 = vextract.low.u32 %v878
      %v880 = vextract.high.u32 %v878
      %v881 = vmul.u32 %v874, %v865
      %v882 = vadd.s32 %v877, %v879
      %vm883 = vc.u32 %v877, %v879
      %v884 = vadd.s32 %v880, 1
      %v885 = vsel %vm883, %v884, %v880
      %v886 = vadd.s32 %v881, %v885
      %v887 = vadd.s32 %v886, 536870912
      %v888 = vshrl.u32 %v887, 30
      %v889 = vshll.u32 %v888, 30
      %v890 = vsub.s32 %v886, %v889
      %vm891 = vcmp.lt.s32.totalorder %v890, 0
      %v892 = vsub.s32 0, %v890
      %v893 = vsel %vm891, %v892, %v890
      %v894 = vclz %v893
      %v895 = vsub.s32 %v894, 2
      %vm896 = vcmp.gt.s32.totalorder 0, %v895
      %v897 = vsel %vm896, 0, %v895
      %v898 = vsub.s32 32, %v897
      %v899 = vshll.u32 %v890, %v897
      %v900 = vshrl.u32 %v882, %v898
      %v901 = vor.u32 %v899, %v900
      %v902 = vsub.s32 4294967266, %v897
      %v903 = vadd.s32 %v902, 127
      %v904 = vshll.u32 %v903, 23
      %v905 = vor.u32 4788187, %v904
      %v906 = vand.u32 2147483647, %v905
      %v908 = vcvt.s32.f32 %v901
      %v909 = vmul.f32 %v908, %v906
      %v910 = vxor.u32 %v909, 2147483648
      %v911 = vsel %vm828, %v910, %v909
      %v912 = vsub.s32 4, %v888
      %v913 = vsel %vm828, %v912, %v888
      %v914 = vsel %vm827, %v398, %v911
      %v915 = vsel %vm827, 0, %v913
      %v916 = vcosq.f32.pop %v914
      %v917 = vsinq.f32.pop %v914
      %vm918 = vweird.f32 %v398
      %v919 = vadd.s32 %v915, 3
      %v920 = vand.u32 %v919, 3
      %vm921 = vcmp.lt.s32.totalorder %v920, 2
      %vm922 = vcmp.eq.s32.totalorder %v920, 0
      %v923 = vxor.u32 %v917, 2147483648
      %v924 = vsel %vm922, %v916, %v923
      %vm925 = vcmp.eq.s32.totalorder %v920, 2
      %v926 = vxor.u32 %v916, 2147483648
      %v927 = vsel %vm925, %v926, %v917
      %v928 = vsel %vm921, %v924, %v927
      %v929 = vsel %vm918, nan, %v928
      %v930 = vand.u32 2147483647, %v399
      %vm931 = vcmp.le.f32.partialorder %v930, 0.7853982
      %vm932 = vcmp.lt.s32.totalorder %v399, 0
      %v933 = vand.u32 %v399, 2139095040
      %v934 = vshrl.u32 %v933, 23
      %v935 = vsub.s32 %v934, 127
      %v936 = vand.u32 2147483647, %v399
      %v937 = vand.u32 %v936, 8388607
      %v938 = vor.u32 %v937, 8388608
      %v939 = vsub.s32 0, %v938
      %v940 = vadd.s32 %v935, 1
      %vm941 = vcmp.gt.s32.totalorder %v940, 0
      %v942 = vsel %vm941, %v940, 0
      %v943 = vshrl.u32 %v942, 5
      %v944 = vand.u32 %v942, 31
      %v945 = vsub.s32 32, %v944
      %v946 = vshrl.u32 683565275, %v945
      %v947 = vshll.u32 683565275, %v944
      %v948 = vshrl.u32 2475754826, %v945
      %v949 = vor.u32 %v947, %v948
      %v950 = vshll.u32 2475754826, %v944
      %v951 = vshrl.u32 2131351028, %v945
      %v952 = vor.u32 %v950, %v951
      %v953 = vshll.u32 2131351028, %v944
      %v954 = vshrl.u32 2102212464, %v945
      %v955 = vor.u32 %v953, %v954
      %v956 = vshll.u32 2102212464, %v944
      %v957 = vshrl.u32 920167782, %v945
      %v958 = vor.u32 %v956, %v957
      %v959 = vshll.u32 920167782, %v944
      %v960 = vshrl.u32 1326507024, %v945
      %v961 = vor.u32 %v959, %v960
      %vm962 = vcmp.lt.s32.totalorder %v943, 1
      %vm963 = vcmp.lt.s32.totalorder %v943, 2
      %vm964 = vcmp.lt.s32.totalorder %v943, 3
      %vm965 = vcmp.lt.s32.totalorder %v943, 4
      %v966 = vsel %vm962, %v946, %v949
      %v967 = vsel %vm965, %v955, 2102212464
      %v968 = vsel %vm964, %v952, %v967
      %v969 = vsel %vm963, %v966, %v968
      %v970 = vsel %vm962, %v949, %v952
      %v971 = vsel %vm965, %v958, 920167782
      %v972 = vsel %vm964, %v955, %v971
      %v973 = vsel %vm963, %v970, %v972
      %v974 = vsel %vm962, %v952, %v955
      %v975 = vsel %vm965, %v961, 1326507024
      %v976 = vsel %vm964, %v958, %v975
      %v977 = vsel %vm963, %v974, %v976
      %v978 = vshll.u32 %v938, 8
      %v979 = vmul.u32.u64.compose %v978, %v977
      %v980 = vextract.low.u32 %v979
      %v981 = vextract.high.u32 %v979
      %v982 = vmul.u32.u64.compose %v978, %v973
      %v983 = vextract.low.u32 %v982
      %v984 = vextract.high.u32 %v982
      %v985 = vmul.u32 %v978, %v969
      %v986 = vadd.s32 %v981, %v983
      %vm987 = vc.u32 %v981, %v983
      %v988 = vadd.s32 %v984, 1
      %v989 = vsel %vm987, %v988, %v984
      %v990 = vadd.s32 %v985, %v989
      %v991 = vadd.s32 %v990, 536870912
      %v992 = vshrl.u32 %v991, 30
      %v993 = vshll.u32 %v992, 30
      %v994 = vsub.s32 %v990, %v993
      %vm995 = vcmp.lt.s32.totalorder %v994, 0
      %v996 = vsub.s32 0, %v994
      %v997 = vsel %vm995, %v996, %v994
      %v998 = vclz %v997
      %v999 = vsub.s32 %v998, 2
      %vm1000 = vcmp.gt.s32.totalorder 0, %v999
      %v1001 = vsel %vm1000, 0, %v999
      %v1002 = vsub.s32 32, %v1001
      %v1003 = vshll.u32 %v994, %v1001
      %v1004 = vshrl.u32 %v986, %v1002
      %v1005 = vor.u32 %v1003, %v1004
      %v1006 = vsub.s32 4294967266, %v1001
      %v1007 = vadd.s32 %v1006, 127
      %v1008 = vshll.u32 %v1007, 23
      %v1009 = vor.u32 4788187, %v1008
      %v1010 = vand.u32 2147483647, %v1009
      %v1012 = vcvt.s32.f32 %v1005
      %v1013 = vmul.f32 %v1012, %v1010
      %v1014 = vxor.u32 %v1013, 2147483648
      %v1015 = vsel %vm932, %v1014, %v1013
      %v1016 = vsub.s32 4, %v992
      %v1017 = vsel %vm932, %v1016, %v992
      %v1018 = vsel %vm931, %v399, %v1015
      %v1019 = vsel %vm931, 0, %v1017
      %v1020 = vcosq.f32.pop %v1018
      %v1021 = vsinq.f32.pop %v1018
      %vm1022 = vweird.f32 %v399
      %v1023 = vadd.s32 %v1019, 3
      %v1024 = vand.u32 %v1023, 3
      %vm1025 = vcmp.lt.s32.totalorder %v1024, 2
      %vm1026 = vcmp.eq.s32.totalorder %v1024, 0
      %v1027 = vxor.u32 %v1021, 2147483648
      %v1028 = vsel %vm1026, %v1020, %v1027
      %vm1029 = vcmp.eq.s32.totalorder %v1024, 2
      %v1030 = vxor.u32 %v1020, 2147483648
      %v1031 = vsel %vm1029, %v1030, %v1021
      %v1032 = vsel %vm1025, %v1028, %v1031
      %v1033 = vsel %vm1022, nan, %v1032
      %v1034 = vand.u32 2147483647, %v400
      %vm1035 = vcmp.le.f32.partialorder %v1034, 0.7853982
      %vm1036 = vcmp.lt.s32.totalorder %v400, 0
      %v1037 = vand.u32 %v400, 2139095040
      %v1038 = vshrl.u32 %v1037, 23
      %v1039 = vsub.s32 %v1038, 127
      %v1040 = vand.u32 2147483647, %v400
      %v1041 = vand.u32 %v1040, 8388607
      %v1042 = vor.u32 %v1041, 8388608
      %v1043 = vsub.s32 0, %v1042
      %v1044 = vadd.s32 %v1039, 1
      %vm1045 = vcmp.gt.s32.totalorder %v1044, 0
      %v1046 = vsel %vm1045, %v1044, 0
      %v1047 = vshrl.u32 %v1046, 5
      %v1048 = vand.u32 %v1046, 31
      %v1049 = vsub.s32 32, %v1048
      %v1050 = vshrl.u32 683565275, %v1049
      %v1051 = vshll.u32 683565275, %v1048
      %v1052 = vshrl.u32 2475754826, %v1049
      %v1053 = vor.u32 %v1051, %v1052
      %v1054 = vshll.u32 2475754826, %v1048
      %v1055 = vshrl.u32 2131351028, %v1049
      %v1056 = vor.u32 %v1054, %v1055
      %v1057 = vshll.u32 2131351028, %v1048
      %v1058 = vshrl.u32 2102212464, %v1049
      %v1059 = vor.u32 %v1057, %v1058
      %v1060 = vshll.u32 2102212464, %v1048
      %v1061 = vshrl.u32 920167782, %v1049
      %v1062 = vor.u32 %v1060, %v1061
      %v1063 = vshll.u32 920167782, %v1048
      %v1064 = vshrl.u32 1326507024, %v1049
      %v1065 = vor.u32 %v1063, %v1064
      %vm1066 = vcmp.lt.s32.totalorder %v1047, 1
      %vm1067 = vcmp.lt.s32.totalorder %v1047, 2
      %vm1068 = vcmp.lt.s32.totalorder %v1047, 3
      %vm1069 = vcmp.lt.s32.totalorder %v1047, 4
      %v1070 = vsel %vm1066, %v1050, %v1053
      %v1071 = vsel %vm1069, %v1059, 2102212464
      %v1072 = vsel %vm1068, %v1056, %v1071
      %v1073 = vsel %vm1067, %v1070, %v1072
      %v1074 = vsel %vm1066, %v1053, %v1056
      %v1075 = vsel %vm1069, %v1062, 920167782
      %v1076 = vsel %vm1068, %v1059, %v1075
      %v1077 = vsel %vm1067, %v1074, %v1076
      %v1078 = vsel %vm1066, %v1056, %v1059
      %v1079 = vsel %vm1069, %v1065, 1326507024
      %v1080 = vsel %vm1068, %v1062, %v1079
      %v1081 = vsel %vm1067, %v1078, %v1080
      %v1082 = vshll.u32 %v1042, 8
      %v1083 = vmul.u32.u64.compose %v1082, %v1081
      %v1084 = vextract.low.u32 %v1083
      %v1085 = vextract.high.u32 %v1083
      %v1086 = vmul.u32.u64.compose %v1082, %v1077
      %v1087 = vextract.low.u32 %v1086
      %v1088 = vextract.high.u32 %v1086
      %v1089 = vmul.u32 %v1082, %v1073
      %v1090 = vadd.s32 %v1085, %v1087
      %vm1091 = vc.u32 %v1085, %v1087
      %v1092 = vadd.s32 %v1088, 1
      %v1093 = vsel %vm1091, %v1092, %v1088
      %v1094 = vadd.s32 %v1089, %v1093
      %v1095 = vadd.s32 %v1094, 536870912
      %v1096 = vshrl.u32 %v1095, 30
      %v1097 = vshll.u32 %v1096, 30
      %v1098 = vsub.s32 %v1094, %v1097
      %vm1099 = vcmp.lt.s32.totalorder %v1098, 0
      %v1100 = vsub.s32 0, %v1098
      %v1101 = vsel %vm1099, %v1100, %v1098
      %v1102 = vclz %v1101
      %v1103 = vsub.s32 %v1102, 2
      %vm1104 = vcmp.gt.s32.totalorder 0, %v1103
      %v1105 = vsel %vm1104, 0, %v1103
      %v1106 = vsub.s32 32, %v1105
      %v1107 = vshll.u32 %v1098, %v1105
      %v1108 = vshrl.u32 %v1090, %v1106
      %v1109 = vor.u32 %v1107, %v1108
      %v1110 = vsub.s32 4294967266, %v1105
      %v1111 = vadd.s32 %v1110, 127
      %v1112 = vshll.u32 %v1111, 23
      %v1113 = vor.u32 4788187, %v1112
      %v1114 = vand.u32 2147483647, %v1113
      %v1116 = vcvt.s32.f32 %v1109
      %v1117 = vmul.f32 %v1116, %v1114
      %v1118 = vxor.u32 %v1117, 2147483648
      %v1119 = vsel %vm1036, %v1118, %v1117
      %v1120 = vsub.s32 4, %v1096
      %v1121 = vsel %vm1036, %v1120, %v1096
      %v1122 = vsel %vm1035, %v400, %v1119
      %v1123 = vsel %vm1035, 0, %v1121
      %v1124 = vcosq.f32.pop %v1122
      %v1125 = vsinq.f32.pop %v1122
      %vm1126 = vweird.f32 %v400
      %v1127 = vadd.s32 %v1123, 3
      %v1128 = vand.u32 %v1127, 3
      %vm1129 = vcmp.lt.s32.totalorder %v1128, 2
      %vm1130 = vcmp.eq.s32.totalorder %v1128, 0
      %v1131 = vxor.u32 %v1125, 2147483648
      %v1132 = vsel %vm1130, %v1124, %v1131
      %vm1133 = vcmp.eq.s32.totalorder %v1128, 2
      %v1134 = vxor.u32 %v1124, 2147483648
      %v1135 = vsel %vm1133, %v1134, %v1125
      %v1136 = vsel %vm1129, %v1132, %v1135
      %v1137 = vsel %vm1126, nan, %v1136
      %v1138 = vand.u32 2147483647, %v401
      %vm1139 = vcmp.le.f32.partialorder %v1138, 0.7853982
      %vm1140 = vcmp.lt.s32.totalorder %v401, 0
      %v1141 = vand.u32 %v401, 2139095040
      %v1142 = vshrl.u32 %v1141, 23
      %v1143 = vsub.s32 %v1142, 127
      %v1144 = vand.u32 2147483647, %v401
      %v1145 = vand.u32 %v1144, 8388607
      %v1146 = vor.u32 %v1145, 8388608
      %v1147 = vsub.s32 0, %v1146
      %v1148 = vadd.s32 %v1143, 1
      %vm1149 = vcmp.gt.s32.totalorder %v1148, 0
      %v1150 = vsel %vm1149, %v1148, 0
      %v1151 = vshrl.u32 %v1150, 5
      %v1152 = vand.u32 %v1150, 31
      %v1153 = vsub.s32 32, %v1152
      %v1154 = vshrl.u32 683565275, %v1153
      %v1155 = vshll.u32 683565275, %v1152
      %v1156 = vshrl.u32 2475754826, %v1153
      %v1157 = vor.u32 %v1155, %v1156
      %v1158 = vshll.u32 2475754826, %v1152
      %v1159 = vshrl.u32 2131351028, %v1153
      %v1160 = vor.u32 %v1158, %v1159
      %v1161 = vshll.u32 2131351028, %v1152
      %v1162 = vshrl.u32 2102212464, %v1153
      %v1163 = vor.u32 %v1161, %v1162
      %v1164 = vshll.u32 2102212464, %v1152
      %v1165 = vshrl.u32 920167782, %v1153
      %v1166 = vor.u32 %v1164, %v1165
      %v1167 = vshll.u32 920167782, %v1152
      %v1168 = vshrl.u32 1326507024, %v1153
      %v1169 = vor.u32 %v1167, %v1168
      %vm1170 = vcmp.lt.s32.totalorder %v1151, 1
      %vm1171 = vcmp.lt.s32.totalorder %v1151, 2
      %vm1172 = vcmp.lt.s32.totalorder %v1151, 3
      %vm1173 = vcmp.lt.s32.totalorder %v1151, 4
      %v1174 = vsel %vm1170, %v1154, %v1157
      %v1175 = vsel %vm1173, %v1163, 2102212464
      %v1176 = vsel %vm1172, %v1160, %v1175
      %v1177 = vsel %vm1171, %v1174, %v1176
      %v1178 = vsel %vm1170, %v1157, %v1160
      %v1179 = vsel %vm1173, %v1166, 920167782
      %v1180 = vsel %vm1172, %v1163, %v1179
      %v1181 = vsel %vm1171, %v1178, %v1180
      %v1182 = vsel %vm1170, %v1160, %v1163
      %v1183 = vsel %vm1173, %v1169, 1326507024
      %v1184 = vsel %vm1172, %v1166, %v1183
      %v1185 = vsel %vm1171, %v1182, %v1184
      %v1186 = vshll.u32 %v1146, 8
      %v1187 = vmul.u32.u64.compose %v1186, %v1185
      %v1188 = vextract.low.u32 %v1187
      %v1189 = vextract.high.u32 %v1187
      %v1190 = vmul.u32.u64.compose %v1186, %v1181
      %v1191 = vextract.low.u32 %v1190
      %v1192 = vextract.high.u32 %v1190
      %v1193 = vmul.u32 %v1186, %v1177
      %v1194 = vadd.s32 %v1189, %v1191
      %vm1195 = vc.u32 %v1189, %v1191
      %v1196 = vadd.s32 %v1192, 1
      %v1197 = vsel %vm1195, %v1196, %v1192
      %v1198 = vadd.s32 %v1193, %v1197
      %v1199 = vadd.s32 %v1198, 536870912
      %v1200 = vshrl.u32 %v1199, 30
      %v1201 = vshll.u32 %v1200, 30
      %v1202 = vsub.s32 %v1198, %v1201
      %vm1203 = vcmp.lt.s32.totalorder %v1202, 0
      %v1204 = vsub.s32 0, %v1202
      %v1205 = vsel %vm1203, %v1204, %v1202
      %v1206 = vclz %v1205
      %v1207 = vsub.s32 %v1206, 2
      %vm1208 = vcmp.gt.s32.totalorder 0, %v1207
      %v1209 = vsel %vm1208, 0, %v1207
      %v1210 = vsub.s32 32, %v1209
      %v1211 = vshll.u32 %v1202, %v1209
      %v1212 = vshrl.u32 %v1194, %v1210
      %v1213 = vor.u32 %v1211, %v1212
      %v1214 = vsub.s32 4294967266, %v1209
      %v1215 = vadd.s32 %v1214, 127
      %v1216 = vshll.u32 %v1215, 23
      %v1217 = vor.u32 4788187, %v1216
      %v1218 = vand.u32 2147483647, %v1217
      %v1220 = vcvt.s32.f32 %v1213
      %v1221 = vmul.f32 %v1220, %v1218
      %v1222 = vxor.u32 %v1221, 2147483648
      %v1223 = vsel %vm1140, %v1222, %v1221
      %v1224 = vsub.s32 4, %v1200
      %v1225 = vsel %vm1140, %v1224, %v1200
      %v1226 = vsel %vm1139, %v401, %v1223
      %v1227 = vsel %vm1139, 0, %v1225
      %v1228 = vcosq.f32.pop %v1226
      %v1229 = vsinq.f32.pop %v1226
      %vm1230 = vweird.f32 %v401
      %v1231 = vadd.s32 %v1227, 3
      %v1232 = vand.u32 %v1231, 3
      %vm1233 = vcmp.lt.s32.totalorder %v1232, 2
      %vm1234 = vcmp.eq.s32.totalorder %v1232, 0
      %v1235 = vxor.u32 %v1229, 2147483648
      %v1236 = vsel %vm1234, %v1228, %v1235
      %vm1237 = vcmp.eq.s32.totalorder %v1232, 2
      %v1238 = vxor.u32 %v1228, 2147483648
      %v1239 = vsel %vm1237, %v1238, %v1229
      %v1240 = vsel %vm1233, %v1236, %v1239
      %v1241 = vsel %vm1230, nan, %v1240
      %v1242 = vand.u32 2147483647, %v402
      %vm1243 = vcmp.le.f32.partialorder %v1242, 0.7853982
      %vm1244 = vcmp.lt.s32.totalorder %v402, 0
      %v1245 = vand.u32 %v402, 2139095040
      %v1246 = vshrl.u32 %v1245, 23
      %v1247 = vsub.s32 %v1246, 127
      %v1248 = vand.u32 2147483647, %v402
      %v1249 = vand.u32 %v1248, 8388607
      %v1250 = vor.u32 %v1249, 8388608
      %v1251 = vsub.s32 0, %v1250
      %v1252 = vadd.s32 %v1247, 1
      %vm1253 = vcmp.gt.s32.totalorder %v1252, 0
      %v1254 = vsel %vm1253, %v1252, 0
      %v1255 = vshrl.u32 %v1254, 5
      %v1256 = vand.u32 %v1254, 31
      %v1257 = vsub.s32 32, %v1256
      %v1258 = vshrl.u32 683565275, %v1257
      %v1259 = vshll.u32 683565275, %v1256
      %v1260 = vshrl.u32 2475754826, %v1257
      %v1261 = vor.u32 %v1259, %v1260
      %v1262 = vshll.u32 2475754826, %v1256
      %v1263 = vshrl.u32 2131351028, %v1257
      %v1264 = vor.u32 %v1262, %v1263
      %v1265 = vshll.u32 2131351028, %v1256
      %v1266 = vshrl.u32 2102212464, %v1257
      %v1267 = vor.u32 %v1265, %v1266
      %v1268 = vshll.u32 2102212464, %v1256
      %v1269 = vshrl.u32 920167782, %v1257
      %v1270 = vor.u32 %v1268, %v1269
      %v1271 = vshll.u32 920167782, %v1256
      %v1272 = vshrl.u32 1326507024, %v1257
      %v1273 = vor.u32 %v1271, %v1272
      %vm1274 = vcmp.lt.s32.totalorder %v1255, 1
      %vm1275 = vcmp.lt.s32.totalorder %v1255, 2
      %vm1276 = vcmp.lt.s32.totalorder %v1255, 3
      %vm1277 = vcmp.lt.s32.totalorder %v1255, 4
      %v1278 = vsel %vm1274, %v1258, %v1261
      %v1279 = vsel %vm1277, %v1267, 2102212464
      %v1280 = vsel %vm1276, %v1264, %v1279
      %v1281 = vsel %vm1275, %v1278, %v1280
      %v1282 = vsel %vm1274, %v1261, %v1264
      %v1283 = vsel %vm1277, %v1270, 920167782
      %v1284 = vsel %vm1276, %v1267, %v1283
      %v1285 = vsel %vm1275, %v1282, %v1284
      %v1286 = vsel %vm1274, %v1264, %v1267
      %v1287 = vsel %vm1277, %v1273, 1326507024
      %v1288 = vsel %vm1276, %v1270, %v1287
      %v1289 = vsel %vm1275, %v1286, %v1288
      %v1290 = vshll.u32 %v1250, 8
      %v1291 = vmul.u32.u64.compose %v1290, %v1289
      %v1292 = vextract.low.u32 %v1291
      %v1293 = vextract.high.u32 %v1291
      %v1294 = vmul.u32.u64.compose %v1290, %v1285
      %v1295 = vextract.low.u32 %v1294
      %v1296 = vextract.high.u32 %v1294
      %v1297 = vmul.u32 %v1290, %v1281
      %v1298 = vadd.s32 %v1293, %v1295
      %vm1299 = vc.u32 %v1293, %v1295
      %v1300 = vadd.s32 %v1296, 1
      %v1301 = vsel %vm1299, %v1300, %v1296
      %v1302 = vadd.s32 %v1297, %v1301
      %v1303 = vadd.s32 %v1302, 536870912
      %v1304 = vshrl.u32 %v1303, 30
      %v1305 = vshll.u32 %v1304, 30
      %v1306 = vsub.s32 %v1302, %v1305
      %vm1307 = vcmp.lt.s32.totalorder %v1306, 0
      %v1308 = vsub.s32 0, %v1306
      %v1309 = vsel %vm1307, %v1308, %v1306
      %v1310 = vclz %v1309
      %v1311 = vsub.s32 %v1310, 2
      %vm1312 = vcmp.gt.s32.totalorder 0, %v1311
      %v1313 = vsel %vm1312, 0, %v1311
      %v1314 = vsub.s32 32, %v1313
      %v1315 = vshll.u32 %v1306, %v1313
      %v1316 = vshrl.u32 %v1298, %v1314
      %v1317 = vor.u32 %v1315, %v1316
      %v1318 = vsub.s32 4294967266, %v1313
      %v1319 = vadd.s32 %v1318, 127
      %v1320 = vshll.u32 %v1319, 23
      %v1321 = vor.u32 4788187, %v1320
      %v1322 = vand.u32 2147483647, %v1321
      %v1324 = vcvt.s32.f32 %v1317
      %v1325 = vmul.f32 %v1324, %v1322
      %v1326 = vxor.u32 %v1325, 2147483648
      %v1327 = vsel %vm1244, %v1326, %v1325
      %v1328 = vsub.s32 4, %v1304
      %v1329 = vsel %vm1244, %v1328, %v1304
      %v1330 = vsel %vm1243, %v402, %v1327
      %v1331 = vsel %vm1243, 0, %v1329
      %v1332 = vcosq.f32.pop %v1330
      %v1333 = vsinq.f32.pop %v1330
      %vm1334 = vweird.f32 %v402
      %v1335 = vadd.s32 %v1331, 3
      %v1336 = vand.u32 %v1335, 3
      %vm1337 = vcmp.lt.s32.totalorder %v1336, 2
      %vm1338 = vcmp.eq.s32.totalorder %v1336, 0
      %v1339 = vxor.u32 %v1333, 2147483648
      %v1340 = vsel %vm1338, %v1332, %v1339
      %vm1341 = vcmp.eq.s32.totalorder %v1336, 2
      %v1342 = vxor.u32 %v1332, 2147483648
      %v1343 = vsel %vm1341, %v1342, %v1333
      %v1344 = vsel %vm1337, %v1340, %v1343
      %v1345 = vsel %vm1334, nan, %v1344
      %v1346 = vand.u32 2147483647, %v403
      %vm1347 = vcmp.le.f32.partialorder %v1346, 0.7853982
      %vm1348 = vcmp.lt.s32.totalorder %v403, 0
      %v1349 = vand.u32 %v403, 2139095040
      %v1350 = vshrl.u32 %v1349, 23
      %v1351 = vsub.s32 %v1350, 127
      %v1352 = vand.u32 2147483647, %v403
      %v1353 = vand.u32 %v1352, 8388607
      %v1354 = vor.u32 %v1353, 8388608
      %v1355 = vsub.s32 0, %v1354
      %v1356 = vadd.s32 %v1351, 1
      %vm1357 = vcmp.gt.s32.totalorder %v1356, 0
      %v1358 = vsel %vm1357, %v1356, 0
      %v1359 = vshrl.u32 %v1358, 5
      %v1360 = vand.u32 %v1358, 31
      %v1361 = vsub.s32 32, %v1360
      %v1362 = vshrl.u32 683565275, %v1361
      %v1363 = vshll.u32 683565275, %v1360
      %v1364 = vshrl.u32 2475754826, %v1361
      %v1365 = vor.u32 %v1363, %v1364
      %v1366 = vshll.u32 2475754826, %v1360
      %v1367 = vshrl.u32 2131351028, %v1361
      %v1368 = vor.u32 %v1366, %v1367
      %v1369 = vshll.u32 2131351028, %v1360
      %v1370 = vshrl.u32 2102212464, %v1361
      %v1371 = vor.u32 %v1369, %v1370
      %v1372 = vshll.u32 2102212464, %v1360
      %v1373 = vshrl.u32 920167782, %v1361
      %v1374 = vor.u32 %v1372, %v1373
      %v1375 = vshll.u32 920167782, %v1360
      %v1376 = vshrl.u32 1326507024, %v1361
      %v1377 = vor.u32 %v1375, %v1376
      %vm1378 = vcmp.lt.s32.totalorder %v1359, 1
      %vm1379 = vcmp.lt.s32.totalorder %v1359, 2
      %vm1380 = vcmp.lt.s32.totalorder %v1359, 3
      %vm1381 = vcmp.lt.s32.totalorder %v1359, 4
      %v1382 = vsel %vm1378, %v1362, %v1365
      %v1383 = vsel %vm1381, %v1371, 2102212464
      %v1384 = vsel %vm1380, %v1368, %v1383
      %v1385 = vsel %vm1379, %v1382, %v1384
      %v1386 = vsel %vm1378, %v1365, %v1368
      %v1387 = vsel %vm1381, %v1374, 920167782
      %v1388 = vsel %vm1380, %v1371, %v1387
      %v1389 = vsel %vm1379, %v1386, %v1388
      %v1390 = vsel %vm1378, %v1368, %v1371
      %v1391 = vsel %vm1381, %v1377, 1326507024
      %v1392 = vsel %vm1380, %v1374, %v1391
      %v1393 = vsel %vm1379, %v1390, %v1392
      %v1394 = vshll.u32 %v1354, 8
      %v1395 = vmul.u32.u64.compose %v1394, %v1393
      %v1396 = vextract.low.u32 %v1395
      %v1397 = vextract.high.u32 %v1395
      %v1398 = vmul.u32.u64.compose %v1394, %v1389
      %v1399 = vextract.low.u32 %v1398
      %v1400 = vextract.high.u32 %v1398
      %v1401 = vmul.u32 %v1394, %v1385
      %v1402 = vadd.s32 %v1397, %v1399
      %vm1403 = vc.u32 %v1397, %v1399
      %v1404 = vadd.s32 %v1400, 1
      %v1405 = vsel %vm1403, %v1404, %v1400
      %v1406 = vadd.s32 %v1401, %v1405
      %v1407 = vadd.s32 %v1406, 536870912
      %v1408 = vshrl.u32 %v1407, 30
      %v1409 = vshll.u32 %v1408, 30
      %v1410 = vsub.s32 %v1406, %v1409
      %vm1411 = vcmp.lt.s32.totalorder %v1410, 0
      %v1412 = vsub.s32 0, %v1410
      %v1413 = vsel %vm1411, %v1412, %v1410
      %v1414 = vclz %v1413
      %v1415 = vsub.s32 %v1414, 2
      %vm1416 = vcmp.gt.s32.totalorder 0, %v1415
      %v1417 = vsel %vm1416, 0, %v1415
      %v1418 = vsub.s32 32, %v1417
      %v1419 = vshll.u32 %v1410, %v1417
      %v1420 = vshrl.u32 %v1402, %v1418
      %v1421 = vor.u32 %v1419, %v1420
      %v1422 = vsub.s32 4294967266, %v1417
      %v1423 = vadd.s32 %v1422, 127
      %v1424 = vshll.u32 %v1423, 23
      %v1425 = vor.u32 4788187, %v1424
      %v1426 = vand.u32 2147483647, %v1425
      %v1428 = vcvt.s32.f32 %v1421
      %v1429 = vmul.f32 %v1428, %v1426
      %v1430 = vxor.u32 %v1429, 2147483648
      %v1431 = vsel %vm1348, %v1430, %v1429
      %v1432 = vsub.s32 4, %v1408
      %v1433 = vsel %vm1348, %v1432, %v1408
      %v1434 = vsel %vm1347, %v403, %v1431
      %v1435 = vsel %vm1347, 0, %v1433
      %v1436 = vcosq.f32.pop %v1434
      %v1437 = vsinq.f32.pop %v1434
      %vm1438 = vweird.f32 %v403
      %v1439 = vadd.s32 %v1435, 3
      %v1440 = vand.u32 %v1439, 3
      %vm1441 = vcmp.lt.s32.totalorder %v1440, 2
      %vm1442 = vcmp.eq.s32.totalorder %v1440, 0
      %v1443 = vxor.u32 %v1437, 2147483648
      %v1444 = vsel %vm1442, %v1436, %v1443
      %vm1445 = vcmp.eq.s32.totalorder %v1440, 2
      %v1446 = vxor.u32 %v1436, 2147483648
      %v1447 = vsel %vm1445, %v1446, %v1437
      %v1448 = vsel %vm1441, %v1444, %v1447
      %v1449 = vsel %vm1438, nan, %v1448
      %v1450 = vand.u32 2147483647, %v404
      %vm1451 = vcmp.le.f32.partialorder %v1450, 0.7853982
      %vm1452 = vcmp.lt.s32.totalorder %v404, 0
      %v1453 = vand.u32 %v404, 2139095040
      %v1454 = vshrl.u32 %v1453, 23
      %v1455 = vsub.s32 %v1454, 127
      %v1456 = vand.u32 2147483647, %v404
      %v1457 = vand.u32 %v1456, 8388607
      %v1458 = vor.u32 %v1457, 8388608
      %v1459 = vsub.s32 0, %v1458
      %v1460 = vadd.s32 %v1455, 1
      %vm1461 = vcmp.gt.s32.totalorder %v1460, 0
      %v1462 = vsel %vm1461, %v1460, 0
      %v1463 = vshrl.u32 %v1462, 5
      %v1464 = vand.u32 %v1462, 31
      %v1465 = vsub.s32 32, %v1464
      %v1466 = vshrl.u32 683565275, %v1465
      %v1467 = vshll.u32 683565275, %v1464
      %v1468 = vshrl.u32 2475754826, %v1465
      %v1469 = vor.u32 %v1467, %v1468
      %v1470 = vshll.u32 2475754826, %v1464
      %v1471 = vshrl.u32 2131351028, %v1465
      %v1472 = vor.u32 %v1470, %v1471
      %v1473 = vshll.u32 2131351028, %v1464
      %v1474 = vshrl.u32 2102212464, %v1465
      %v1475 = vor.u32 %v1473, %v1474
      %v1476 = vshll.u32 2102212464, %v1464
      %v1477 = vshrl.u32 920167782, %v1465
      %v1478 = vor.u32 %v1476, %v1477
      %v1479 = vshll.u32 920167782, %v1464
      %v1480 = vshrl.u32 1326507024, %v1465
      %v1481 = vor.u32 %v1479, %v1480
      %vm1482 = vcmp.lt.s32.totalorder %v1463, 1
      %vm1483 = vcmp.lt.s32.totalorder %v1463, 2
      %vm1484 = vcmp.lt.s32.totalorder %v1463, 3
      %vm1485 = vcmp.lt.s32.totalorder %v1463, 4
      %v1486 = vsel %vm1482, %v1466, %v1469
      %v1487 = vsel %vm1485, %v1475, 2102212464
      %v1488 = vsel %vm1484, %v1472, %v1487
      %v1489 = vsel %vm1483, %v1486, %v1488
      %v1490 = vsel %vm1482, %v1469, %v1472
      %v1491 = vsel %vm1485, %v1478, 920167782
      %v1492 = vsel %vm1484, %v1475, %v1491
      %v1493 = vsel %vm1483, %v1490, %v1492
      %v1494 = vsel %vm1482, %v1472, %v1475
      %v1495 = vsel %vm1485, %v1481, 1326507024
      %v1496 = vsel %vm1484, %v1478, %v1495
      %v1497 = vsel %vm1483, %v1494, %v1496
      %v1498 = vshll.u32 %v1458, 8
      %v1499 = vmul.u32.u64.compose %v1498, %v1497
      %v1500 = vextract.low.u32 %v1499
      %v1501 = vextract.high.u32 %v1499
      %v1502 = vmul.u32.u64.compose %v1498, %v1493
      %v1503 = vextract.low.u32 %v1502
      %v1504 = vextract.high.u32 %v1502
      %v1505 = vmul.u32 %v1498, %v1489
      %v1506 = vadd.s32 %v1501, %v1503
      %vm1507 = vc.u32 %v1501, %v1503
      %v1508 = vadd.s32 %v1504, 1
      %v1509 = vsel %vm1507, %v1508, %v1504
      %v1510 = vadd.s32 %v1505, %v1509
      %v1511 = vadd.s32 %v1510, 536870912
      %v1512 = vshrl.u32 %v1511, 30
      %v1513 = vshll.u32 %v1512, 30
      %v1514 = vsub.s32 %v1510, %v1513
      %vm1515 = vcmp.lt.s32.totalorder %v1514, 0
      %v1516 = vsub.s32 0, %v1514
      %v1517 = vsel %vm1515, %v1516, %v1514
      %v1518 = vclz %v1517
      %v1519 = vsub.s32 %v1518, 2
      %vm1520 = vcmp.gt.s32.totalorder 0, %v1519
      %v1521 = vsel %vm1520, 0, %v1519
      %v1522 = vsub.s32 32, %v1521
      %v1523 = vshll.u32 %v1514, %v1521
      %v1524 = vshrl.u32 %v1506, %v1522
      %v1525 = vor.u32 %v1523, %v1524
      %v1526 = vsub.s32 4294967266, %v1521
      %v1527 = vadd.s32 %v1526, 127
      %v1528 = vshll.u32 %v1527, 23
      %v1529 = vor.u32 4788187, %v1528
      %v1530 = vand.u32 2147483647, %v1529
      %v1532 = vcvt.s32.f32 %v1525
      %v1533 = vmul.f32 %v1532, %v1530
      %v1534 = vxor.u32 %v1533, 2147483648
      %v1535 = vsel %vm1452, %v1534, %v1533
      %v1536 = vsub.s32 4, %v1512
      %v1537 = vsel %vm1452, %v1536, %v1512
      %v1538 = vsel %vm1451, %v404, %v1535
      %v1539 = vsel %vm1451, 0, %v1537
      %v1540 = vcosq.f32.pop %v1538
      %v1541 = vsinq.f32.pop %v1538
      %vm1542 = vweird.f32 %v404
      %v1543 = vadd.s32 %v1539, 3
      %v1544 = vand.u32 %v1543, 3
      %vm1545 = vcmp.lt.s32.totalorder %v1544, 2
      %vm1546 = vcmp.eq.s32.totalorder %v1544, 0
      %v1547 = vxor.u32 %v1541, 2147483648
      %v1548 = vsel %vm1546, %v1540, %v1547
      %vm1549 = vcmp.eq.s32.totalorder %v1544, 2
      %v1550 = vxor.u32 %v1540, 2147483648
      %v1551 = vsel %vm1549, %v1550, %v1541
      %v1552 = vsel %vm1545, %v1548, %v1551
      %v1553 = vsel %vm1542, nan, %v1552
      %v1554 = vand.u32 2147483647, %v405
      %vm1555 = vcmp.le.f32.partialorder %v1554, 0.7853982
      %vm1556 = vcmp.lt.s32.totalorder %v405, 0
      %v1557 = vand.u32 %v405, 2139095040
      %v1558 = vshrl.u32 %v1557, 23
      %v1559 = vsub.s32 %v1558, 127
      %v1560 = vand.u32 2147483647, %v405
      %v1561 = vand.u32 %v1560, 8388607
      %v1562 = vor.u32 %v1561, 8388608
      %v1563 = vsub.s32 0, %v1562
      %v1564 = vadd.s32 %v1559, 1
      %vm1565 = vcmp.gt.s32.totalorder %v1564, 0
      %v1566 = vsel %vm1565, %v1564, 0
      %v1567 = vshrl.u32 %v1566, 5
      %v1568 = vand.u32 %v1566, 31
      %v1569 = vsub.s32 32, %v1568
      %v1570 = vshrl.u32 683565275, %v1569
      %v1571 = vshll.u32 683565275, %v1568
      %v1572 = vshrl.u32 2475754826, %v1569
      %v1573 = vor.u32 %v1571, %v1572
      %v1574 = vshll.u32 2475754826, %v1568
      %v1575 = vshrl.u32 2131351028, %v1569
      %v1576 = vor.u32 %v1574, %v1575
      %v1577 = vshll.u32 2131351028, %v1568
      %v1578 = vshrl.u32 2102212464, %v1569
      %v1579 = vor.u32 %v1577, %v1578
      %v1580 = vshll.u32 2102212464, %v1568
      %v1581 = vshrl.u32 920167782, %v1569
      %v1582 = vor.u32 %v1580, %v1581
      %v1583 = vshll.u32 920167782, %v1568
      %v1584 = vshrl.u32 1326507024, %v1569
      %v1585 = vor.u32 %v1583, %v1584
      %vm1586 = vcmp.lt.s32.totalorder %v1567, 1
      %vm1587 = vcmp.lt.s32.totalorder %v1567, 2
      %vm1588 = vcmp.lt.s32.totalorder %v1567, 3
      %vm1589 = vcmp.lt.s32.totalorder %v1567, 4
      %v1590 = vsel %vm1586, %v1570, %v1573
      %v1591 = vsel %vm1589, %v1579, 2102212464
      %v1592 = vsel %vm1588, %v1576, %v1591
      %v1593 = vsel %vm1587, %v1590, %v1592
      %v1594 = vsel %vm1586, %v1573, %v1576
      %v1595 = vsel %vm1589, %v1582, 920167782
      %v1596 = vsel %vm1588, %v1579, %v1595
      %v1597 = vsel %vm1587, %v1594, %v1596
      %v1598 = vsel %vm1586, %v1576, %v1579
      %v1599 = vsel %vm1589, %v1585, 1326507024
      %v1600 = vsel %vm1588, %v1582, %v1599
      %v1601 = vsel %vm1587, %v1598, %v1600
      %v1602 = vshll.u32 %v1562, 8
      %v1603 = vmul.u32.u64.compose %v1602, %v1601
      %v1604 = vextract.low.u32 %v1603
      %v1605 = vextract.high.u32 %v1603
      %v1606 = vmul.u32.u64.compose %v1602, %v1597
      %v1607 = vextract.low.u32 %v1606
      %v1608 = vextract.high.u32 %v1606
      %v1609 = vmul.u32 %v1602, %v1593
      %v1610 = vadd.s32 %v1605, %v1607
      %vm1611 = vc.u32 %v1605, %v1607
      %v1612 = vadd.s32 %v1608, 1
      %v1613 = vsel %vm1611, %v1612, %v1608
      %v1614 = vadd.s32 %v1609, %v1613
      %v1615 = vadd.s32 %v1614, 536870912
      %v1616 = vshrl.u32 %v1615, 30
      %v1617 = vshll.u32 %v1616, 30
      %v1618 = vsub.s32 %v1614, %v1617
      %vm1619 = vcmp.lt.s32.totalorder %v1618, 0
      %v1620 = vsub.s32 0, %v1618
      %v1621 = vsel %vm1619, %v1620, %v1618
      %v1622 = vclz %v1621
      %v1623 = vsub.s32 %v1622, 2
      %vm1624 = vcmp.gt.s32.totalorder 0, %v1623
      %v1625 = vsel %vm1624, 0, %v1623
      %v1626 = vsub.s32 32, %v1625
      %v1627 = vshll.u32 %v1618, %v1625
      %v1628 = vshrl.u32 %v1610, %v1626
      %v1629 = vor.u32 %v1627, %v1628
      %v1630 = vsub.s32 4294967266, %v1625
      %v1631 = vadd.s32 %v1630, 127
      %v1632 = vshll.u32 %v1631, 23
      %v1633 = vor.u32 4788187, %v1632
      %v1634 = vand.u32 2147483647, %v1633
      %v1636 = vcvt.s32.f32 %v1629
      %v1637 = vmul.f32 %v1636, %v1634
      %v1638 = vxor.u32 %v1637, 2147483648
      %v1639 = vsel %vm1556, %v1638, %v1637
      %v1640 = vsub.s32 4, %v1616
      %v1641 = vsel %vm1556, %v1640, %v1616
      %v1642 = vsel %vm1555, %v405, %v1639
      %v1643 = vsel %vm1555, 0, %v1641
      %v1644 = vcosq.f32.pop %v1642
      %v1645 = vsinq.f32.pop %v1642
      %vm1646 = vweird.f32 %v405
      %v1647 = vadd.s32 %v1643, 3
      %v1648 = vand.u32 %v1647, 3
      %vm1649 = vcmp.lt.s32.totalorder %v1648, 2
      %vm1650 = vcmp.eq.s32.totalorder %v1648, 0
      %v1651 = vxor.u32 %v1645, 2147483648
      %v1652 = vsel %vm1650, %v1644, %v1651
      %vm1653 = vcmp.eq.s32.totalorder %v1648, 2
      %v1654 = vxor.u32 %v1644, 2147483648
      %v1655 = vsel %vm1653, %v1654, %v1645
      %v1656 = vsel %vm1649, %v1652, %v1655
      %v1657 = vsel %vm1646, nan, %v1656
      %v1658 = vand.u32 2147483647, %v406
      %vm1659 = vcmp.le.f32.partialorder %v1658, 0.7853982
      %vm1660 = vcmp.lt.s32.totalorder %v406, 0
      %v1661 = vand.u32 %v406, 2139095040
      %v1662 = vshrl.u32 %v1661, 23
      %v1663 = vsub.s32 %v1662, 127
      %v1664 = vand.u32 2147483647, %v406
      %v1665 = vand.u32 %v1664, 8388607
      %v1666 = vor.u32 %v1665, 8388608
      %v1667 = vsub.s32 0, %v1666
      %v1668 = vadd.s32 %v1663, 1
      %vm1669 = vcmp.gt.s32.totalorder %v1668, 0
      %v1670 = vsel %vm1669, %v1668, 0
      %v1671 = vshrl.u32 %v1670, 5
      %v1672 = vand.u32 %v1670, 31
      %v1673 = vsub.s32 32, %v1672
      %v1674 = vshrl.u32 683565275, %v1673
      %v1675 = vshll.u32 683565275, %v1672
      %v1676 = vshrl.u32 2475754826, %v1673
      %v1677 = vor.u32 %v1675, %v1676
      %v1678 = vshll.u32 2475754826, %v1672
      %v1679 = vshrl.u32 2131351028, %v1673
      %v1680 = vor.u32 %v1678, %v1679
      %v1681 = vshll.u32 2131351028, %v1672
      %v1682 = vshrl.u32 2102212464, %v1673
      %v1683 = vor.u32 %v1681, %v1682
      %v1684 = vshll.u32 2102212464, %v1672
      %v1685 = vshrl.u32 920167782, %v1673
      %v1686 = vor.u32 %v1684, %v1685
      %v1687 = vshll.u32 920167782, %v1672
      %v1688 = vshrl.u32 1326507024, %v1673
      %v1689 = vor.u32 %v1687, %v1688
      %vm1690 = vcmp.lt.s32.totalorder %v1671, 1
      %vm1691 = vcmp.lt.s32.totalorder %v1671, 2
      %vm1692 = vcmp.lt.s32.totalorder %v1671, 3
      %vm1693 = vcmp.lt.s32.totalorder %v1671, 4
      %v1694 = vsel %vm1690, %v1674, %v1677
      %v1695 = vsel %vm1693, %v1683, 2102212464
      %v1696 = vsel %vm1692, %v1680, %v1695
      %v1697 = vsel %vm1691, %v1694, %v1696
      %v1698 = vsel %vm1690, %v1677, %v1680
      %v1699 = vsel %vm1693, %v1686, 920167782
      %v1700 = vsel %vm1692, %v1683, %v1699
      %v1701 = vsel %vm1691, %v1698, %v1700
      %v1702 = vsel %vm1690, %v1680, %v1683
      %v1703 = vsel %vm1693, %v1689, 1326507024
      %v1704 = vsel %vm1692, %v1686, %v1703
      %v1705 = vsel %vm1691, %v1702, %v1704
      %v1706 = vshll.u32 %v1666, 8
      %v1707 = vmul.u32.u64.compose %v1706, %v1705
      %v1708 = vextract.low.u32 %v1707
      %v1709 = vextract.high.u32 %v1707
      %v1710 = vmul.u32.u64.compose %v1706, %v1701
      %v1711 = vextract.low.u32 %v1710
      %v1712 = vextract.high.u32 %v1710
      %v1713 = vmul.u32 %v1706, %v1697
      %v1714 = vadd.s32 %v1709, %v1711
      %vm1715 = vc.u32 %v1709, %v1711
      %v1716 = vadd.s32 %v1712, 1
      %v1717 = vsel %vm1715, %v1716, %v1712
      %v1718 = vadd.s32 %v1713, %v1717
      %v1719 = vadd.s32 %v1718, 536870912
      %v1720 = vshrl.u32 %v1719, 30
      %v1721 = vshll.u32 %v1720, 30
      %v1722 = vsub.s32 %v1718, %v1721
      %vm1723 = vcmp.lt.s32.totalorder %v1722, 0
      %v1724 = vsub.s32 0, %v1722
      %v1725 = vsel %vm1723, %v1724, %v1722
      %v1726 = vclz %v1725
      %v1727 = vsub.s32 %v1726, 2
      %vm1728 = vcmp.gt.s32.totalorder 0, %v1727
      %v1729 = vsel %vm1728, 0, %v1727
      %v1730 = vsub.s32 32, %v1729
      %v1731 = vshll.u32 %v1722, %v1729
      %v1732 = vshrl.u32 %v1714, %v1730
      %v1733 = vor.u32 %v1731, %v1732
      %v1734 = vsub.s32 4294967266, %v1729
      %v1735 = vadd.s32 %v1734, 127
      %v1736 = vshll.u32 %v1735, 23
      %v1737 = vor.u32 4788187, %v1736
      %v1738 = vand.u32 2147483647, %v1737
      %v1740 = vcvt.s32.f32 %v1733
      %v1741 = vmul.f32 %v1740, %v1738
      %v1742 = vxor.u32 %v1741, 2147483648
      %v1743 = vsel %vm1660, %v1742, %v1741
      %v1744 = vsub.s32 4, %v1720
      %v1745 = vsel %vm1660, %v1744, %v1720
      %v1746 = vsel %vm1659, %v406, %v1743
      %v1747 = vsel %vm1659, 0, %v1745
      %v1748 = vcosq.f32.pop %v1746
      %v1749 = vsinq.f32.pop %v1746
      %vm1750 = vweird.f32 %v406
      %v1751 = vadd.s32 %v1747, 3
      %v1752 = vand.u32 %v1751, 3
      %vm1753 = vcmp.lt.s32.totalorder %v1752, 2
      %vm1754 = vcmp.eq.s32.totalorder %v1752, 0
      %v1755 = vxor.u32 %v1749, 2147483648
      %v1756 = vsel %vm1754, %v1748, %v1755
      %vm1757 = vcmp.eq.s32.totalorder %v1752, 2
      %v1758 = vxor.u32 %v1748, 2147483648
      %v1759 = vsel %vm1757, %v1758, %v1749
      %v1760 = vsel %vm1753, %v1756, %v1759
      %v1761 = vsel %vm1750, nan, %v1760
      %v1762 = vand.u32 2147483647, %v407
      %vm1763 = vcmp.le.f32.partialorder %v1762, 0.7853982
      %vm1764 = vcmp.lt.s32.totalorder %v407, 0
      %v1765 = vand.u32 %v407, 2139095040
      %v1766 = vshrl.u32 %v1765, 23
      %v1767 = vsub.s32 %v1766, 127
      %v1768 = vand.u32 2147483647, %v407
      %v1769 = vand.u32 %v1768, 8388607
      %v1770 = vor.u32 %v1769, 8388608
      %v1771 = vsub.s32 0, %v1770
      %v1772 = vadd.s32 %v1767, 1
      %vm1773 = vcmp.gt.s32.totalorder %v1772, 0
      %v1774 = vsel %vm1773, %v1772, 0
      %v1775 = vshrl.u32 %v1774, 5
      %v1776 = vand.u32 %v1774, 31
      %v1777 = vsub.s32 32, %v1776
      %v1778 = vshrl.u32 683565275, %v1777
      %v1779 = vshll.u32 683565275, %v1776
      %v1780 = vshrl.u32 2475754826, %v1777
      %v1781 = vor.u32 %v1779, %v1780
      %v1782 = vshll.u32 2475754826, %v1776
      %v1783 = vshrl.u32 2131351028, %v1777
      %v1784 = vor.u32 %v1782, %v1783
      %v1785 = vshll.u32 2131351028, %v1776
      %v1786 = vshrl.u32 2102212464, %v1777
      %v1787 = vor.u32 %v1785, %v1786
      %v1788 = vshll.u32 2102212464, %v1776
      %v1789 = vshrl.u32 920167782, %v1777
      %v1790 = vor.u32 %v1788, %v1789
      %v1791 = vshll.u32 920167782, %v1776
      %v1792 = vshrl.u32 1326507024, %v1777
      %v1793 = vor.u32 %v1791, %v1792
      %vm1794 = vcmp.lt.s32.totalorder %v1775, 1
      %vm1795 = vcmp.lt.s32.totalorder %v1775, 2
      %vm1796 = vcmp.lt.s32.totalorder %v1775, 3
      %vm1797 = vcmp.lt.s32.totalorder %v1775, 4
      %v1798 = vsel %vm1794, %v1778, %v1781
      %v1799 = vsel %vm1797, %v1787, 2102212464
      %v1800 = vsel %vm1796, %v1784, %v1799
      %v1801 = vsel %vm1795, %v1798, %v1800
      %v1802 = vsel %vm1794, %v1781, %v1784
      %v1803 = vsel %vm1797, %v1790, 920167782
      %v1804 = vsel %vm1796, %v1787, %v1803
      %v1805 = vsel %vm1795, %v1802, %v1804
      %v1806 = vsel %vm1794, %v1784, %v1787
      %v1807 = vsel %vm1797, %v1793, 1326507024
      %v1808 = vsel %vm1796, %v1790, %v1807
      %v1809 = vsel %vm1795, %v1806, %v1808
      %v1810 = vshll.u32 %v1770, 8
      %v1811 = vmul.u32.u64.compose %v1810, %v1809
      %v1812 = vextract.low.u32 %v1811
      %v1813 = vextract.high.u32 %v1811
      %v1814 = vmul.u32.u64.compose %v1810, %v1805
      %v1815 = vextract.low.u32 %v1814
      %v1816 = vextract.high.u32 %v1814
      %v1817 = vmul.u32 %v1810, %v1801
      %v1818 = vadd.s32 %v1813, %v1815
      %vm1819 = vc.u32 %v1813, %v1815
      %v1820 = vadd.s32 %v1816, 1
      %v1821 = vsel %vm1819, %v1820, %v1816
      %v1822 = vadd.s32 %v1817, %v1821
      %v1823 = vadd.s32 %v1822, 536870912
      %v1824 = vshrl.u32 %v1823, 30
      %v1825 = vshll.u32 %v1824, 30
      %v1826 = vsub.s32 %v1822, %v1825
      %vm1827 = vcmp.lt.s32.totalorder %v1826, 0
      %v1828 = vsub.s32 0, %v1826
      %v1829 = vsel %vm1827, %v1828, %v1826
      %v1830 = vclz %v1829
      %v1831 = vsub.s32 %v1830, 2
      %vm1832 = vcmp.gt.s32.totalorder 0, %v1831
      %v1833 = vsel %vm1832, 0, %v1831
      %v1834 = vsub.s32 32, %v1833
      %v1835 = vshll.u32 %v1826, %v1833
      %v1836 = vshrl.u32 %v1818, %v1834
      %v1837 = vor.u32 %v1835, %v1836
      %v1838 = vsub.s32 4294967266, %v1833
      %v1839 = vadd.s32 %v1838, 127
      %v1840 = vshll.u32 %v1839, 23
      %v1841 = vor.u32 4788187, %v1840
      %v1842 = vand.u32 2147483647, %v1841
      %v1844 = vcvt.s32.f32 %v1837
      %v1845 = vmul.f32 %v1844, %v1842
      %v1846 = vxor.u32 %v1845, 2147483648
      %v1847 = vsel %vm1764, %v1846, %v1845
      %v1848 = vsub.s32 4, %v1824
      %v1849 = vsel %vm1764, %v1848, %v1824
      %v1850 = vsel %vm1763, %v407, %v1847
      %v1851 = vsel %vm1763, 0, %v1849
      %v1852 = vcosq.f32.pop %v1850
      %v1853 = vsinq.f32.pop %v1850
      %vm1854 = vweird.f32 %v407
      %v1855 = vadd.s32 %v1851, 3
      %v1856 = vand.u32 %v1855, 3
      %vm1857 = vcmp.lt.s32.totalorder %v1856, 2
      %vm1858 = vcmp.eq.s32.totalorder %v1856, 0
      %v1859 = vxor.u32 %v1853, 2147483648
      %v1860 = vsel %vm1858, %v1852, %v1859
      %vm1861 = vcmp.eq.s32.totalorder %v1856, 2
      %v1862 = vxor.u32 %v1852, 2147483648
      %v1863 = vsel %vm1861, %v1862, %v1853
      %v1864 = vsel %vm1857, %v1860, %v1863
      %v1865 = vsel %vm1854, nan, %v1864
      %v1866 = vand.u32 2147483647, %v408
      %vm1867 = vcmp.le.f32.partialorder %v1866, 0.7853982
      %vm1868 = vcmp.lt.s32.totalorder %v408, 0
      %v1869 = vand.u32 %v408, 2139095040
      %v1870 = vshrl.u32 %v1869, 23
      %v1871 = vsub.s32 %v1870, 127
      %v1872 = vand.u32 2147483647, %v408
      %v1873 = vand.u32 %v1872, 8388607
      %v1874 = vor.u32 %v1873, 8388608
      %v1875 = vsub.s32 0, %v1874
      %v1876 = vadd.s32 %v1871, 1
      %vm1877 = vcmp.gt.s32.totalorder %v1876, 0
      %v1878 = vsel %vm1877, %v1876, 0
      %v1879 = vshrl.u32 %v1878, 5
      %v1880 = vand.u32 %v1878, 31
      %v1881 = vsub.s32 32, %v1880
      %v1882 = vshrl.u32 683565275, %v1881
      %v1883 = vshll.u32 683565275, %v1880
      %v1884 = vshrl.u32 2475754826, %v1881
      %v1885 = vor.u32 %v1883, %v1884
      %v1886 = vshll.u32 2475754826, %v1880
      %v1887 = vshrl.u32 2131351028, %v1881
      %v1888 = vor.u32 %v1886, %v1887
      %v1889 = vshll.u32 2131351028, %v1880
      %v1890 = vshrl.u32 2102212464, %v1881
      %v1891 = vor.u32 %v1889, %v1890
      %v1892 = vshll.u32 2102212464, %v1880
      %v1893 = vshrl.u32 920167782, %v1881
      %v1894 = vor.u32 %v1892, %v1893
      %v1895 = vshll.u32 920167782, %v1880
      %v1896 = vshrl.u32 1326507024, %v1881
      %v1897 = vor.u32 %v1895, %v1896
      %vm1898 = vcmp.lt.s32.totalorder %v1879, 1
      %vm1899 = vcmp.lt.s32.totalorder %v1879, 2
      %vm1900 = vcmp.lt.s32.totalorder %v1879, 3
      %vm1901 = vcmp.lt.s32.totalorder %v1879, 4
      %v1902 = vsel %vm1898, %v1882, %v1885
      %v1903 = vsel %vm1901, %v1891, 2102212464
      %v1904 = vsel %vm1900, %v1888, %v1903
      %v1905 = vsel %vm1899, %v1902, %v1904
      %v1906 = vsel %vm1898, %v1885, %v1888
      %v1907 = vsel %vm1901, %v1894, 920167782
      %v1908 = vsel %vm1900, %v1891, %v1907
      %v1909 = vsel %vm1899, %v1906, %v1908
      %v1910 = vsel %vm1898, %v1888, %v1891
      %v1911 = vsel %vm1901, %v1897, 1326507024
      %v1912 = vsel %vm1900, %v1894, %v1911
      %v1913 = vsel %vm1899, %v1910, %v1912
      %v1914 = vshll.u32 %v1874, 8
      %v1915 = vmul.u32.u64.compose %v1914, %v1913
      %v1916 = vextract.low.u32 %v1915
      %v1917 = vextract.high.u32 %v1915
      %v1918 = vmul.u32.u64.compose %v1914, %v1909
      %v1919 = vextract.low.u32 %v1918
      %v1920 = vextract.high.u32 %v1918
      %v1921 = vmul.u32 %v1914, %v1905
      %v1922 = vadd.s32 %v1917, %v1919
      %vm1923 = vc.u32 %v1917, %v1919
      %v1924 = vadd.s32 %v1920, 1
      %v1925 = vsel %vm1923, %v1924, %v1920
      %v1926 = vadd.s32 %v1921, %v1925
      %v1927 = vadd.s32 %v1926, 536870912
      %v1928 = vshrl.u32 %v1927, 30
      %v1929 = vshll.u32 %v1928, 30
      %v1930 = vsub.s32 %v1926, %v1929
      %vm1931 = vcmp.lt.s32.totalorder %v1930, 0
      %v1932 = vsub.s32 0, %v1930
      %v1933 = vsel %vm1931, %v1932, %v1930
      %v1934 = vclz %v1933
      %v1935 = vsub.s32 %v1934, 2
      %vm1936 = vcmp.gt.s32.totalorder 0, %v1935
      %v1937 = vsel %vm1936, 0, %v1935
      %v1938 = vsub.s32 32, %v1937
      %v1939 = vshll.u32 %v1930, %v1937
      %v1940 = vshrl.u32 %v1922, %v1938
      %v1941 = vor.u32 %v1939, %v1940
      %v1942 = vsub.s32 4294967266, %v1937
      %v1943 = vadd.s32 %v1942, 127
      %v1944 = vshll.u32 %v1943, 23
      %v1945 = vor.u32 4788187, %v1944
      %v1946 = vand.u32 2147483647, %v1945
      %v1948 = vcvt.s32.f32 %v1941
      %v1949 = vmul.f32 %v1948, %v1946
      %v1950 = vxor.u32 %v1949, 2147483648
      %v1951 = vsel %vm1868, %v1950, %v1949
      %v1952 = vsub.s32 4, %v1928
      %v1953 = vsel %vm1868, %v1952, %v1928
      %v1954 = vsel %vm1867, %v408, %v1951
      %v1955 = vsel %vm1867, 0, %v1953
      %v1956 = vcosq.f32.pop %v1954
      %v1957 = vsinq.f32.pop %v1954
      %vm1958 = vweird.f32 %v408
      %v1959 = vadd.s32 %v1955, 3
      %v1960 = vand.u32 %v1959, 3
      %vm1961 = vcmp.lt.s32.totalorder %v1960, 2
      %vm1962 = vcmp.eq.s32.totalorder %v1960, 0
      %v1963 = vxor.u32 %v1957, 2147483648
      %v1964 = vsel %vm1962, %v1956, %v1963
      %vm1965 = vcmp.eq.s32.totalorder %v1960, 2
      %v1966 = vxor.u32 %v1956, 2147483648
      %v1967 = vsel %vm1965, %v1966, %v1957
      %v1968 = vsel %vm1961, %v1964, %v1967
      %v1969 = vsel %vm1958, nan, %v1968
      %v1970 = vand.u32 2147483647, %v409
      %vm1971 = vcmp.le.f32.partialorder %v1970, 0.7853982
      %vm1972 = vcmp.lt.s32.totalorder %v409, 0
      %v1973 = vand.u32 %v409, 2139095040
      %v1974 = vshrl.u32 %v1973, 23
      %v1975 = vsub.s32 %v1974, 127
      %v1976 = vand.u32 2147483647, %v409
      %v1977 = vand.u32 %v1976, 8388607
      %v1978 = vor.u32 %v1977, 8388608
      %v1979 = vsub.s32 0, %v1978
      %v1980 = vadd.s32 %v1975, 1
      %vm1981 = vcmp.gt.s32.totalorder %v1980, 0
      %v1982 = vsel %vm1981, %v1980, 0
      %v1983 = vshrl.u32 %v1982, 5
      %v1984 = vand.u32 %v1982, 31
      %v1985 = vsub.s32 32, %v1984
      %v1986 = vshrl.u32 683565275, %v1985
      %v1987 = vshll.u32 683565275, %v1984
      %v1988 = vshrl.u32 2475754826, %v1985
      %v1989 = vor.u32 %v1987, %v1988
      %v1990 = vshll.u32 2475754826, %v1984
      %v1991 = vshrl.u32 2131351028, %v1985
      %v1992 = vor.u32 %v1990, %v1991
      %v1993 = vshll.u32 2131351028, %v1984
      %v1994 = vshrl.u32 2102212464, %v1985
      %v1995 = vor.u32 %v1993, %v1994
      %v1996 = vshll.u32 2102212464, %v1984
      %v1997 = vshrl.u32 920167782, %v1985
      %v1998 = vor.u32 %v1996, %v1997
      %v1999 = vshll.u32 920167782, %v1984
      %v2000 = vshrl.u32 1326507024, %v1985
      %v2001 = vor.u32 %v1999, %v2000
      %vm2002 = vcmp.lt.s32.totalorder %v1983, 1
      %vm2003 = vcmp.lt.s32.totalorder %v1983, 2
      %vm2004 = vcmp.lt.s32.totalorder %v1983, 3
      %vm2005 = vcmp.lt.s32.totalorder %v1983, 4
      %v2006 = vsel %vm2002, %v1986, %v1989
      %v2007 = vsel %vm2005, %v1995, 2102212464
      %v2008 = vsel %vm2004, %v1992, %v2007
      %v2009 = vsel %vm2003, %v2006, %v2008
      %v2010 = vsel %vm2002, %v1989, %v1992
      %v2011 = vsel %vm2005, %v1998, 920167782
      %v2012 = vsel %vm2004, %v1995, %v2011
      %v2013 = vsel %vm2003, %v2010, %v2012
      %v2014 = vsel %vm2002, %v1992, %v1995
      %v2015 = vsel %vm2005, %v2001, 1326507024
      %v2016 = vsel %vm2004, %v1998, %v2015
      %v2017 = vsel %vm2003, %v2014, %v2016
      %v2018 = vshll.u32 %v1978, 8
      %v2019 = vmul.u32.u64.compose %v2018, %v2017
      %v2020 = vextract.low.u32 %v2019
      %v2021 = vextract.high.u32 %v2019
      %v2022 = vmul.u32.u64.compose %v2018, %v2013
      %v2023 = vextract.low.u32 %v2022
      %v2024 = vextract.high.u32 %v2022
      %v2025 = vmul.u32 %v2018, %v2009
      %v2026 = vadd.s32 %v2021, %v2023
      %vm2027 = vc.u32 %v2021, %v2023
      %v2028 = vadd.s32 %v2024, 1
      %v2029 = vsel %vm2027, %v2028, %v2024
      %v2030 = vadd.s32 %v2025, %v2029
      %v2031 = vadd.s32 %v2030, 536870912
      %v2032 = vshrl.u32 %v2031, 30
      %v2033 = vshll.u32 %v2032, 30
      %v2034 = vsub.s32 %v2030, %v2033
      %vm2035 = vcmp.lt.s32.totalorder %v2034, 0
      %v2036 = vsub.s32 0, %v2034
      %v2037 = vsel %vm2035, %v2036, %v2034
      %v2038 = vclz %v2037
      %v2039 = vsub.s32 %v2038, 2
      %vm2040 = vcmp.gt.s32.totalorder 0, %v2039
      %v2041 = vsel %vm2040, 0, %v2039
      %v2042 = vsub.s32 32, %v2041
      %v2043 = vshll.u32 %v2034, %v2041
      %v2044 = vshrl.u32 %v2026, %v2042
      %v2045 = vor.u32 %v2043, %v2044
      %v2046 = vsub.s32 4294967266, %v2041
      %v2047 = vadd.s32 %v2046, 127
      %v2048 = vshll.u32 %v2047, 23
      %v2049 = vor.u32 4788187, %v2048
      %v2050 = vand.u32 2147483647, %v2049
      %v2052 = vcvt.s32.f32 %v2045
      %v2053 = vmul.f32 %v2052, %v2050
      %v2054 = vxor.u32 %v2053, 2147483648
      %v2055 = vsel %vm1972, %v2054, %v2053
      %v2056 = vsub.s32 4, %v2032
      %v2057 = vsel %vm1972, %v2056, %v2032
      %v2058 = vsel %vm1971, %v409, %v2055
      %v2059 = vsel %vm1971, 0, %v2057
      %v2060 = vcosq.f32.pop %v2058
      %v2061 = vsinq.f32.pop %v2058
      %vm2062 = vweird.f32 %v409
      %v2063 = vadd.s32 %v2059, 3
      %v2064 = vand.u32 %v2063, 3
      %vm2065 = vcmp.lt.s32.totalorder %v2064, 2
      %vm2066 = vcmp.eq.s32.totalorder %v2064, 0
      %v2067 = vxor.u32 %v2061, 2147483648
      %v2068 = vsel %vm2066, %v2060, %v2067
      %vm2069 = vcmp.eq.s32.totalorder %v2064, 2
      %v2070 = vxor.u32 %v2060, 2147483648
      %v2071 = vsel %vm2069, %v2070, %v2061
      %v2072 = vsel %vm2065, %v2068, %v2071
      %v2073 = vsel %vm2062, nan, %v2072
      %vm2074 = vcmask 162816
      %2075 = vst.msk [vmem:[%s145] sm:$0xff] %vm2074, %v513
      %2076 = vst.msk [vmem:[%s145 + $0x8] sm:$0xff] %vm2074, %v617
      %2077 = vst.msk [vmem:[%s145 + $0x10] sm:$0xff] %vm2074, %v721
      %2078 = vst.msk [vmem:[%s145 + $0x18] sm:$0xff] %vm2074, %v825
      %2079 = vst.msk [vmem:[%s145 + $0x20] sm:$0xff] %vm2074, %v929
      %2080 = vst.msk [vmem:[%s145 + $0x28] sm:$0xff] %vm2074, %v1033
      %2081 = vst.msk [vmem:[%s145 + $0x30] sm:$0xff] %vm2074, %v1137
      %2082 = vst.msk [vmem:[%s145 + $0x38] sm:$0xff] %vm2074, %v1241
      %2083 = vst.msk [vmem:[%s145 + $0x40] sm:$0xff] %vm2074, %v1345
      %2084 = vst.msk [vmem:[%s145 + $0x48] sm:$0xff] %vm2074, %v1449
      %2085 = vst.msk [vmem:[%s145 + $0x50] sm:$0xff] %vm2074, %v1553
      %2086 = vst.msk [vmem:[%s145 + $0x58] sm:$0xff] %vm2074, %v1657
      %2087 = vst.msk [vmem:[%s145 + $0x60] sm:$0xff] %vm2074, %v1761
      %2088 = vst.msk [vmem:[%s145 + $0x68] sm:$0xff] %vm2074, %v1865
      %2089 = vst.msk [vmem:[%s145 + $0x70] sm:$0xff] %vm2074, %v1969
      %2090 = vst.msk [vmem:[%s145 + $0x78] sm:$0xff] %vm2074, %v2073
      %v2091 = vand.u32 2147483647, %v394
      %vm2092 = vcmp.le.f32.partialorder %v2091, 0.7853982
      %vm2093 = vcmp.lt.s32.totalorder %v394, 0
      %v2094 = vand.u32 %v394, 2139095040
      %v2095 = vshrl.u32 %v2094, 23
      %v2096 = vsub.s32 %v2095, 127
      %v2097 = vand.u32 2147483647, %v394
      %v2098 = vand.u32 %v2097, 8388607
      %v2099 = vor.u32 %v2098, 8388608
      %v2100 = vsub.s32 0, %v2099
      %v2101 = vadd.s32 %v2096, 1
      %vm2102 = vcmp.gt.s32.totalorder %v2101, 0
      %v2103 = vsel %vm2102, %v2101, 0
      %v2104 = vshrl.u32 %v2103, 5
      %v2105 = vand.u32 %v2103, 31
      %v2106 = vsub.s32 32, %v2105
      %v2107 = vshrl.u32 683565275, %v2106
      %v2108 = vshll.u32 683565275, %v2105
      %v2109 = vshrl.u32 2475754826, %v2106
      %v2110 = vor.u32 %v2108, %v2109
      %v2111 = vshll.u32 2475754826, %v2105
      %v2112 = vshrl.u32 2131351028, %v2106
      %v2113 = vor.u32 %v2111, %v2112
      %v2114 = vshll.u32 2131351028, %v2105
      %v2115 = vshrl.u32 2102212464, %v2106
      %v2116 = vor.u32 %v2114, %v2115
      %v2117 = vshll.u32 2102212464, %v2105
      %v2118 = vshrl.u32 920167782, %v2106
      %v2119 = vor.u32 %v2117, %v2118
      %v2120 = vshll.u32 920167782, %v2105
      %v2121 = vshrl.u32 1326507024, %v2106
      %v2122 = vor.u32 %v2120, %v2121
      %vm2123 = vcmp.lt.s32.totalorder %v2104, 1
      %vm2124 = vcmp.lt.s32.totalorder %v2104, 2
      %vm2125 = vcmp.lt.s32.totalorder %v2104, 3
      %vm2126 = vcmp.lt.s32.totalorder %v2104, 4
      %v2127 = vsel %vm2123, %v2107, %v2110
      %v2128 = vsel %vm2126, %v2116, 2102212464
      %v2129 = vsel %vm2125, %v2113, %v2128
      %v2130 = vsel %vm2124, %v2127, %v2129
      %v2131 = vsel %vm2123, %v2110, %v2113
      %v2132 = vsel %vm2126, %v2119, 920167782
      %v2133 = vsel %vm2125, %v2116, %v2132
      %v2134 = vsel %vm2124, %v2131, %v2133
      %v2135 = vsel %vm2123, %v2113, %v2116
      %v2136 = vsel %vm2126, %v2122, 1326507024
      %v2137 = vsel %vm2125, %v2119, %v2136
      %v2138 = vsel %vm2124, %v2135, %v2137
      %v2139 = vshll.u32 %v2099, 8
      %v2140 = vmul.u32.u64.compose %v2139, %v2138
      %v2141 = vextract.low.u32 %v2140
      %v2142 = vextract.high.u32 %v2140
      %v2143 = vmul.u32.u64.compose %v2139, %v2134
      %v2144 = vextract.low.u32 %v2143
      %v2145 = vextract.high.u32 %v2143
      %v2146 = vmul.u32 %v2139, %v2130
      %v2147 = vadd.s32 %v2142, %v2144
      %vm2148 = vc.u32 %v2142, %v2144
      %v2149 = vadd.s32 %v2145, 1
      %v2150 = vsel %vm2148, %v2149, %v2145
      %v2151 = vadd.s32 %v2146, %v2150
      %v2152 = vadd.s32 %v2151, 536870912
      %v2153 = vshrl.u32 %v2152, 30
      %v2154 = vshll.u32 %v2153, 30
      %v2155 = vsub.s32 %v2151, %v2154
      %vm2156 = vcmp.lt.s32.totalorder %v2155, 0
      %v2157 = vsub.s32 0, %v2155
      %v2158 = vsel %vm2156, %v2157, %v2155
      %v2159 = vclz %v2158
      %v2160 = vsub.s32 %v2159, 2
      %vm2161 = vcmp.gt.s32.totalorder 0, %v2160
      %v2162 = vsel %vm2161, 0, %v2160
      %v2163 = vsub.s32 32, %v2162
      %v2164 = vshll.u32 %v2155, %v2162
      %v2165 = vshrl.u32 %v2147, %v2163
      %v2166 = vor.u32 %v2164, %v2165
      %v2167 = vsub.s32 4294967266, %v2162
      %v2168 = vadd.s32 %v2167, 127
      %v2169 = vshll.u32 %v2168, 23
      %v2170 = vor.u32 4788187, %v2169
      %v2171 = vand.u32 2147483647, %v2170
      %v2173 = vcvt.s32.f32 %v2166
      %v2174 = vmul.f32 %v2173, %v2171
      %v2175 = vxor.u32 %v2174, 2147483648
      %v2176 = vsel %vm2093, %v2175, %v2174
      %v2177 = vsub.s32 4, %v2153
      %v2178 = vsel %vm2093, %v2177, %v2153
      %v2179 = vsel %vm2092, %v394, %v2176
      %v2180 = vsel %vm2092, 0, %v2178
      %v2181 = vcosq.f32.pop %v2179
      %v2182 = vsinq.f32.pop %v2179
      %vm2183 = vweird.f32 %v394
      %v2184 = vand.u32 %v2180, 3
      %vm2185 = vcmp.lt.s32.totalorder %v2184, 2
      %vm2186 = vcmp.eq.s32.totalorder %v2184, 0
      %v2187 = vxor.u32 %v2182, 2147483648
      %v2188 = vsel %vm2186, %v2181, %v2187
      %vm2189 = vcmp.eq.s32.totalorder %v2184, 2
      %v2190 = vxor.u32 %v2181, 2147483648
      %v2191 = vsel %vm2189, %v2190, %v2182
      %v2192 = vsel %vm2185, %v2188, %v2191
      %v2193 = vsel %vm2183, nan, %v2192
      %v2194 = vand.u32 2147483647, %v395
      %vm2195 = vcmp.le.f32.partialorder %v2194, 0.7853982
      %vm2196 = vcmp.lt.s32.totalorder %v395, 0
      %v2197 = vand.u32 %v395, 2139095040
      %v2198 = vshrl.u32 %v2197, 23
      %v2199 = vsub.s32 %v2198, 127
      %v2200 = vand.u32 2147483647, %v395
      %v2201 = vand.u32 %v2200, 8388607
      %v2202 = vor.u32 %v2201, 8388608
      %v2203 = vsub.s32 0, %v2202
      %v2204 = vadd.s32 %v2199, 1
      %vm2205 = vcmp.gt.s32.totalorder %v2204, 0
      %v2206 = vsel %vm2205, %v2204, 0
      %v2207 = vshrl.u32 %v2206, 5
      %v2208 = vand.u32 %v2206, 31
      %v2209 = vsub.s32 32, %v2208
      %v2210 = vshrl.u32 683565275, %v2209
      %v2211 = vshll.u32 683565275, %v2208
      %v2212 = vshrl.u32 2475754826, %v2209
      %v2213 = vor.u32 %v2211, %v2212
      %v2214 = vshll.u32 2475754826, %v2208
      %v2215 = vshrl.u32 2131351028, %v2209
      %v2216 = vor.u32 %v2214, %v2215
      %v2217 = vshll.u32 2131351028, %v2208
      %v2218 = vshrl.u32 2102212464, %v2209
      %v2219 = vor.u32 %v2217, %v2218
      %v2220 = vshll.u32 2102212464, %v2208
      %v2221 = vshrl.u32 920167782, %v2209
      %v2222 = vor.u32 %v2220, %v2221
      %v2223 = vshll.u32 920167782, %v2208
      %v2224 = vshrl.u32 1326507024, %v2209
      %v2225 = vor.u32 %v2223, %v2224
      %vm2226 = vcmp.lt.s32.totalorder %v2207, 1
      %vm2227 = vcmp.lt.s32.totalorder %v2207, 2
      %vm2228 = vcmp.lt.s32.totalorder %v2207, 3
      %vm2229 = vcmp.lt.s32.totalorder %v2207, 4
      %v2230 = vsel %vm2226, %v2210, %v2213
      %v2231 = vsel %vm2229, %v2219, 2102212464
      %v2232 = vsel %vm2228, %v2216, %v2231
      %v2233 = vsel %vm2227, %v2230, %v2232
      %v2234 = vsel %vm2226, %v2213, %v2216
      %v2235 = vsel %vm2229, %v2222, 920167782
      %v2236 = vsel %vm2228, %v2219, %v2235
      %v2237 = vsel %vm2227, %v2234, %v2236
      %v2238 = vsel %vm2226, %v2216, %v2219
      %v2239 = vsel %vm2229, %v2225, 1326507024
      %v2240 = vsel %vm2228, %v2222, %v2239
      %v2241 = vsel %vm2227, %v2238, %v2240
      %v2242 = vshll.u32 %v2202, 8
      %v2243 = vmul.u32.u64.compose %v2242, %v2241
      %v2244 = vextract.low.u32 %v2243
      %v2245 = vextract.high.u32 %v2243
      %v2246 = vmul.u32.u64.compose %v2242, %v2237
      %v2247 = vextract.low.u32 %v2246
      %v2248 = vextract.high.u32 %v2246
      %v2249 = vmul.u32 %v2242, %v2233
      %v2250 = vadd.s32 %v2245, %v2247
      %vm2251 = vc.u32 %v2245, %v2247
      %v2252 = vadd.s32 %v2248, 1
      %v2253 = vsel %vm2251, %v2252, %v2248
      %v2254 = vadd.s32 %v2249, %v2253
      %v2255 = vadd.s32 %v2254, 536870912
      %v2256 = vshrl.u32 %v2255, 30
      %v2257 = vshll.u32 %v2256, 30
      %v2258 = vsub.s32 %v2254, %v2257
      %vm2259 = vcmp.lt.s32.totalorder %v2258, 0
      %v2260 = vsub.s32 0, %v2258
      %v2261 = vsel %vm2259, %v2260, %v2258
      %v2262 = vclz %v2261
      %v2263 = vsub.s32 %v2262, 2
      %vm2264 = vcmp.gt.s32.totalorder 0, %v2263
      %v2265 = vsel %vm2264, 0, %v2263
      %v2266 = vsub.s32 32, %v2265
      %v2267 = vshll.u32 %v2258, %v2265
      %v2268 = vshrl.u32 %v2250, %v2266
      %v2269 = vor.u32 %v2267, %v2268
      %v2270 = vsub.s32 4294967266, %v2265
      %v2271 = vadd.s32 %v2270, 127
      %v2272 = vshll.u32 %v2271, 23
      %v2273 = vor.u32 4788187, %v2272
      %v2274 = vand.u32 2147483647, %v2273
      %v2276 = vcvt.s32.f32 %v2269
      %v2277 = vmul.f32 %v2276, %v2274
      %v2278 = vxor.u32 %v2277, 2147483648
      %v2279 = vsel %vm2196, %v2278, %v2277
      %v2280 = vsub.s32 4, %v2256
      %v2281 = vsel %vm2196, %v2280, %v2256
      %v2282 = vsel %vm2195, %v395, %v2279
      %v2283 = vsel %vm2195, 0, %v2281
      %v2284 = vcosq.f32.pop %v2282
      %v2285 = vsinq.f32.pop %v2282
      %vm2286 = vweird.f32 %v395
      %v2287 = vand.u32 %v2283, 3
      %vm2288 = vcmp.lt.s32.totalorder %v2287, 2
      %vm2289 = vcmp.eq.s32.totalorder %v2287, 0
      %v2290 = vxor.u32 %v2285, 2147483648
      %v2291 = vsel %vm2289, %v2284, %v2290
      %vm2292 = vcmp.eq.s32.totalorder %v2287, 2
      %v2293 = vxor.u32 %v2284, 2147483648
      %v2294 = vsel %vm2292, %v2293, %v2285
      %v2295 = vsel %vm2288, %v2291, %v2294
      %v2296 = vsel %vm2286, nan, %v2295
      %v2297 = vand.u32 2147483647, %v396
      %vm2298 = vcmp.le.f32.partialorder %v2297, 0.7853982
      %vm2299 = vcmp.lt.s32.totalorder %v396, 0
      %v2300 = vand.u32 %v396, 2139095040
      %v2301 = vshrl.u32 %v2300, 23
      %v2302 = vsub.s32 %v2301, 127
      %v2303 = vand.u32 2147483647, %v396
      %v2304 = vand.u32 %v2303, 8388607
      %v2305 = vor.u32 %v2304, 8388608
      %v2306 = vsub.s32 0, %v2305
      %v2307 = vadd.s32 %v2302, 1
      %vm2308 = vcmp.gt.s32.totalorder %v2307, 0
      %v2309 = vsel %vm2308, %v2307, 0
      %v2310 = vshrl.u32 %v2309, 5
      %v2311 = vand.u32 %v2309, 31
      %v2312 = vsub.s32 32, %v2311
      %v2313 = vshrl.u32 683565275, %v2312
      %v2314 = vshll.u32 683565275, %v2311
      %v2315 = vshrl.u32 2475754826, %v2312
      %v2316 = vor.u32 %v2314, %v2315
      %v2317 = vshll.u32 2475754826, %v2311
      %v2318 = vshrl.u32 2131351028, %v2312
      %v2319 = vor.u32 %v2317, %v2318
      %v2320 = vshll.u32 2131351028, %v2311
      %v2321 = vshrl.u32 2102212464, %v2312
      %v2322 = vor.u32 %v2320, %v2321
      %v2323 = vshll.u32 2102212464, %v2311
      %v2324 = vshrl.u32 920167782, %v2312
      %v2325 = vor.u32 %v2323, %v2324
      %v2326 = vshll.u32 920167782, %v2311
      %v2327 = vshrl.u32 1326507024, %v2312
      %v2328 = vor.u32 %v2326, %v2327
      %vm2329 = vcmp.lt.s32.totalorder %v2310, 1
      %vm2330 = vcmp.lt.s32.totalorder %v2310, 2
      %vm2331 = vcmp.lt.s32.totalorder %v2310, 3
      %vm2332 = vcmp.lt.s32.totalorder %v2310, 4
      %v2333 = vsel %vm2329, %v2313, %v2316
      %v2334 = vsel %vm2332, %v2322, 2102212464
      %v2335 = vsel %vm2331, %v2319, %v2334
      %v2336 = vsel %vm2330, %v2333, %v2335
      %v2337 = vsel %vm2329, %v2316, %v2319
      %v2338 = vsel %vm2332, %v2325, 920167782
      %v2339 = vsel %vm2331, %v2322, %v2338
      %v2340 = vsel %vm2330, %v2337, %v2339
      %v2341 = vsel %vm2329, %v2319, %v2322
      %v2342 = vsel %vm2332, %v2328, 1326507024
      %v2343 = vsel %vm2331, %v2325, %v2342
      %v2344 = vsel %vm2330, %v2341, %v2343
      %v2345 = vshll.u32 %v2305, 8
      %v2346 = vmul.u32.u64.compose %v2345, %v2344
      %v2347 = vextract.low.u32 %v2346
      %v2348 = vextract.high.u32 %v2346
      %v2349 = vmul.u32.u64.compose %v2345, %v2340
      %v2350 = vextract.low.u32 %v2349
      %v2351 = vextract.high.u32 %v2349
      %v2352 = vmul.u32 %v2345, %v2336
      %v2353 = vadd.s32 %v2348, %v2350
      %vm2354 = vc.u32 %v2348, %v2350
      %v2355 = vadd.s32 %v2351, 1
      %v2356 = vsel %vm2354, %v2355, %v2351
      %v2357 = vadd.s32 %v2352, %v2356
      %v2358 = vadd.s32 %v2357, 536870912
      %v2359 = vshrl.u32 %v2358, 30
      %v2360 = vshll.u32 %v2359, 30
      %v2361 = vsub.s32 %v2357, %v2360
      %vm2362 = vcmp.lt.s32.totalorder %v2361, 0
      %v2363 = vsub.s32 0, %v2361
      %v2364 = vsel %vm2362, %v2363, %v2361
      %v2365 = vclz %v2364
      %v2366 = vsub.s32 %v2365, 2
      %vm2367 = vcmp.gt.s32.totalorder 0, %v2366
      %v2368 = vsel %vm2367, 0, %v2366
      %v2369 = vsub.s32 32, %v2368
      %v2370 = vshll.u32 %v2361, %v2368
      %v2371 = vshrl.u32 %v2353, %v2369
      %v2372 = vor.u32 %v2370, %v2371
      %v2373 = vsub.s32 4294967266, %v2368
      %v2374 = vadd.s32 %v2373, 127
      %v2375 = vshll.u32 %v2374, 23
      %v2376 = vor.u32 4788187, %v2375
      %v2377 = vand.u32 2147483647, %v2376
      %v2379 = vcvt.s32.f32 %v2372
      %v2380 = vmul.f32 %v2379, %v2377
      %v2381 = vxor.u32 %v2380, 2147483648
      %v2382 = vsel %vm2299, %v2381, %v2380
      %v2383 = vsub.s32 4, %v2359
      %v2384 = vsel %vm2299, %v2383, %v2359
      %v2385 = vsel %vm2298, %v396, %v2382
      %v2386 = vsel %vm2298, 0, %v2384
      %v2387 = vcosq.f32.pop %v2385
      %v2388 = vsinq.f32.pop %v2385
      %vm2389 = vweird.f32 %v396
      %v2390 = vand.u32 %v2386, 3
      %vm2391 = vcmp.lt.s32.totalorder %v2390, 2
      %vm2392 = vcmp.eq.s32.totalorder %v2390, 0
      %v2393 = vxor.u32 %v2388, 2147483648
      %v2394 = vsel %vm2392, %v2387, %v2393
      %vm2395 = vcmp.eq.s32.totalorder %v2390, 2
      %v2396 = vxor.u32 %v2387, 2147483648
      %v2397 = vsel %vm2395, %v2396, %v2388
      %v2398 = vsel %vm2391, %v2394, %v2397
      %v2399 = vsel %vm2389, nan, %v2398
      %v2400 = vand.u32 2147483647, %v397
      %vm2401 = vcmp.le.f32.partialorder %v2400, 0.7853982
      %vm2402 = vcmp.lt.s32.totalorder %v397, 0
      %v2403 = vand.u32 %v397, 2139095040
      %v2404 = vshrl.u32 %v2403, 23
      %v2405 = vsub.s32 %v2404, 127
      %v2406 = vand.u32 2147483647, %v397
      %v2407 = vand.u32 %v2406, 8388607
      %v2408 = vor.u32 %v2407, 8388608
      %v2409 = vsub.s32 0, %v2408
      %v2410 = vadd.s32 %v2405, 1
      %vm2411 = vcmp.gt.s32.totalorder %v2410, 0
      %v2412 = vsel %vm2411, %v2410, 0
      %v2413 = vshrl.u32 %v2412, 5
      %v2414 = vand.u32 %v2412, 31
      %v2415 = vsub.s32 32, %v2414
      %v2416 = vshrl.u32 683565275, %v2415
      %v2417 = vshll.u32 683565275, %v2414
      %v2418 = vshrl.u32 2475754826, %v2415
      %v2419 = vor.u32 %v2417, %v2418
      %v2420 = vshll.u32 2475754826, %v2414
      %v2421 = vshrl.u32 2131351028, %v2415
      %v2422 = vor.u32 %v2420, %v2421
      %v2423 = vshll.u32 2131351028, %v2414
      %v2424 = vshrl.u32 2102212464, %v2415
      %v2425 = vor.u32 %v2423, %v2424
      %v2426 = vshll.u32 2102212464, %v2414
      %v2427 = vshrl.u32 920167782, %v2415
      %v2428 = vor.u32 %v2426, %v2427
      %v2429 = vshll.u32 920167782, %v2414
      %v2430 = vshrl.u32 1326507024, %v2415
      %v2431 = vor.u32 %v2429, %v2430
      %vm2432 = vcmp.lt.s32.totalorder %v2413, 1
      %vm2433 = vcmp.lt.s32.totalorder %v2413, 2
      %vm2434 = vcmp.lt.s32.totalorder %v2413, 3
      %vm2435 = vcmp.lt.s32.totalorder %v2413, 4
      %v2436 = vsel %vm2432, %v2416, %v2419
      %v2437 = vsel %vm2435, %v2425, 2102212464
      %v2438 = vsel %vm2434, %v2422, %v2437
      %v2439 = vsel %vm2433, %v2436, %v2438
      %v2440 = vsel %vm2432, %v2419, %v2422
      %v2441 = vsel %vm2435, %v2428, 920167782
      %v2442 = vsel %vm2434, %v2425, %v2441
      %v2443 = vsel %vm2433, %v2440, %v2442
      %v2444 = vsel %vm2432, %v2422, %v2425
      %v2445 = vsel %vm2435, %v2431, 1326507024
      %v2446 = vsel %vm2434, %v2428, %v2445
      %v2447 = vsel %vm2433, %v2444, %v2446
      %v2448 = vshll.u32 %v2408, 8
      %v2449 = vmul.u32.u64.compose %v2448, %v2447
      %v2450 = vextract.low.u32 %v2449
      %v2451 = vextract.high.u32 %v2449
      %v2452 = vmul.u32.u64.compose %v2448, %v2443
      %v2453 = vextract.low.u32 %v2452
      %v2454 = vextract.high.u32 %v2452
      %v2455 = vmul.u32 %v2448, %v2439
      %v2456 = vadd.s32 %v2451, %v2453
      %vm2457 = vc.u32 %v2451, %v2453
      %v2458 = vadd.s32 %v2454, 1
      %v2459 = vsel %vm2457, %v2458, %v2454
      %v2460 = vadd.s32 %v2455, %v2459
      %v2461 = vadd.s32 %v2460, 536870912
      %v2462 = vshrl.u32 %v2461, 30
      %v2463 = vshll.u32 %v2462, 30
      %v2464 = vsub.s32 %v2460, %v2463
      %vm2465 = vcmp.lt.s32.totalorder %v2464, 0
      %v2466 = vsub.s32 0, %v2464
      %v2467 = vsel %vm2465, %v2466, %v2464
      %v2468 = vclz %v2467
      %v2469 = vsub.s32 %v2468, 2
      %vm2470 = vcmp.gt.s32.totalorder 0, %v2469
      %v2471 = vsel %vm2470, 0, %v2469
      %v2472 = vsub.s32 32, %v2471
      %v2473 = vshll.u32 %v2464, %v2471
      %v2474 = vshrl.u32 %v2456, %v2472
      %v2475 = vor.u32 %v2473, %v2474
      %v2476 = vsub.s32 4294967266, %v2471
      %v2477 = vadd.s32 %v2476, 127
      %v2478 = vshll.u32 %v2477, 23
      %v2479 = vor.u32 4788187, %v2478
      %v2480 = vand.u32 2147483647, %v2479
      %v2482 = vcvt.s32.f32 %v2475
      %v2483 = vmul.f32 %v2482, %v2480
      %v2484 = vxor.u32 %v2483, 2147483648
      %v2485 = vsel %vm2402, %v2484, %v2483
      %v2486 = vsub.s32 4, %v2462
      %v2487 = vsel %vm2402, %v2486, %v2462
      %v2488 = vsel %vm2401, %v397, %v2485
      %v2489 = vsel %vm2401, 0, %v2487
      %v2490 = vcosq.f32.pop %v2488
      %v2491 = vsinq.f32.pop %v2488
      %vm2492 = vweird.f32 %v397
      %v2493 = vand.u32 %v2489, 3
      %vm2494 = vcmp.lt.s32.totalorder %v2493, 2
      %vm2495 = vcmp.eq.s32.totalorder %v2493, 0
      %v2496 = vxor.u32 %v2491, 2147483648
      %v2497 = vsel %vm2495, %v2490, %v2496
      %vm2498 = vcmp.eq.s32.totalorder %v2493, 2
      %v2499 = vxor.u32 %v2490, 2147483648
      %v2500 = vsel %vm2498, %v2499, %v2491
      %v2501 = vsel %vm2494, %v2497, %v2500
      %v2502 = vsel %vm2492, nan, %v2501
      %v2503 = vand.u32 2147483647, %v398
      %vm2504 = vcmp.le.f32.partialorder %v2503, 0.7853982
      %vm2505 = vcmp.lt.s32.totalorder %v398, 0
      %v2506 = vand.u32 %v398, 2139095040
      %v2507 = vshrl.u32 %v2506, 23
      %v2508 = vsub.s32 %v2507, 127
      %v2509 = vand.u32 2147483647, %v398
      %v2510 = vand.u32 %v2509, 8388607
      %v2511 = vor.u32 %v2510, 8388608
      %v2512 = vsub.s32 0, %v2511
      %v2513 = vadd.s32 %v2508, 1
      %vm2514 = vcmp.gt.s32.totalorder %v2513, 0
      %v2515 = vsel %vm2514, %v2513, 0
      %v2516 = vshrl.u32 %v2515, 5
      %v2517 = vand.u32 %v2515, 31
      %v2518 = vsub.s32 32, %v2517
      %v2519 = vshrl.u32 683565275, %v2518
      %v2520 = vshll.u32 683565275, %v2517
      %v2521 = vshrl.u32 2475754826, %v2518
      %v2522 = vor.u32 %v2520, %v2521
      %v2523 = vshll.u32 2475754826, %v2517
      %v2524 = vshrl.u32 2131351028, %v2518
      %v2525 = vor.u32 %v2523, %v2524
      %v2526 = vshll.u32 2131351028, %v2517
      %v2527 = vshrl.u32 2102212464, %v2518
      %v2528 = vor.u32 %v2526, %v2527
      %v2529 = vshll.u32 2102212464, %v2517
      %v2530 = vshrl.u32 920167782, %v2518
      %v2531 = vor.u32 %v2529, %v2530
      %v2532 = vshll.u32 920167782, %v2517
      %v2533 = vshrl.u32 1326507024, %v2518
      %v2534 = vor.u32 %v2532, %v2533
      %vm2535 = vcmp.lt.s32.totalorder %v2516, 1
      %vm2536 = vcmp.lt.s32.totalorder %v2516, 2
      %vm2537 = vcmp.lt.s32.totalorder %v2516, 3
      %vm2538 = vcmp.lt.s32.totalorder %v2516, 4
      %v2539 = vsel %vm2535, %v2519, %v2522
      %v2540 = vsel %vm2538, %v2528, 2102212464
      %v2541 = vsel %vm2537, %v2525, %v2540
      %v2542 = vsel %vm2536, %v2539, %v2541
      %v2543 = vsel %vm2535, %v2522, %v2525
      %v2544 = vsel %vm2538, %v2531, 920167782
      %v2545 = vsel %vm2537, %v2528, %v2544
      %v2546 = vsel %vm2536, %v2543, %v2545
      %v2547 = vsel %vm2535, %v2525, %v2528
      %v2548 = vsel %vm2538, %v2534, 1326507024
      %v2549 = vsel %vm2537, %v2531, %v2548
      %v2550 = vsel %vm2536, %v2547, %v2549
      %v2551 = vshll.u32 %v2511, 8
      %v2552 = vmul.u32.u64.compose %v2551, %v2550
      %v2553 = vextract.low.u32 %v2552
      %v2554 = vextract.high.u32 %v2552
      %v2555 = vmul.u32.u64.compose %v2551, %v2546
      %v2556 = vextract.low.u32 %v2555
      %v2557 = vextract.high.u32 %v2555
      %v2558 = vmul.u32 %v2551, %v2542
      %v2559 = vadd.s32 %v2554, %v2556
      %vm2560 = vc.u32 %v2554, %v2556
      %v2561 = vadd.s32 %v2557, 1
      %v2562 = vsel %vm2560, %v2561, %v2557
      %v2563 = vadd.s32 %v2558, %v2562
      %v2564 = vadd.s32 %v2563, 536870912
      %v2565 = vshrl.u32 %v2564, 30
      %v2566 = vshll.u32 %v2565, 30
      %v2567 = vsub.s32 %v2563, %v2566
      %vm2568 = vcmp.lt.s32.totalorder %v2567, 0
      %v2569 = vsub.s32 0, %v2567
      %v2570 = vsel %vm2568, %v2569, %v2567
      %v2571 = vclz %v2570
      %v2572 = vsub.s32 %v2571, 2
      %vm2573 = vcmp.gt.s32.totalorder 0, %v2572
      %v2574 = vsel %vm2573, 0, %v2572
      %v2575 = vsub.s32 32, %v2574
      %v2576 = vshll.u32 %v2567, %v2574
      %v2577 = vshrl.u32 %v2559, %v2575
      %v2578 = vor.u32 %v2576, %v2577
      %v2579 = vsub.s32 4294967266, %v2574
      %v2580 = vadd.s32 %v2579, 127
      %v2581 = vshll.u32 %v2580, 23
      %v2582 = vor.u32 4788187, %v2581
      %v2583 = vand.u32 2147483647, %v2582
      %v2585 = vcvt.s32.f32 %v2578
      %v2586 = vmul.f32 %v2585, %v2583
      %v2587 = vxor.u32 %v2586, 2147483648
      %v2588 = vsel %vm2505, %v2587, %v2586
      %v2589 = vsub.s32 4, %v2565
      %v2590 = vsel %vm2505, %v2589, %v2565
      %v2591 = vsel %vm2504, %v398, %v2588
      %v2592 = vsel %vm2504, 0, %v2590
      %v2593 = vcosq.f32.pop %v2591
      %v2594 = vsinq.f32.pop %v2591
      %vm2595 = vweird.f32 %v398
      %v2596 = vand.u32 %v2592, 3
      %vm2597 = vcmp.lt.s32.totalorder %v2596, 2
      %vm2598 = vcmp.eq.s32.totalorder %v2596, 0
      %v2599 = vxor.u32 %v2594, 2147483648
      %v2600 = vsel %vm2598, %v2593, %v2599
      %vm2601 = vcmp.eq.s32.totalorder %v2596, 2
      %v2602 = vxor.u32 %v2593, 2147483648
      %v2603 = vsel %vm2601, %v2602, %v2594
      %v2604 = vsel %vm2597, %v2600, %v2603
      %v2605 = vsel %vm2595, nan, %v2604
      %v2606 = vand.u32 2147483647, %v399
      %vm2607 = vcmp.le.f32.partialorder %v2606, 0.7853982
      %vm2608 = vcmp.lt.s32.totalorder %v399, 0
      %v2609 = vand.u32 %v399, 2139095040
      %v2610 = vshrl.u32 %v2609, 23
      %v2611 = vsub.s32 %v2610, 127
      %v2612 = vand.u32 2147483647, %v399
      %v2613 = vand.u32 %v2612, 8388607
      %v2614 = vor.u32 %v2613, 8388608
      %v2615 = vsub.s32 0, %v2614
      %v2616 = vadd.s32 %v2611, 1
      %vm2617 = vcmp.gt.s32.totalorder %v2616, 0
      %v2618 = vsel %vm2617, %v2616, 0
      %v2619 = vshrl.u32 %v2618, 5
      %v2620 = vand.u32 %v2618, 31
      %v2621 = vsub.s32 32, %v2620
      %v2622 = vshrl.u32 683565275, %v2621
      %v2623 = vshll.u32 683565275, %v2620
      %v2624 = vshrl.u32 2475754826, %v2621
      %v2625 = vor.u32 %v2623, %v2624
      %v2626 = vshll.u32 2475754826, %v2620
      %v2627 = vshrl.u32 2131351028, %v2621
      %v2628 = vor.u32 %v2626, %v2627
      %v2629 = vshll.u32 2131351028, %v2620
      %v2630 = vshrl.u32 2102212464, %v2621
      %v2631 = vor.u32 %v2629, %v2630
      %v2632 = vshll.u32 2102212464, %v2620
      %v2633 = vshrl.u32 920167782, %v2621
      %v2634 = vor.u32 %v2632, %v2633
      %v2635 = vshll.u32 920167782, %v2620
      %v2636 = vshrl.u32 1326507024, %v2621
      %v2637 = vor.u32 %v2635, %v2636
      %vm2638 = vcmp.lt.s32.totalorder %v2619, 1
      %vm2639 = vcmp.lt.s32.totalorder %v2619, 2
      %vm2640 = vcmp.lt.s32.totalorder %v2619, 3
      %vm2641 = vcmp.lt.s32.totalorder %v2619, 4
      %v2642 = vsel %vm2638, %v2622, %v2625
      %v2643 = vsel %vm2641, %v2631, 2102212464
      %v2644 = vsel %vm2640, %v2628, %v2643
      %v2645 = vsel %vm2639, %v2642, %v2644
      %v2646 = vsel %vm2638, %v2625, %v2628
      %v2647 = vsel %vm2641, %v2634, 920167782
      %v2648 = vsel %vm2640, %v2631, %v2647
      %v2649 = vsel %vm2639, %v2646, %v2648
      %v2650 = vsel %vm2638, %v2628, %v2631
      %v2651 = vsel %vm2641, %v2637, 1326507024
      %v2652 = vsel %vm2640, %v2634, %v2651
      %v2653 = vsel %vm2639, %v2650, %v2652
      %v2654 = vshll.u32 %v2614, 8
      %v2655 = vmul.u32.u64.compose %v2654, %v2653
      %v2656 = vextract.low.u32 %v2655
      %v2657 = vextract.high.u32 %v2655
      %v2658 = vmul.u32.u64.compose %v2654, %v2649
      %v2659 = vextract.low.u32 %v2658
      %v2660 = vextract.high.u32 %v2658
      %v2661 = vmul.u32 %v2654, %v2645
      %v2662 = vadd.s32 %v2657, %v2659
      %vm2663 = vc.u32 %v2657, %v2659
      %v2664 = vadd.s32 %v2660, 1
      %v2665 = vsel %vm2663, %v2664, %v2660
      %v2666 = vadd.s32 %v2661, %v2665
      %v2667 = vadd.s32 %v2666, 536870912
      %v2668 = vshrl.u32 %v2667, 30
      %v2669 = vshll.u32 %v2668, 30
      %v2670 = vsub.s32 %v2666, %v2669
      %vm2671 = vcmp.lt.s32.totalorder %v2670, 0
      %v2672 = vsub.s32 0, %v2670
      %v2673 = vsel %vm2671, %v2672, %v2670
      %v2674 = vclz %v2673
      %v2675 = vsub.s32 %v2674, 2
      %vm2676 = vcmp.gt.s32.totalorder 0, %v2675
      %v2677 = vsel %vm2676, 0, %v2675
      %v2678 = vsub.s32 32, %v2677
      %v2679 = vshll.u32 %v2670, %v2677
      %v2680 = vshrl.u32 %v2662, %v2678
      %v2681 = vor.u32 %v2679, %v2680
      %v2682 = vsub.s32 4294967266, %v2677
      %v2683 = vadd.s32 %v2682, 127
      %v2684 = vshll.u32 %v2683, 23
      %v2685 = vor.u32 4788187, %v2684
      %v2686 = vand.u32 2147483647, %v2685
      %v2688 = vcvt.s32.f32 %v2681
      %v2689 = vmul.f32 %v2688, %v2686
      %v2690 = vxor.u32 %v2689, 2147483648
      %v2691 = vsel %vm2608, %v2690, %v2689
      %v2692 = vsub.s32 4, %v2668
      %v2693 = vsel %vm2608, %v2692, %v2668
      %v2694 = vsel %vm2607, %v399, %v2691
      %v2695 = vsel %vm2607, 0, %v2693
      %v2696 = vcosq.f32.pop %v2694
      %v2697 = vsinq.f32.pop %v2694
      %vm2698 = vweird.f32 %v399
      %v2699 = vand.u32 %v2695, 3
      %vm2700 = vcmp.lt.s32.totalorder %v2699, 2
      %vm2701 = vcmp.eq.s32.totalorder %v2699, 0
      %v2702 = vxor.u32 %v2697, 2147483648
      %v2703 = vsel %vm2701, %v2696, %v2702
      %vm2704 = vcmp.eq.s32.totalorder %v2699, 2
      %v2705 = vxor.u32 %v2696, 2147483648
      %v2706 = vsel %vm2704, %v2705, %v2697
      %v2707 = vsel %vm2700, %v2703, %v2706
      %v2708 = vsel %vm2698, nan, %v2707
      %v2709 = vand.u32 2147483647, %v400
      %vm2710 = vcmp.le.f32.partialorder %v2709, 0.7853982
      %vm2711 = vcmp.lt.s32.totalorder %v400, 0
      %v2712 = vand.u32 %v400, 2139095040
      %v2713 = vshrl.u32 %v2712, 23
      %v2714 = vsub.s32 %v2713, 127
      %v2715 = vand.u32 2147483647, %v400
      %v2716 = vand.u32 %v2715, 8388607
      %v2717 = vor.u32 %v2716, 8388608
      %v2718 = vsub.s32 0, %v2717
      %v2719 = vadd.s32 %v2714, 1
      %vm2720 = vcmp.gt.s32.totalorder %v2719, 0
      %v2721 = vsel %vm2720, %v2719, 0
      %v2722 = vshrl.u32 %v2721, 5
      %v2723 = vand.u32 %v2721, 31
      %v2724 = vsub.s32 32, %v2723
      %v2725 = vshrl.u32 683565275, %v2724
      %v2726 = vshll.u32 683565275, %v2723
      %v2727 = vshrl.u32 2475754826, %v2724
      %v2728 = vor.u32 %v2726, %v2727
      %v2729 = vshll.u32 2475754826, %v2723
      %v2730 = vshrl.u32 2131351028, %v2724
      %v2731 = vor.u32 %v2729, %v2730
      %v2732 = vshll.u32 2131351028, %v2723
      %v2733 = vshrl.u32 2102212464, %v2724
      %v2734 = vor.u32 %v2732, %v2733
      %v2735 = vshll.u32 2102212464, %v2723
      %v2736 = vshrl.u32 920167782, %v2724
      %v2737 = vor.u32 %v2735, %v2736
      %v2738 = vshll.u32 920167782, %v2723
      %v2739 = vshrl.u32 1326507024, %v2724
      %v2740 = vor.u32 %v2738, %v2739
      %vm2741 = vcmp.lt.s32.totalorder %v2722, 1
      %vm2742 = vcmp.lt.s32.totalorder %v2722, 2
      %vm2743 = vcmp.lt.s32.totalorder %v2722, 3
      %vm2744 = vcmp.lt.s32.totalorder %v2722, 4
      %v2745 = vsel %vm2741, %v2725, %v2728
      %v2746 = vsel %vm2744, %v2734, 2102212464
      %v2747 = vsel %vm2743, %v2731, %v2746
      %v2748 = vsel %vm2742, %v2745, %v2747
      %v2749 = vsel %vm2741, %v2728, %v2731
      %v2750 = vsel %vm2744, %v2737, 920167782
      %v2751 = vsel %vm2743, %v2734, %v2750
      %v2752 = vsel %vm2742, %v2749, %v2751
      %v2753 = vsel %vm2741, %v2731, %v2734
      %v2754 = vsel %vm2744, %v2740, 1326507024
      %v2755 = vsel %vm2743, %v2737, %v2754
      %v2756 = vsel %vm2742, %v2753, %v2755
      %v2757 = vshll.u32 %v2717, 8
      %v2758 = vmul.u32.u64.compose %v2757, %v2756
      %v2759 = vextract.low.u32 %v2758
      %v2760 = vextract.high.u32 %v2758
      %v2761 = vmul.u32.u64.compose %v2757, %v2752
      %v2762 = vextract.low.u32 %v2761
      %v2763 = vextract.high.u32 %v2761
      %v2764 = vmul.u32 %v2757, %v2748
      %v2765 = vadd.s32 %v2760, %v2762
      %vm2766 = vc.u32 %v2760, %v2762
      %v2767 = vadd.s32 %v2763, 1
      %v2768 = vsel %vm2766, %v2767, %v2763
      %v2769 = vadd.s32 %v2764, %v2768
      %v2770 = vadd.s32 %v2769, 536870912
      %v2771 = vshrl.u32 %v2770, 30
      %v2772 = vshll.u32 %v2771, 30
      %v2773 = vsub.s32 %v2769, %v2772
      %vm2774 = vcmp.lt.s32.totalorder %v2773, 0
      %v2775 = vsub.s32 0, %v2773
      %v2776 = vsel %vm2774, %v2775, %v2773
      %v2777 = vclz %v2776
      %v2778 = vsub.s32 %v2777, 2
      %vm2779 = vcmp.gt.s32.totalorder 0, %v2778
      %v2780 = vsel %vm2779, 0, %v2778
      %v2781 = vsub.s32 32, %v2780
      %v2782 = vshll.u32 %v2773, %v2780
      %v2783 = vshrl.u32 %v2765, %v2781
      %v2784 = vor.u32 %v2782, %v2783
      %v2785 = vsub.s32 4294967266, %v2780
      %v2786 = vadd.s32 %v2785, 127
      %v2787 = vshll.u32 %v2786, 23
      %v2788 = vor.u32 4788187, %v2787
      %v2789 = vand.u32 2147483647, %v2788
      %v2791 = vcvt.s32.f32 %v2784
      %v2792 = vmul.f32 %v2791, %v2789
      %v2793 = vxor.u32 %v2792, 2147483648
      %v2794 = vsel %vm2711, %v2793, %v2792
      %v2795 = vsub.s32 4, %v2771
      %v2796 = vsel %vm2711, %v2795, %v2771
      %v2797 = vsel %vm2710, %v400, %v2794
      %v2798 = vsel %vm2710, 0, %v2796
      %v2799 = vcosq.f32.pop %v2797
      %v2800 = vsinq.f32.pop %v2797
      %vm2801 = vweird.f32 %v400
      %v2802 = vand.u32 %v2798, 3
      %vm2803 = vcmp.lt.s32.totalorder %v2802, 2
      %vm2804 = vcmp.eq.s32.totalorder %v2802, 0
      %v2805 = vxor.u32 %v2800, 2147483648
      %v2806 = vsel %vm2804, %v2799, %v2805
      %vm2807 = vcmp.eq.s32.totalorder %v2802, 2
      %v2808 = vxor.u32 %v2799, 2147483648
      %v2809 = vsel %vm2807, %v2808, %v2800
      %v2810 = vsel %vm2803, %v2806, %v2809
      %v2811 = vsel %vm2801, nan, %v2810
      %v2812 = vand.u32 2147483647, %v401
      %vm2813 = vcmp.le.f32.partialorder %v2812, 0.7853982
      %vm2814 = vcmp.lt.s32.totalorder %v401, 0
      %v2815 = vand.u32 %v401, 2139095040
      %v2816 = vshrl.u32 %v2815, 23
      %v2817 = vsub.s32 %v2816, 127
      %v2818 = vand.u32 2147483647, %v401
      %v2819 = vand.u32 %v2818, 8388607
      %v2820 = vor.u32 %v2819, 8388608
      %v2821 = vsub.s32 0, %v2820
      %v2822 = vadd.s32 %v2817, 1
      %vm2823 = vcmp.gt.s32.totalorder %v2822, 0
      %v2824 = vsel %vm2823, %v2822, 0
      %v2825 = vshrl.u32 %v2824, 5
      %v2826 = vand.u32 %v2824, 31
      %v2827 = vsub.s32 32, %v2826
      %v2828 = vshrl.u32 683565275, %v2827
      %v2829 = vshll.u32 683565275, %v2826
      %v2830 = vshrl.u32 2475754826, %v2827
      %v2831 = vor.u32 %v2829, %v2830
      %v2832 = vshll.u32 2475754826, %v2826
      %v2833 = vshrl.u32 2131351028, %v2827
      %v2834 = vor.u32 %v2832, %v2833
      %v2835 = vshll.u32 2131351028, %v2826
      %v2836 = vshrl.u32 2102212464, %v2827
      %v2837 = vor.u32 %v2835, %v2836
      %v2838 = vshll.u32 2102212464, %v2826
      %v2839 = vshrl.u32 920167782, %v2827
      %v2840 = vor.u32 %v2838, %v2839
      %v2841 = vshll.u32 920167782, %v2826
      %v2842 = vshrl.u32 1326507024, %v2827
      %v2843 = vor.u32 %v2841, %v2842
      %vm2844 = vcmp.lt.s32.totalorder %v2825, 1
      %vm2845 = vcmp.lt.s32.totalorder %v2825, 2
      %vm2846 = vcmp.lt.s32.totalorder %v2825, 3
      %vm2847 = vcmp.lt.s32.totalorder %v2825, 4
      %v2848 = vsel %vm2844, %v2828, %v2831
      %v2849 = vsel %vm2847, %v2837, 2102212464
      %v2850 = vsel %vm2846, %v2834, %v2849
      %v2851 = vsel %vm2845, %v2848, %v2850
      %v2852 = vsel %vm2844, %v2831, %v2834
      %v2853 = vsel %vm2847, %v2840, 920167782
      %v2854 = vsel %vm2846, %v2837, %v2853
      %v2855 = vsel %vm2845, %v2852, %v2854
      %v2856 = vsel %vm2844, %v2834, %v2837
      %v2857 = vsel %vm2847, %v2843, 1326507024
      %v2858 = vsel %vm2846, %v2840, %v2857
      %v2859 = vsel %vm2845, %v2856, %v2858
      %v2860 = vshll.u32 %v2820, 8
      %v2861 = vmul.u32.u64.compose %v2860, %v2859
      %v2862 = vextract.low.u32 %v2861
      %v2863 = vextract.high.u32 %v2861
      %v2864 = vmul.u32.u64.compose %v2860, %v2855
      %v2865 = vextract.low.u32 %v2864
      %v2866 = vextract.high.u32 %v2864
      %v2867 = vmul.u32 %v2860, %v2851
      %v2868 = vadd.s32 %v2863, %v2865
      %vm2869 = vc.u32 %v2863, %v2865
      %v2870 = vadd.s32 %v2866, 1
      %v2871 = vsel %vm2869, %v2870, %v2866
      %v2872 = vadd.s32 %v2867, %v2871
      %v2873 = vadd.s32 %v2872, 536870912
      %v2874 = vshrl.u32 %v2873, 30
      %v2875 = vshll.u32 %v2874, 30
      %v2876 = vsub.s32 %v2872, %v2875
      %vm2877 = vcmp.lt.s32.totalorder %v2876, 0
      %v2878 = vsub.s32 0, %v2876
      %v2879 = vsel %vm2877, %v2878, %v2876
      %v2880 = vclz %v2879
      %v2881 = vsub.s32 %v2880, 2
      %vm2882 = vcmp.gt.s32.totalorder 0, %v2881
      %v2883 = vsel %vm2882, 0, %v2881
      %v2884 = vsub.s32 32, %v2883
      %v2885 = vshll.u32 %v2876, %v2883
      %v2886 = vshrl.u32 %v2868, %v2884
      %v2887 = vor.u32 %v2885, %v2886
      %v2888 = vsub.s32 4294967266, %v2883
      %v2889 = vadd.s32 %v2888, 127
      %v2890 = vshll.u32 %v2889, 23
      %v2891 = vor.u32 4788187, %v2890
      %v2892 = vand.u32 2147483647, %v2891
      %v2894 = vcvt.s32.f32 %v2887
      %v2895 = vmul.f32 %v2894, %v2892
      %v2896 = vxor.u32 %v2895, 2147483648
      %v2897 = vsel %vm2814, %v2896, %v2895
      %v2898 = vsub.s32 4, %v2874
      %v2899 = vsel %vm2814, %v2898, %v2874
      %v2900 = vsel %vm2813, %v401, %v2897
      %v2901 = vsel %vm2813, 0, %v2899
      %v2902 = vcosq.f32.pop %v2900
      %v2903 = vsinq.f32.pop %v2900
      %vm2904 = vweird.f32 %v401
      %v2905 = vand.u32 %v2901, 3
      %vm2906 = vcmp.lt.s32.totalorder %v2905, 2
      %vm2907 = vcmp.eq.s32.totalorder %v2905, 0
      %v2908 = vxor.u32 %v2903, 2147483648
      %v2909 = vsel %vm2907, %v2902, %v2908
      %vm2910 = vcmp.eq.s32.totalorder %v2905, 2
      %v2911 = vxor.u32 %v2902, 2147483648
      %v2912 = vsel %vm2910, %v2911, %v2903
      %v2913 = vsel %vm2906, %v2909, %v2912
      %v2914 = vsel %vm2904, nan, %v2913
      %v2915 = vand.u32 2147483647, %v402
      %vm2916 = vcmp.le.f32.partialorder %v2915, 0.7853982
      %vm2917 = vcmp.lt.s32.totalorder %v402, 0
      %v2918 = vand.u32 %v402, 2139095040
      %v2919 = vshrl.u32 %v2918, 23
      %v2920 = vsub.s32 %v2919, 127
      %v2921 = vand.u32 2147483647, %v402
      %v2922 = vand.u32 %v2921, 8388607
      %v2923 = vor.u32 %v2922, 8388608
      %v2924 = vsub.s32 0, %v2923
      %v2925 = vadd.s32 %v2920, 1
      %vm2926 = vcmp.gt.s32.totalorder %v2925, 0
      %v2927 = vsel %vm2926, %v2925, 0
      %v2928 = vshrl.u32 %v2927, 5
      %v2929 = vand.u32 %v2927, 31
      %v2930 = vsub.s32 32, %v2929
      %v2931 = vshrl.u32 683565275, %v2930
      %v2932 = vshll.u32 683565275, %v2929
      %v2933 = vshrl.u32 2475754826, %v2930
      %v2934 = vor.u32 %v2932, %v2933
      %v2935 = vshll.u32 2475754826, %v2929
      %v2936 = vshrl.u32 2131351028, %v2930
      %v2937 = vor.u32 %v2935, %v2936
      %v2938 = vshll.u32 2131351028, %v2929
      %v2939 = vshrl.u32 2102212464, %v2930
      %v2940 = vor.u32 %v2938, %v2939
      %v2941 = vshll.u32 2102212464, %v2929
      %v2942 = vshrl.u32 920167782, %v2930
      %v2943 = vor.u32 %v2941, %v2942
      %v2944 = vshll.u32 920167782, %v2929
      %v2945 = vshrl.u32 1326507024, %v2930
      %v2946 = vor.u32 %v2944, %v2945
      %vm2947 = vcmp.lt.s32.totalorder %v2928, 1
      %vm2948 = vcmp.lt.s32.totalorder %v2928, 2
      %vm2949 = vcmp.lt.s32.totalorder %v2928, 3
      %vm2950 = vcmp.lt.s32.totalorder %v2928, 4
      %v2951 = vsel %vm2947, %v2931, %v2934
      %v2952 = vsel %vm2950, %v2940, 2102212464
      %v2953 = vsel %vm2949, %v2937, %v2952
      %v2954 = vsel %vm2948, %v2951, %v2953
      %v2955 = vsel %vm2947, %v2934, %v2937
      %v2956 = vsel %vm2950, %v2943, 920167782
      %v2957 = vsel %vm2949, %v2940, %v2956
      %v2958 = vsel %vm2948, %v2955, %v2957
      %v2959 = vsel %vm2947, %v2937, %v2940
      %v2960 = vsel %vm2950, %v2946, 1326507024
      %v2961 = vsel %vm2949, %v2943, %v2960
      %v2962 = vsel %vm2948, %v2959, %v2961
      %v2963 = vshll.u32 %v2923, 8
      %v2964 = vmul.u32.u64.compose %v2963, %v2962
      %v2965 = vextract.low.u32 %v2964
      %v2966 = vextract.high.u32 %v2964
      %v2967 = vmul.u32.u64.compose %v2963, %v2958
      %v2968 = vextract.low.u32 %v2967
      %v2969 = vextract.high.u32 %v2967
      %v2970 = vmul.u32 %v2963, %v2954
      %v2971 = vadd.s32 %v2966, %v2968
      %vm2972 = vc.u32 %v2966, %v2968
      %v2973 = vadd.s32 %v2969, 1
      %v2974 = vsel %vm2972, %v2973, %v2969
      %v2975 = vadd.s32 %v2970, %v2974
      %v2976 = vadd.s32 %v2975, 536870912
      %v2977 = vshrl.u32 %v2976, 30
      %v2978 = vshll.u32 %v2977, 30
      %v2979 = vsub.s32 %v2975, %v2978
      %vm2980 = vcmp.lt.s32.totalorder %v2979, 0
      %v2981 = vsub.s32 0, %v2979
      %v2982 = vsel %vm2980, %v2981, %v2979
      %v2983 = vclz %v2982
      %v2984 = vsub.s32 %v2983, 2
      %vm2985 = vcmp.gt.s32.totalorder 0, %v2984
      %v2986 = vsel %vm2985, 0, %v2984
      %v2987 = vsub.s32 32, %v2986
      %v2988 = vshll.u32 %v2979, %v2986
      %v2989 = vshrl.u32 %v2971, %v2987
      %v2990 = vor.u32 %v2988, %v2989
      %v2991 = vsub.s32 4294967266, %v2986
      %v2992 = vadd.s32 %v2991, 127
      %v2993 = vshll.u32 %v2992, 23
      %v2994 = vor.u32 4788187, %v2993
      %v2995 = vand.u32 2147483647, %v2994
      %v2997 = vcvt.s32.f32 %v2990
      %v2998 = vmul.f32 %v2997, %v2995
      %v2999 = vxor.u32 %v2998, 2147483648
      %v3000 = vsel %vm2917, %v2999, %v2998
      %v3001 = vsub.s32 4, %v2977
      %v3002 = vsel %vm2917, %v3001, %v2977
      %v3003 = vsel %vm2916, %v402, %v3000
      %v3004 = vsel %vm2916, 0, %v3002
      %v3005 = vcosq.f32.pop %v3003
      %v3006 = vsinq.f32.pop %v3003
      %vm3007 = vweird.f32 %v402
      %v3008 = vand.u32 %v3004, 3
      %vm3009 = vcmp.lt.s32.totalorder %v3008, 2
      %vm3010 = vcmp.eq.s32.totalorder %v3008, 0
      %v3011 = vxor.u32 %v3006, 2147483648
      %v3012 = vsel %vm3010, %v3005, %v3011
      %vm3013 = vcmp.eq.s32.totalorder %v3008, 2
      %v3014 = vxor.u32 %v3005, 2147483648
      %v3015 = vsel %vm3013, %v3014, %v3006
      %v3016 = vsel %vm3009, %v3012, %v3015
      %v3017 = vsel %vm3007, nan, %v3016
      %v3018 = vand.u32 2147483647, %v403
      %vm3019 = vcmp.le.f32.partialorder %v3018, 0.7853982
      %vm3020 = vcmp.lt.s32.totalorder %v403, 0
      %v3021 = vand.u32 %v403, 2139095040
      %v3022 = vshrl.u32 %v3021, 23
      %v3023 = vsub.s32 %v3022, 127
      %v3024 = vand.u32 2147483647, %v403
      %v3025 = vand.u32 %v3024, 8388607
      %v3026 = vor.u32 %v3025, 8388608
      %v3027 = vsub.s32 0, %v3026
      %v3028 = vadd.s32 %v3023, 1
      %vm3029 = vcmp.gt.s32.totalorder %v3028, 0
      %v3030 = vsel %vm3029, %v3028, 0
      %v3031 = vshrl.u32 %v3030, 5
      %v3032 = vand.u32 %v3030, 31
      %v3033 = vsub.s32 32, %v3032
      %v3034 = vshrl.u32 683565275, %v3033
      %v3035 = vshll.u32 683565275, %v3032
      %v3036 = vshrl.u32 2475754826, %v3033
      %v3037 = vor.u32 %v3035, %v3036
      %v3038 = vshll.u32 2475754826, %v3032
      %v3039 = vshrl.u32 2131351028, %v3033
      %v3040 = vor.u32 %v3038, %v3039
      %v3041 = vshll.u32 2131351028, %v3032
      %v3042 = vshrl.u32 2102212464, %v3033
      %v3043 = vor.u32 %v3041, %v3042
      %v3044 = vshll.u32 2102212464, %v3032
      %v3045 = vshrl.u32 920167782, %v3033
      %v3046 = vor.u32 %v3044, %v3045
      %v3047 = vshll.u32 920167782, %v3032
      %v3048 = vshrl.u32 1326507024, %v3033
      %v3049 = vor.u32 %v3047, %v3048
      %vm3050 = vcmp.lt.s32.totalorder %v3031, 1
      %vm3051 = vcmp.lt.s32.totalorder %v3031, 2
      %vm3052 = vcmp.lt.s32.totalorder %v3031, 3
      %vm3053 = vcmp.lt.s32.totalorder %v3031, 4
      %v3054 = vsel %vm3050, %v3034, %v3037
      %v3055 = vsel %vm3053, %v3043, 2102212464
      %v3056 = vsel %vm3052, %v3040, %v3055
      %v3057 = vsel %vm3051, %v3054, %v3056
      %v3058 = vsel %vm3050, %v3037, %v3040
      %v3059 = vsel %vm3053, %v3046, 920167782
      %v3060 = vsel %vm3052, %v3043, %v3059
      %v3061 = vsel %vm3051, %v3058, %v3060
      %v3062 = vsel %vm3050, %v3040, %v3043
      %v3063 = vsel %vm3053, %v3049, 1326507024
      %v3064 = vsel %vm3052, %v3046, %v3063
      %v3065 = vsel %vm3051, %v3062, %v3064
      %v3066 = vshll.u32 %v3026, 8
      %v3067 = vmul.u32.u64.compose %v3066, %v3065
      %v3068 = vextract.low.u32 %v3067
      %v3069 = vextract.high.u32 %v3067
      %v3070 = vmul.u32.u64.compose %v3066, %v3061
      %v3071 = vextract.low.u32 %v3070
      %v3072 = vextract.high.u32 %v3070
      %v3073 = vmul.u32 %v3066, %v3057
      %v3074 = vadd.s32 %v3069, %v3071
      %vm3075 = vc.u32 %v3069, %v3071
      %v3076 = vadd.s32 %v3072, 1
      %v3077 = vsel %vm3075, %v3076, %v3072
      %v3078 = vadd.s32 %v3073, %v3077
      %v3079 = vadd.s32 %v3078, 536870912
      %v3080 = vshrl.u32 %v3079, 30
      %v3081 = vshll.u32 %v3080, 30
      %v3082 = vsub.s32 %v3078, %v3081
      %vm3083 = vcmp.lt.s32.totalorder %v3082, 0
      %v3084 = vsub.s32 0, %v3082
      %v3085 = vsel %vm3083, %v3084, %v3082
      %v3086 = vclz %v3085
      %v3087 = vsub.s32 %v3086, 2
      %vm3088 = vcmp.gt.s32.totalorder 0, %v3087
      %v3089 = vsel %vm3088, 0, %v3087
      %v3090 = vsub.s32 32, %v3089
      %v3091 = vshll.u32 %v3082, %v3089
      %v3092 = vshrl.u32 %v3074, %v3090
      %v3093 = vor.u32 %v3091, %v3092
      %v3094 = vsub.s32 4294967266, %v3089
      %v3095 = vadd.s32 %v3094, 127
      %v3096 = vshll.u32 %v3095, 23
      %v3097 = vor.u32 4788187, %v3096
      %v3098 = vand.u32 2147483647, %v3097
      %v3100 = vcvt.s32.f32 %v3093
      %v3101 = vmul.f32 %v3100, %v3098
      %v3102 = vxor.u32 %v3101, 2147483648
      %v3103 = vsel %vm3020, %v3102, %v3101
      %v3104 = vsub.s32 4, %v3080
      %v3105 = vsel %vm3020, %v3104, %v3080
      %v3106 = vsel %vm3019, %v403, %v3103
      %v3107 = vsel %vm3019, 0, %v3105
      %v3108 = vcosq.f32.pop %v3106
      %v3109 = vsinq.f32.pop %v3106
      %vm3110 = vweird.f32 %v403
      %v3111 = vand.u32 %v3107, 3
      %vm3112 = vcmp.lt.s32.totalorder %v3111, 2
      %vm3113 = vcmp.eq.s32.totalorder %v3111, 0
      %v3114 = vxor.u32 %v3109, 2147483648
      %v3115 = vsel %vm3113, %v3108, %v3114
      %vm3116 = vcmp.eq.s32.totalorder %v3111, 2
      %v3117 = vxor.u32 %v3108, 2147483648
      %v3118 = vsel %vm3116, %v3117, %v3109
      %v3119 = vsel %vm3112, %v3115, %v3118
      %v3120 = vsel %vm3110, nan, %v3119
      %v3121 = vand.u32 2147483647, %v404
      %vm3122 = vcmp.le.f32.partialorder %v3121, 0.7853982
      %vm3123 = vcmp.lt.s32.totalorder %v404, 0
      %v3124 = vand.u32 %v404, 2139095040
      %v3125 = vshrl.u32 %v3124, 23
      %v3126 = vsub.s32 %v3125, 127
      %v3127 = vand.u32 2147483647, %v404
      %v3128 = vand.u32 %v3127, 8388607
      %v3129 = vor.u32 %v3128, 8388608
      %v3130 = vsub.s32 0, %v3129
      %v3131 = vadd.s32 %v3126, 1
      %vm3132 = vcmp.gt.s32.totalorder %v3131, 0
      %v3133 = vsel %vm3132, %v3131, 0
      %v3134 = vshrl.u32 %v3133, 5
      %v3135 = vand.u32 %v3133, 31
      %v3136 = vsub.s32 32, %v3135
      %v3137 = vshrl.u32 683565275, %v3136
      %v3138 = vshll.u32 683565275, %v3135
      %v3139 = vshrl.u32 2475754826, %v3136
      %v3140 = vor.u32 %v3138, %v3139
      %v3141 = vshll.u32 2475754826, %v3135
      %v3142 = vshrl.u32 2131351028, %v3136
      %v3143 = vor.u32 %v3141, %v3142
      %v3144 = vshll.u32 2131351028, %v3135
      %v3145 = vshrl.u32 2102212464, %v3136
      %v3146 = vor.u32 %v3144, %v3145
      %v3147 = vshll.u32 2102212464, %v3135
      %v3148 = vshrl.u32 920167782, %v3136
      %v3149 = vor.u32 %v3147, %v3148
      %v3150 = vshll.u32 920167782, %v3135
      %v3151 = vshrl.u32 1326507024, %v3136
      %v3152 = vor.u32 %v3150, %v3151
      %vm3153 = vcmp.lt.s32.totalorder %v3134, 1
      %vm3154 = vcmp.lt.s32.totalorder %v3134, 2
      %vm3155 = vcmp.lt.s32.totalorder %v3134, 3
      %vm3156 = vcmp.lt.s32.totalorder %v3134, 4
      %v3157 = vsel %vm3153, %v3137, %v3140
      %v3158 = vsel %vm3156, %v3146, 2102212464
      %v3159 = vsel %vm3155, %v3143, %v3158
      %v3160 = vsel %vm3154, %v3157, %v3159
      %v3161 = vsel %vm3153, %v3140, %v3143
      %v3162 = vsel %vm3156, %v3149, 920167782
      %v3163 = vsel %vm3155, %v3146, %v3162
      %v3164 = vsel %vm3154, %v3161, %v3163
      %v3165 = vsel %vm3153, %v3143, %v3146
      %v3166 = vsel %vm3156, %v3152, 1326507024
      %v3167 = vsel %vm3155, %v3149, %v3166
      %v3168 = vsel %vm3154, %v3165, %v3167
      %v3169 = vshll.u32 %v3129, 8
      %v3170 = vmul.u32.u64.compose %v3169, %v3168
      %v3171 = vextract.low.u32 %v3170
      %v3172 = vextract.high.u32 %v3170
      %v3173 = vmul.u32.u64.compose %v3169, %v3164
      %v3174 = vextract.low.u32 %v3173
      %v3175 = vextract.high.u32 %v3173
      %v3176 = vmul.u32 %v3169, %v3160
      %v3177 = vadd.s32 %v3172, %v3174
      %vm3178 = vc.u32 %v3172, %v3174
      %v3179 = vadd.s32 %v3175, 1
      %v3180 = vsel %vm3178, %v3179, %v3175
      %v3181 = vadd.s32 %v3176, %v3180
      %v3182 = vadd.s32 %v3181, 536870912
      %v3183 = vshrl.u32 %v3182, 30
      %v3184 = vshll.u32 %v3183, 30
      %v3185 = vsub.s32 %v3181, %v3184
      %vm3186 = vcmp.lt.s32.totalorder %v3185, 0
      %v3187 = vsub.s32 0, %v3185
      %v3188 = vsel %vm3186, %v3187, %v3185
      %v3189 = vclz %v3188
      %v3190 = vsub.s32 %v3189, 2
      %vm3191 = vcmp.gt.s32.totalorder 0, %v3190
      %v3192 = vsel %vm3191, 0, %v3190
      %v3193 = vsub.s32 32, %v3192
      %v3194 = vshll.u32 %v3185, %v3192
      %v3195 = vshrl.u32 %v3177, %v3193
      %v3196 = vor.u32 %v3194, %v3195
      %v3197 = vsub.s32 4294967266, %v3192
      %v3198 = vadd.s32 %v3197, 127
      %v3199 = vshll.u32 %v3198, 23
      %v3200 = vor.u32 4788187, %v3199
      %v3201 = vand.u32 2147483647, %v3200
      %v3203 = vcvt.s32.f32 %v3196
      %v3204 = vmul.f32 %v3203, %v3201
      %v3205 = vxor.u32 %v3204, 2147483648
      %v3206 = vsel %vm3123, %v3205, %v3204
      %v3207 = vsub.s32 4, %v3183
      %v3208 = vsel %vm3123, %v3207, %v3183
      %v3209 = vsel %vm3122, %v404, %v3206
      %v3210 = vsel %vm3122, 0, %v3208
      %v3211 = vcosq.f32.pop %v3209
      %v3212 = vsinq.f32.pop %v3209
      %vm3213 = vweird.f32 %v404
      %v3214 = vand.u32 %v3210, 3
      %vm3215 = vcmp.lt.s32.totalorder %v3214, 2
      %vm3216 = vcmp.eq.s32.totalorder %v3214, 0
      %v3217 = vxor.u32 %v3212, 2147483648
      %v3218 = vsel %vm3216, %v3211, %v3217
      %vm3219 = vcmp.eq.s32.totalorder %v3214, 2
      %v3220 = vxor.u32 %v3211, 2147483648
      %v3221 = vsel %vm3219, %v3220, %v3212
      %v3222 = vsel %vm3215, %v3218, %v3221
      %v3223 = vsel %vm3213, nan, %v3222
      %v3224 = vand.u32 2147483647, %v405
      %vm3225 = vcmp.le.f32.partialorder %v3224, 0.7853982
      %vm3226 = vcmp.lt.s32.totalorder %v405, 0
      %v3227 = vand.u32 %v405, 2139095040
      %v3228 = vshrl.u32 %v3227, 23
      %v3229 = vsub.s32 %v3228, 127
      %v3230 = vand.u32 2147483647, %v405
      %v3231 = vand.u32 %v3230, 8388607
      %v3232 = vor.u32 %v3231, 8388608
      %v3233 = vsub.s32 0, %v3232
      %v3234 = vadd.s32 %v3229, 1
      %vm3235 = vcmp.gt.s32.totalorder %v3234, 0
      %v3236 = vsel %vm3235, %v3234, 0
      %v3237 = vshrl.u32 %v3236, 5
      %v3238 = vand.u32 %v3236, 31
      %v3239 = vsub.s32 32, %v3238
      %v3240 = vshrl.u32 683565275, %v3239
      %v3241 = vshll.u32 683565275, %v3238
      %v3242 = vshrl.u32 2475754826, %v3239
      %v3243 = vor.u32 %v3241, %v3242
      %v3244 = vshll.u32 2475754826, %v3238
      %v3245 = vshrl.u32 2131351028, %v3239
      %v3246 = vor.u32 %v3244, %v3245
      %v3247 = vshll.u32 2131351028, %v3238
      %v3248 = vshrl.u32 2102212464, %v3239
      %v3249 = vor.u32 %v3247, %v3248
      %v3250 = vshll.u32 2102212464, %v3238
      %v3251 = vshrl.u32 920167782, %v3239
      %v3252 = vor.u32 %v3250, %v3251
      %v3253 = vshll.u32 920167782, %v3238
      %v3254 = vshrl.u32 1326507024, %v3239
      %v3255 = vor.u32 %v3253, %v3254
      %vm3256 = vcmp.lt.s32.totalorder %v3237, 1
      %vm3257 = vcmp.lt.s32.totalorder %v3237, 2
      %vm3258 = vcmp.lt.s32.totalorder %v3237, 3
      %vm3259 = vcmp.lt.s32.totalorder %v3237, 4
      %v3260 = vsel %vm3256, %v3240, %v3243
      %v3261 = vsel %vm3259, %v3249, 2102212464
      %v3262 = vsel %vm3258, %v3246, %v3261
      %v3263 = vsel %vm3257, %v3260, %v3262
      %v3264 = vsel %vm3256, %v3243, %v3246
      %v3265 = vsel %vm3259, %v3252, 920167782
      %v3266 = vsel %vm3258, %v3249, %v3265
      %v3267 = vsel %vm3257, %v3264, %v3266
      %v3268 = vsel %vm3256, %v3246, %v3249
      %v3269 = vsel %vm3259, %v3255, 1326507024
      %v3270 = vsel %vm3258, %v3252, %v3269
      %v3271 = vsel %vm3257, %v3268, %v3270
      %v3272 = vshll.u32 %v3232, 8
      %v3273 = vmul.u32.u64.compose %v3272, %v3271
      %v3274 = vextract.low.u32 %v3273
      %v3275 = vextract.high.u32 %v3273
      %v3276 = vmul.u32.u64.compose %v3272, %v3267
      %v3277 = vextract.low.u32 %v3276
      %v3278 = vextract.high.u32 %v3276
      %v3279 = vmul.u32 %v3272, %v3263
      %v3280 = vadd.s32 %v3275, %v3277
      %vm3281 = vc.u32 %v3275, %v3277
      %v3282 = vadd.s32 %v3278, 1
      %v3283 = vsel %vm3281, %v3282, %v3278
      %v3284 = vadd.s32 %v3279, %v3283
      %v3285 = vadd.s32 %v3284, 536870912
      %v3286 = vshrl.u32 %v3285, 30
      %v3287 = vshll.u32 %v3286, 30
      %v3288 = vsub.s32 %v3284, %v3287
      %vm3289 = vcmp.lt.s32.totalorder %v3288, 0
      %v3290 = vsub.s32 0, %v3288
      %v3291 = vsel %vm3289, %v3290, %v3288
      %v3292 = vclz %v3291
      %v3293 = vsub.s32 %v3292, 2
      %vm3294 = vcmp.gt.s32.totalorder 0, %v3293
      %v3295 = vsel %vm3294, 0, %v3293
      %v3296 = vsub.s32 32, %v3295
      %v3297 = vshll.u32 %v3288, %v3295
      %v3298 = vshrl.u32 %v3280, %v3296
      %v3299 = vor.u32 %v3297, %v3298
      %v3300 = vsub.s32 4294967266, %v3295
      %v3301 = vadd.s32 %v3300, 127
      %v3302 = vshll.u32 %v3301, 23
      %v3303 = vor.u32 4788187, %v3302
      %v3304 = vand.u32 2147483647, %v3303
      %v3306 = vcvt.s32.f32 %v3299
      %v3307 = vmul.f32 %v3306, %v3304
      %v3308 = vxor.u32 %v3307, 2147483648
      %v3309 = vsel %vm3226, %v3308, %v3307
      %v3310 = vsub.s32 4, %v3286
      %v3311 = vsel %vm3226, %v3310, %v3286
      %v3312 = vsel %vm3225, %v405, %v3309
      %v3313 = vsel %vm3225, 0, %v3311
      %v3314 = vcosq.f32.pop %v3312
      %v3315 = vsinq.f32.pop %v3312
      %vm3316 = vweird.f32 %v405
      %v3317 = vand.u32 %v3313, 3
      %vm3318 = vcmp.lt.s32.totalorder %v3317, 2
      %vm3319 = vcmp.eq.s32.totalorder %v3317, 0
      %v3320 = vxor.u32 %v3315, 2147483648
      %v3321 = vsel %vm3319, %v3314, %v3320
      %vm3322 = vcmp.eq.s32.totalorder %v3317, 2
      %v3323 = vxor.u32 %v3314, 2147483648
      %v3324 = vsel %vm3322, %v3323, %v3315
      %v3325 = vsel %vm3318, %v3321, %v3324
      %v3326 = vsel %vm3316, nan, %v3325
      %v3327 = vand.u32 2147483647, %v406
      %vm3328 = vcmp.le.f32.partialorder %v3327, 0.7853982
      %vm3329 = vcmp.lt.s32.totalorder %v406, 0
      %v3330 = vand.u32 %v406, 2139095040
      %v3331 = vshrl.u32 %v3330, 23
      %v3332 = vsub.s32 %v3331, 127
      %v3333 = vand.u32 2147483647, %v406
      %v3334 = vand.u32 %v3333, 8388607
      %v3335 = vor.u32 %v3334, 8388608
      %v3336 = vsub.s32 0, %v3335
      %v3337 = vadd.s32 %v3332, 1
      %vm3338 = vcmp.gt.s32.totalorder %v3337, 0
      %v3339 = vsel %vm3338, %v3337, 0
      %v3340 = vshrl.u32 %v3339, 5
      %v3341 = vand.u32 %v3339, 31
      %v3342 = vsub.s32 32, %v3341
      %v3343 = vshrl.u32 683565275, %v3342
      %v3344 = vshll.u32 683565275, %v3341
      %v3345 = vshrl.u32 2475754826, %v3342
      %v3346 = vor.u32 %v3344, %v3345
      %v3347 = vshll.u32 2475754826, %v3341
      %v3348 = vshrl.u32 2131351028, %v3342
      %v3349 = vor.u32 %v3347, %v3348
      %v3350 = vshll.u32 2131351028, %v3341
      %v3351 = vshrl.u32 2102212464, %v3342
      %v3352 = vor.u32 %v3350, %v3351
      %v3353 = vshll.u32 2102212464, %v3341
      %v3354 = vshrl.u32 920167782, %v3342
      %v3355 = vor.u32 %v3353, %v3354
      %v3356 = vshll.u32 920167782, %v3341
      %v3357 = vshrl.u32 1326507024, %v3342
      %v3358 = vor.u32 %v3356, %v3357
      %vm3359 = vcmp.lt.s32.totalorder %v3340, 1
      %vm3360 = vcmp.lt.s32.totalorder %v3340, 2
      %vm3361 = vcmp.lt.s32.totalorder %v3340, 3
      %vm3362 = vcmp.lt.s32.totalorder %v3340, 4
      %v3363 = vsel %vm3359, %v3343, %v3346
      %v3364 = vsel %vm3362, %v3352, 2102212464
      %v3365 = vsel %vm3361, %v3349, %v3364
      %v3366 = vsel %vm3360, %v3363, %v3365
      %v3367 = vsel %vm3359, %v3346, %v3349
      %v3368 = vsel %vm3362, %v3355, 920167782
      %v3369 = vsel %vm3361, %v3352, %v3368
      %v3370 = vsel %vm3360, %v3367, %v3369
      %v3371 = vsel %vm3359, %v3349, %v3352
      %v3372 = vsel %vm3362, %v3358, 1326507024
      %v3373 = vsel %vm3361, %v3355, %v3372
      %v3374 = vsel %vm3360, %v3371, %v3373
      %v3375 = vshll.u32 %v3335, 8
      %v3376 = vmul.u32.u64.compose %v3375, %v3374
      %v3377 = vextract.low.u32 %v3376
      %v3378 = vextract.high.u32 %v3376
      %v3379 = vmul.u32.u64.compose %v3375, %v3370
      %v3380 = vextract.low.u32 %v3379
      %v3381 = vextract.high.u32 %v3379
      %v3382 = vmul.u32 %v3375, %v3366
      %v3383 = vadd.s32 %v3378, %v3380
      %vm3384 = vc.u32 %v3378, %v3380
      %v3385 = vadd.s32 %v3381, 1
      %v3386 = vsel %vm3384, %v3385, %v3381
      %v3387 = vadd.s32 %v3382, %v3386
      %v3388 = vadd.s32 %v3387, 536870912
      %v3389 = vshrl.u32 %v3388, 30
      %v3390 = vshll.u32 %v3389, 30
      %v3391 = vsub.s32 %v3387, %v3390
      %vm3392 = vcmp.lt.s32.totalorder %v3391, 0
      %v3393 = vsub.s32 0, %v3391
      %v3394 = vsel %vm3392, %v3393, %v3391
      %v3395 = vclz %v3394
      %v3396 = vsub.s32 %v3395, 2
      %vm3397 = vcmp.gt.s32.totalorder 0, %v3396
      %v3398 = vsel %vm3397, 0, %v3396
      %v3399 = vsub.s32 32, %v3398
      %v3400 = vshll.u32 %v3391, %v3398
      %v3401 = vshrl.u32 %v3383, %v3399
      %v3402 = vor.u32 %v3400, %v3401
      %v3403 = vsub.s32 4294967266, %v3398
      %v3404 = vadd.s32 %v3403, 127
      %v3405 = vshll.u32 %v3404, 23
      %v3406 = vor.u32 4788187, %v3405
      %v3407 = vand.u32 2147483647, %v3406
      %v3409 = vcvt.s32.f32 %v3402
      %v3410 = vmul.f32 %v3409, %v3407
      %v3411 = vxor.u32 %v3410, 2147483648
      %v3412 = vsel %vm3329, %v3411, %v3410
      %v3413 = vsub.s32 4, %v3389
      %v3414 = vsel %vm3329, %v3413, %v3389
      %v3415 = vsel %vm3328, %v406, %v3412
      %v3416 = vsel %vm3328, 0, %v3414
      %v3417 = vcosq.f32.pop %v3415
      %v3418 = vsinq.f32.pop %v3415
      %vm3419 = vweird.f32 %v406
      %v3420 = vand.u32 %v3416, 3
      %vm3421 = vcmp.lt.s32.totalorder %v3420, 2
      %vm3422 = vcmp.eq.s32.totalorder %v3420, 0
      %v3423 = vxor.u32 %v3418, 2147483648
      %v3424 = vsel %vm3422, %v3417, %v3423
      %vm3425 = vcmp.eq.s32.totalorder %v3420, 2
      %v3426 = vxor.u32 %v3417, 2147483648
      %v3427 = vsel %vm3425, %v3426, %v3418
      %v3428 = vsel %vm3421, %v3424, %v3427
      %v3429 = vsel %vm3419, nan, %v3428
      %v3430 = vand.u32 2147483647, %v407
      %vm3431 = vcmp.le.f32.partialorder %v3430, 0.7853982
      %vm3432 = vcmp.lt.s32.totalorder %v407, 0
      %v3433 = vand.u32 %v407, 2139095040
      %v3434 = vshrl.u32 %v3433, 23
      %v3435 = vsub.s32 %v3434, 127
      %v3436 = vand.u32 2147483647, %v407
      %v3437 = vand.u32 %v3436, 8388607
      %v3438 = vor.u32 %v3437, 8388608
      %v3439 = vsub.s32 0, %v3438
      %v3440 = vadd.s32 %v3435, 1
      %vm3441 = vcmp.gt.s32.totalorder %v3440, 0
      %v3442 = vsel %vm3441, %v3440, 0
      %v3443 = vshrl.u32 %v3442, 5
      %v3444 = vand.u32 %v3442, 31
      %v3445 = vsub.s32 32, %v3444
      %v3446 = vshrl.u32 683565275, %v3445
      %v3447 = vshll.u32 683565275, %v3444
      %v3448 = vshrl.u32 2475754826, %v3445
      %v3449 = vor.u32 %v3447, %v3448
      %v3450 = vshll.u32 2475754826, %v3444
      %v3451 = vshrl.u32 2131351028, %v3445
      %v3452 = vor.u32 %v3450, %v3451
      %v3453 = vshll.u32 2131351028, %v3444
      %v3454 = vshrl.u32 2102212464, %v3445
      %v3455 = vor.u32 %v3453, %v3454
      %v3456 = vshll.u32 2102212464, %v3444
      %v3457 = vshrl.u32 920167782, %v3445
      %v3458 = vor.u32 %v3456, %v3457
      %v3459 = vshll.u32 920167782, %v3444
      %v3460 = vshrl.u32 1326507024, %v3445
      %v3461 = vor.u32 %v3459, %v3460
      %vm3462 = vcmp.lt.s32.totalorder %v3443, 1
      %vm3463 = vcmp.lt.s32.totalorder %v3443, 2
      %vm3464 = vcmp.lt.s32.totalorder %v3443, 3
      %vm3465 = vcmp.lt.s32.totalorder %v3443, 4
      %v3466 = vsel %vm3462, %v3446, %v3449
      %v3467 = vsel %vm3465, %v3455, 2102212464
      %v3468 = vsel %vm3464, %v3452, %v3467
      %v3469 = vsel %vm3463, %v3466, %v3468
      %v3470 = vsel %vm3462, %v3449, %v3452
      %v3471 = vsel %vm3465, %v3458, 920167782
      %v3472 = vsel %vm3464, %v3455, %v3471
      %v3473 = vsel %vm3463, %v3470, %v3472
      %v3474 = vsel %vm3462, %v3452, %v3455
      %v3475 = vsel %vm3465, %v3461, 1326507024
      %v3476 = vsel %vm3464, %v3458, %v3475
      %v3477 = vsel %vm3463, %v3474, %v3476
      %v3478 = vshll.u32 %v3438, 8
      %v3479 = vmul.u32.u64.compose %v3478, %v3477
      %v3480 = vextract.low.u32 %v3479
      %v3481 = vextract.high.u32 %v3479
      %v3482 = vmul.u32.u64.compose %v3478, %v3473
      %v3483 = vextract.low.u32 %v3482
      %v3484 = vextract.high.u32 %v3482
      %v3485 = vmul.u32 %v3478, %v3469
      %v3486 = vadd.s32 %v3481, %v3483
      %vm3487 = vc.u32 %v3481, %v3483
      %v3488 = vadd.s32 %v3484, 1
      %v3489 = vsel %vm3487, %v3488, %v3484
      %v3490 = vadd.s32 %v3485, %v3489
      %v3491 = vadd.s32 %v3490, 536870912
      %v3492 = vshrl.u32 %v3491, 30
      %v3493 = vshll.u32 %v3492, 30
      %v3494 = vsub.s32 %v3490, %v3493
      %vm3495 = vcmp.lt.s32.totalorder %v3494, 0
      %v3496 = vsub.s32 0, %v3494
      %v3497 = vsel %vm3495, %v3496, %v3494
      %v3498 = vclz %v3497
      %v3499 = vsub.s32 %v3498, 2
      %vm3500 = vcmp.gt.s32.totalorder 0, %v3499
      %v3501 = vsel %vm3500, 0, %v3499
      %v3502 = vsub.s32 32, %v3501
      %v3503 = vshll.u32 %v3494, %v3501
      %v3504 = vshrl.u32 %v3486, %v3502
      %v3505 = vor.u32 %v3503, %v3504
      %v3506 = vsub.s32 4294967266, %v3501
      %v3507 = vadd.s32 %v3506, 127
      %v3508 = vshll.u32 %v3507, 23
      %v3509 = vor.u32 4788187, %v3508
      %v3510 = vand.u32 2147483647, %v3509
      %v3512 = vcvt.s32.f32 %v3505
      %v3513 = vmul.f32 %v3512, %v3510
      %v3514 = vxor.u32 %v3513, 2147483648
      %v3515 = vsel %vm3432, %v3514, %v3513
      %v3516 = vsub.s32 4, %v3492
      %v3517 = vsel %vm3432, %v3516, %v3492
      %v3518 = vsel %vm3431, %v407, %v3515
      %v3519 = vsel %vm3431, 0, %v3517
      %v3520 = vcosq.f32.pop %v3518
      %v3521 = vsinq.f32.pop %v3518
      %vm3522 = vweird.f32 %v407
      %v3523 = vand.u32 %v3519, 3
      %vm3524 = vcmp.lt.s32.totalorder %v3523, 2
      %vm3525 = vcmp.eq.s32.totalorder %v3523, 0
      %v3526 = vxor.u32 %v3521, 2147483648
      %v3527 = vsel %vm3525, %v3520, %v3526
      %vm3528 = vcmp.eq.s32.totalorder %v3523, 2
      %v3529 = vxor.u32 %v3520, 2147483648
      %v3530 = vsel %vm3528, %v3529, %v3521
      %v3531 = vsel %vm3524, %v3527, %v3530
      %v3532 = vsel %vm3522, nan, %v3531
      %v3533 = vand.u32 2147483647, %v408
      %vm3534 = vcmp.le.f32.partialorder %v3533, 0.7853982
      %vm3535 = vcmp.lt.s32.totalorder %v408, 0
      %v3536 = vand.u32 %v408, 2139095040
      %v3537 = vshrl.u32 %v3536, 23
      %v3538 = vsub.s32 %v3537, 127
      %v3539 = vand.u32 2147483647, %v408
      %v3540 = vand.u32 %v3539, 8388607
      %v3541 = vor.u32 %v3540, 8388608
      %v3542 = vsub.s32 0, %v3541
      %v3543 = vadd.s32 %v3538, 1
      %vm3544 = vcmp.gt.s32.totalorder %v3543, 0
      %v3545 = vsel %vm3544, %v3543, 0
      %v3546 = vshrl.u32 %v3545, 5
      %v3547 = vand.u32 %v3545, 31
      %v3548 = vsub.s32 32, %v3547
      %v3549 = vshrl.u32 683565275, %v3548
      %v3550 = vshll.u32 683565275, %v3547
      %v3551 = vshrl.u32 2475754826, %v3548
      %v3552 = vor.u32 %v3550, %v3551
      %v3553 = vshll.u32 2475754826, %v3547
      %v3554 = vshrl.u32 2131351028, %v3548
      %v3555 = vor.u32 %v3553, %v3554
      %v3556 = vshll.u32 2131351028, %v3547
      %v3557 = vshrl.u32 2102212464, %v3548
      %v3558 = vor.u32 %v3556, %v3557
      %v3559 = vshll.u32 2102212464, %v3547
      %v3560 = vshrl.u32 920167782, %v3548
      %v3561 = vor.u32 %v3559, %v3560
      %v3562 = vshll.u32 920167782, %v3547
      %v3563 = vshrl.u32 1326507024, %v3548
      %v3564 = vor.u32 %v3562, %v3563
      %vm3565 = vcmp.lt.s32.totalorder %v3546, 1
      %vm3566 = vcmp.lt.s32.totalorder %v3546, 2
      %vm3567 = vcmp.lt.s32.totalorder %v3546, 3
      %vm3568 = vcmp.lt.s32.totalorder %v3546, 4
      %v3569 = vsel %vm3565, %v3549, %v3552
      %v3570 = vsel %vm3568, %v3558, 2102212464
      %v3571 = vsel %vm3567, %v3555, %v3570
      %v3572 = vsel %vm3566, %v3569, %v3571
      %v3573 = vsel %vm3565, %v3552, %v3555
      %v3574 = vsel %vm3568, %v3561, 920167782
      %v3575 = vsel %vm3567, %v3558, %v3574
      %v3576 = vsel %vm3566, %v3573, %v3575
      %v3577 = vsel %vm3565, %v3555, %v3558
      %v3578 = vsel %vm3568, %v3564, 1326507024
      %v3579 = vsel %vm3567, %v3561, %v3578
      %v3580 = vsel %vm3566, %v3577, %v3579
      %v3581 = vshll.u32 %v3541, 8
      %v3582 = vmul.u32.u64.compose %v3581, %v3580
      %v3583 = vextract.low.u32 %v3582
      %v3584 = vextract.high.u32 %v3582
      %v3585 = vmul.u32.u64.compose %v3581, %v3576
      %v3586 = vextract.low.u32 %v3585
      %v3587 = vextract.high.u32 %v3585
      %v3588 = vmul.u32 %v3581, %v3572
      %v3589 = vadd.s32 %v3584, %v3586
      %vm3590 = vc.u32 %v3584, %v3586
      %v3591 = vadd.s32 %v3587, 1
      %v3592 = vsel %vm3590, %v3591, %v3587
      %v3593 = vadd.s32 %v3588, %v3592
      %v3594 = vadd.s32 %v3593, 536870912
      %v3595 = vshrl.u32 %v3594, 30
      %v3596 = vshll.u32 %v3595, 30
      %v3597 = vsub.s32 %v3593, %v3596
      %vm3598 = vcmp.lt.s32.totalorder %v3597, 0
      %v3599 = vsub.s32 0, %v3597
      %v3600 = vsel %vm3598, %v3599, %v3597
      %v3601 = vclz %v3600
      %v3602 = vsub.s32 %v3601, 2
      %vm3603 = vcmp.gt.s32.totalorder 0, %v3602
      %v3604 = vsel %vm3603, 0, %v3602
      %v3605 = vsub.s32 32, %v3604
      %v3606 = vshll.u32 %v3597, %v3604
      %v3607 = vshrl.u32 %v3589, %v3605
      %v3608 = vor.u32 %v3606, %v3607
      %v3609 = vsub.s32 4294967266, %v3604
      %v3610 = vadd.s32 %v3609, 127
      %v3611 = vshll.u32 %v3610, 23
      %v3612 = vor.u32 4788187, %v3611
      %v3613 = vand.u32 2147483647, %v3612
      %v3615 = vcvt.s32.f32 %v3608
      %v3616 = vmul.f32 %v3615, %v3613
      %v3617 = vxor.u32 %v3616, 2147483648
      %v3618 = vsel %vm3535, %v3617, %v3616
      %v3619 = vsub.s32 4, %v3595
      %v3620 = vsel %vm3535, %v3619, %v3595
      %v3621 = vsel %vm3534, %v408, %v3618
      %v3622 = vsel %vm3534, 0, %v3620
      %v3623 = vcosq.f32.pop %v3621
      %v3624 = vsinq.f32.pop %v3621
      %vm3625 = vweird.f32 %v408
      %v3626 = vand.u32 %v3622, 3
      %vm3627 = vcmp.lt.s32.totalorder %v3626, 2
      %vm3628 = vcmp.eq.s32.totalorder %v3626, 0
      %v3629 = vxor.u32 %v3624, 2147483648
      %v3630 = vsel %vm3628, %v3623, %v3629
      %vm3631 = vcmp.eq.s32.totalorder %v3626, 2
      %v3632 = vxor.u32 %v3623, 2147483648
      %v3633 = vsel %vm3631, %v3632, %v3624
      %v3634 = vsel %vm3627, %v3630, %v3633
      %v3635 = vsel %vm3625, nan, %v3634
      %v3636 = vand.u32 2147483647, %v409
      %vm3637 = vcmp.le.f32.partialorder %v3636, 0.7853982
      %vm3638 = vcmp.lt.s32.totalorder %v409, 0
      %v3639 = vand.u32 %v409, 2139095040
      %v3640 = vshrl.u32 %v3639, 23
      %v3641 = vsub.s32 %v3640, 127
      %v3642 = vand.u32 2147483647, %v409
      %v3643 = vand.u32 %v3642, 8388607
      %v3644 = vor.u32 %v3643, 8388608
      %v3645 = vsub.s32 0, %v3644
      %v3646 = vadd.s32 %v3641, 1
      %vm3647 = vcmp.gt.s32.totalorder %v3646, 0
      %v3648 = vsel %vm3647, %v3646, 0
      %v3649 = vshrl.u32 %v3648, 5
      %v3650 = vand.u32 %v3648, 31
      %v3651 = vsub.s32 32, %v3650
      %v3652 = vshrl.u32 683565275, %v3651
      %v3653 = vshll.u32 683565275, %v3650
      %v3654 = vshrl.u32 2475754826, %v3651
      %v3655 = vor.u32 %v3653, %v3654
      %v3656 = vshll.u32 2475754826, %v3650
      %v3657 = vshrl.u32 2131351028, %v3651
      %v3658 = vor.u32 %v3656, %v3657
      %v3659 = vshll.u32 2131351028, %v3650
      %v3660 = vshrl.u32 2102212464, %v3651
      %v3661 = vor.u32 %v3659, %v3660
      %v3662 = vshll.u32 2102212464, %v3650
      %v3663 = vshrl.u32 920167782, %v3651
      %v3664 = vor.u32 %v3662, %v3663
      %v3665 = vshll.u32 920167782, %v3650
      %v3666 = vshrl.u32 1326507024, %v3651
      %v3667 = vor.u32 %v3665, %v3666
      %vm3668 = vcmp.lt.s32.totalorder %v3649, 1
      %vm3669 = vcmp.lt.s32.totalorder %v3649, 2
      %vm3670 = vcmp.lt.s32.totalorder %v3649, 3
      %vm3671 = vcmp.lt.s32.totalorder %v3649, 4
      %v3672 = vsel %vm3668, %v3652, %v3655
      %v3673 = vsel %vm3671, %v3661, 2102212464
      %v3674 = vsel %vm3670, %v3658, %v3673
      %v3675 = vsel %vm3669, %v3672, %v3674
      %v3676 = vsel %vm3668, %v3655, %v3658
      %v3677 = vsel %vm3671, %v3664, 920167782
      %v3678 = vsel %vm3670, %v3661, %v3677
      %v3679 = vsel %vm3669, %v3676, %v3678
      %v3680 = vsel %vm3668, %v3658, %v3661
      %v3681 = vsel %vm3671, %v3667, 1326507024
      %v3682 = vsel %vm3670, %v3664, %v3681
      %v3683 = vsel %vm3669, %v3680, %v3682
      %v3684 = vshll.u32 %v3644, 8
      %v3685 = vmul.u32.u64.compose %v3684, %v3683
      %v3686 = vextract.low.u32 %v3685
      %v3687 = vextract.high.u32 %v3685
      %v3688 = vmul.u32.u64.compose %v3684, %v3679
      %v3689 = vextract.low.u32 %v3688
      %v3690 = vextract.high.u32 %v3688
      %v3691 = vmul.u32 %v3684, %v3675
      %v3692 = vadd.s32 %v3687, %v3689
      %vm3693 = vc.u32 %v3687, %v3689
      %v3694 = vadd.s32 %v3690, 1
      %v3695 = vsel %vm3693, %v3694, %v3690
      %v3696 = vadd.s32 %v3691, %v3695
      %v3697 = vadd.s32 %v3696, 536870912
      %v3698 = vshrl.u32 %v3697, 30
      %v3699 = vshll.u32 %v3698, 30
      %v3700 = vsub.s32 %v3696, %v3699
      %vm3701 = vcmp.lt.s32.totalorder %v3700, 0
      %v3702 = vsub.s32 0, %v3700
      %v3703 = vsel %vm3701, %v3702, %v3700
      %v3704 = vclz %v3703
      %v3705 = vsub.s32 %v3704, 2
      %vm3706 = vcmp.gt.s32.totalorder 0, %v3705
      %v3707 = vsel %vm3706, 0, %v3705
      %v3708 = vsub.s32 32, %v3707
      %v3709 = vshll.u32 %v3700, %v3707
      %v3710 = vshrl.u32 %v3692, %v3708
      %v3711 = vor.u32 %v3709, %v3710
      %v3712 = vsub.s32 4294967266, %v3707
      %v3713 = vadd.s32 %v3712, 127
      %v3714 = vshll.u32 %v3713, 23
      %v3715 = vor.u32 4788187, %v3714
      %v3716 = vand.u32 2147483647, %v3715
      %v3718 = vcvt.s32.f32 %v3711
      %v3719 = vmul.f32 %v3718, %v3716
      %v3720 = vxor.u32 %v3719, 2147483648
      %v3721 = vsel %vm3638, %v3720, %v3719
      %v3722 = vsub.s32 4, %v3698
      %v3723 = vsel %vm3638, %v3722, %v3698
      %v3724 = vsel %vm3637, %v409, %v3721
      %v3725 = vsel %vm3637, 0, %v3723
      %v3726 = vcosq.f32.pop %v3724
      %v3727 = vsinq.f32.pop %v3724
      %vm3728 = vweird.f32 %v409
      %v3729 = vand.u32 %v3725, 3
      %vm3730 = vcmp.lt.s32.totalorder %v3729, 2
      %vm3731 = vcmp.eq.s32.totalorder %v3729, 0
      %v3732 = vxor.u32 %v3727, 2147483648
      %v3733 = vsel %vm3731, %v3726, %v3732
      %vm3734 = vcmp.eq.s32.totalorder %v3729, 2
      %v3735 = vxor.u32 %v3726, 2147483648
      %v3736 = vsel %vm3734, %v3735, %v3727
      %v3737 = vsel %vm3730, %v3733, %v3736
      %v3738 = vsel %vm3728, nan, %v3737
      %3755 = vrot.lane.b32.xlu0 %v2193, 20
      %v3756 = vpop.permute.xlu0 %3755
      %3757 = vrot.lane.b32.xlu0 %v2296, 20
      %v3758 = vpop.permute.xlu0 %3757
      %3759 = vrot.lane.b32.xlu0 %v2399, 20
      %v3760 = vpop.permute.xlu0 %3759
      %3761 = vrot.lane.b32.xlu0 %v2502, 20
      %v3762 = vpop.permute.xlu0 %3761
      %3763 = vrot.lane.b32.xlu0 %v2605, 20
      %v3764 = vpop.permute.xlu0 %3763
      %3765 = vrot.lane.b32.xlu0 %v2708, 20
      %v3766 = vpop.permute.xlu0 %3765
      %3767 = vrot.lane.b32.xlu0 %v2811, 20
      %v3768 = vpop.permute.xlu0 %3767
      %3769 = vrot.lane.b32.xlu0 %v2914, 20
      %v3770 = vpop.permute.xlu0 %3769
      %3771 = vrot.lane.b32.xlu0 %v3017, 20
      %v3772 = vpop.permute.xlu0 %3771
      %3773 = vrot.lane.b32.xlu0 %v3120, 20
      %v3774 = vpop.permute.xlu0 %3773
      %3775 = vrot.lane.b32.xlu0 %v3223, 20
      %v3776 = vpop.permute.xlu0 %3775
      %3777 = vrot.lane.b32.xlu0 %v3326, 20
      %v3778 = vpop.permute.xlu0 %3777
      %3779 = vrot.lane.b32.xlu0 %v3429, 20
      %v3780 = vpop.permute.xlu0 %3779
      %3781 = vrot.lane.b32.xlu0 %v3532, 20
      %v3782 = vpop.permute.xlu0 %3781
      %3783 = vrot.lane.b32.xlu0 %v3635, 20
      %v3784 = vpop.permute.xlu0 %3783
      %3785 = vrot.lane.b32.xlu0 %v3738, 20
      %v3786 = vpop.permute.xlu0 %3785
      %vm3803 = vcmask 326816
      %3804 = vst.msk [vmem:[%s145] sm:$0xff] %vm3803, %v3756
      %3805 = vst.msk [vmem:[%s145 + $0x8] sm:$0xff] %vm3803, %v3758
      %3806 = vst.msk [vmem:[%s145 + $0x10] sm:$0xff] %vm3803, %v3760
      %3807 = vst.msk [vmem:[%s145 + $0x18] sm:$0xff] %vm3803, %v3762
      %3808 = vst.msk [vmem:[%s145 + $0x20] sm:$0xff] %vm3803, %v3764
      %3809 = vst.msk [vmem:[%s145 + $0x28] sm:$0xff] %vm3803, %v3766
      %3810 = vst.msk [vmem:[%s145 + $0x30] sm:$0xff] %vm3803, %v3768
      %3811 = vst.msk [vmem:[%s145 + $0x38] sm:$0xff] %vm3803, %v3770
      %3812 = vst.msk [vmem:[%s145 + $0x40] sm:$0xff] %vm3803, %v3772
      %3813 = vst.msk [vmem:[%s145 + $0x48] sm:$0xff] %vm3803, %v3774
      %3814 = vst.msk [vmem:[%s145 + $0x50] sm:$0xff] %vm3803, %v3776
      %3815 = vst.msk [vmem:[%s145 + $0x58] sm:$0xff] %vm3803, %v3778
      %3816 = vst.msk [vmem:[%s145 + $0x60] sm:$0xff] %vm3803, %v3780
      %3817 = vst.msk [vmem:[%s145 + $0x68] sm:$0xff] %vm3803, %v3782
      %3818 = vst.msk [vmem:[%s145 + $0x70] sm:$0xff] %vm3803, %v3784
      %3819 = vst.msk [vmem:[%s145 + $0x78] sm:$0xff] %vm3803, %v3786
      %s3820 = smul.u32 16, %s13
      %p3821 = scmp.lt.s32.totalorder %s3820, 31
      %s3822 = scalar_select %p3821, %s3820, 31
      %s3823 = smul.addr %s3822, 8
      %s3824 = scalar_lea.vmem %s2, %s3823
      // Predicated region
      $region29: #{tpu_custom_call.1} parent=27 // pred_check
        %p3825 = pneg %p78
      $region30: #{tpu_custom_call.1} parent=27 // pred_check_branch
        %3827 = sbr.rel (%p3825) target = $region32
      $region31: #{tpu_custom_call.1} parent=27 // pred_region
        %s3828 = smul.u32 16, %s13
      $region32: #{tpu_custom_call.1} parent=27 // pred_fallthru
        _
    $region28: #{tpu_custom_call.1} parent=5 // pred_fallthru
      _
    %p3829 = scmp.le.s32.totalorder 2, %s8
    // Predicated region
    $region33: #{tpu_custom_call.1} parent=5 // pred_check
      %p3830 = pneg %p3829
    $region34: #{tpu_custom_call.1} parent=5 // pred_check_branch
      %3832 = sbr.rel (%p3830) target = $region36
    $region35: #{tpu_custom_call.1} parent=5 // pred_region
      %s3833 = ssub.s32 %s8, 2
      // Predicated region
      $region37: #{tpu_custom_call.1} parent=35 // pred_check
        %p3834 = pneg %p84
      $region38: #{tpu_custom_call.1} parent=35 // pred_check_branch
        %3836 = sbr.rel (%p3834) target = $region40
      $region39: #{tpu_custom_call.1} parent=35 // pred_region
        %s3837 = smul.u32 16, %s14
        %p3838 = scmp.lt.s32.totalorder %s3837, 31
        %s3839 = scalar_select %p3838, %s3837, 31
        %s3840 = smul.addr %s3839, 8
        %s3841 = scalar_lea.vmem %s2, %s3840
      $region40: #{tpu_custom_call.1} parent=35 // pred_fallthru
        _
    $region36: #{tpu_custom_call.1} parent=5 // pred_fallthru
      _
  $region6: #{tpu_custom_call.1} parent=0 // loop_footer
    %s12 = sadd.s32 1, %s8
  $region7: #{tpu_custom_call.1} parent=0 // loop_footer_branch
    %7 = sbr.rel target = $region3
  $region8: #{tpu_custom_call.1} parent=0 // loop_exit
    _

</llo_original>
